<compile_context>
chip_gen: v6e
topology: v6e:2x2x1
jax: 0.10.0
libtpu: 0.0.40
codegen_flags: <defaults>
</compile_context>

<pallas_src>
import functools

import jax
import jax.numpy as jnp
import numpy as np
from jax.experimental import pallas as pl
from jax.experimental.pallas import tpu as pltpu


def _round_up(a, b):
    return -(-a // b) * b


def _cdiv(a, b):
    return -(-a // b)


def _vmem_budget_bytes():
    # Generation-aware VMEM budget: ~70% of physical VMEM (v5e/v6e: 128 MiB,
    # v7x: 64 MiB), capped, with a conservative fallback if the query fails.
    try:
        cap = int(pltpu.get_tpu_info().vmem_capacity_bytes)
    except Exception:
        cap = 64 * 1024 * 1024
    return max(32 * 1024 * 1024, min(int(cap * 0.70), 96 * 1024 * 1024))


# --------------------------------------------------------------------------
# Pallas kernels
# --------------------------------------------------------------------------
def _conv1_kernel(x_ref, w_ref, s_ref, o_ref):
    # 1x1 conv == matmul; BN1 scale already folded into w, so the epilogue is
    # bias/shift add + ReLU.  bf16 operands, f32 accumulation, bf16 output.
    y = jnp.dot(x_ref[...], w_ref[...], preferred_element_type=jnp.float32)
    y = y + s_ref[...]
    o_ref[...] = jnp.maximum(y, 0.0).astype(o_ref.dtype)


def _conv23_kernel(z_ref, w2_ref, s2_ref, w3_ref, s3_ref, res_ref, o_ref,
                   imcol_ref, *, h, w):
    # Fused conv2(3x3) + bn2 + relu  ->  conv3(1x1) + bn3 + residual + relu.
    # z_ref:   (F, h+2, w+2, planes) bf16, spatially halo-padded, already gated
    #          and temporally shifted.
    # imcol_ref: (F*h*w, 9*planes) bf16 VMEM scratch (in-VMEM im2col).
    F = z_ref.shape[0]
    planes = z_ref.shape[3]
    rows = F * h * w
    z = z_ref[...]

    # In-VMEM im2col: write the nine shifted windows side-by-side on the lane
    # axis so conv2 becomes ONE big-K (K = 9*planes) MXU matmul instead of
    # nine tiny-K matmuls plus eight full-tile f32 VALU adds.
    for kh in range(3):
        for kw in range(3):
            idx = kh * 3 + kw
            imcol_ref[:, idx * planes:(idx + 1) * planes] = (
                z[:, kh:kh + h, kw:kw + w, :].reshape(rows, planes))

    y2 = jnp.dot(imcol_ref[...], w2_ref[...],
                 preferred_element_type=jnp.float32)                 # conv2
    y2 = jnp.maximum(y2 + s2_ref[...], 0.0).astype(jnp.bfloat16)     # bn2+relu
    y3 = jnp.dot(y2, w3_ref[...], preferred_element_type=jnp.float32)  # conv3
    y3 = y3 + s3_ref[...] + res_ref[...].reshape(rows, -1).astype(jnp.float32)
    o_ref[...] = jnp.maximum(y3, 0.0).astype(o_ref.dtype).reshape(o_ref.shape)


# --------------------------------------------------------------------------
# Pallas wrappers
# --------------------------------------------------------------------------
def conv1_bn_relu_pallas(x_rows, w_col, shift_row, vmem_budget):
    """x_rows: (M, K) bf16; w_col: (K, N) bf16 (BN folded); shift: (1, N) f32."""
    M, K = x_rows.shape
    N = w_col.shape[1]
    Kp = _round_up(K, 128)
    Np = _round_up(N, 128)
    # bytes/row: double-buffered bf16 in+out blocks + f32 accumulator + slack.
    per_row = 2 * 2 * Kp + 2 * 2 * Np + 4 * Np + 2 * Kp
    tm = max(8, (vmem_budget // 2) // per_row)
    tm = min(tm, 4096)
    if M > 8:
        tm = min(tm, _round_up(_cdiv(M, 2), 8))     # >=2 grid steps (megacore)
    tm = _round_up(min(tm, max(M, 1)), 8)
    g = _cdiv(M, tm)
    Mp = g * tm
    if Mp != M:
        x_rows = jnp.pad(x_rows, ((0, Mp - M), (0, 0)))

    cost = pl.CostEstimate(
        flops=2 * M * K * N,
        transcendentals=0,
        bytes_accessed=M * K * 2 + K * N * 2 + M * N * 2 + N * 4)

    out = pl.pallas_call(
        _conv1_kernel,
        out_shape=jax.ShapeDtypeStruct((Mp, N), jnp.bfloat16),
        grid=(g,),
        in_specs=[pl.BlockSpec((tm, K), lambda i: (i, 0)),
                  pl.BlockSpec((K, N), lambda i: (0, 0)),
                  pl.BlockSpec((1, N), lambda i: (0, 0))],
        out_specs=pl.BlockSpec((tm, N), lambda i: (i, 0)),
        compiler_params=pltpu.CompilerParams(
            dimension_semantics=("parallel",),
            vmem_limit_bytes=vmem_budget),
        cost_estimate=cost,
    )(x_rows, w_col, shift_row)
    return out[:M]


def _pick_frames_per_step(nt, h, w, planes, cexp, vmem_budget):
    # Byte-budgeted frames-per-step: 2x double-buffered blocks (z / res / out)
    # plus in-kernel temporaries (im2col scratch, conv2/conv3 accumulators),
    # conservatively accounting for lane padding to 128.
    hw = h * w
    zb = (h + 2) * _round_up(w + 2, 8) * _round_up(planes, 128) * 2
    rb = h * _round_up(w, 8) * _round_up(cexp, 128) * 2              # res (bf16)
    k9p = _round_up(9 * planes, 128)
    tmp = hw * (2 * k9p * 2                          # im2col scratch + slice copies
                + _round_up(planes, 128) * (4 + 2)   # conv2 f32 acc + bf16 y2
                + _round_up(cexp, 128) * 4)          # conv3 f32 acc
    per_frame = 2 * (zb + 2 * rb) + tmp
    F = max(1, int(vmem_budget * 0.8) // per_frame)
    F = min(F, max(1, 4096 // hw))                   # bound MXU M per step
    if nt > 1:
        F = min(F, _cdiv(nt, 2))                     # >=2 grid steps (megacore)
    # TODO(synk): add inner h-tiling fallback when even F=1 overflows VMEM
    #             (very large H*W with cexp >= 256 on v7x).
    return max(1, min(F, nt))


def conv23_fused_pallas(z_pad, w2, s2, w3, s3, res, vmem_budget):
    """z_pad: (nt, h+2, w+2, planes) bf16; res: (nt, h, w, 4*planes) bf16."""
    nt, hp2, wp2, planes = z_pad.shape
    h, w = hp2 - 2, wp2 - 2
    cexp = w3.shape[1]
    F = _pick_frames_per_step(nt, h, w, planes, cexp, vmem_budget)
    grid = _cdiv(nt, F)
    ntp = grid * F
    if ntp != nt:
        z_pad = jnp.pad(z_pad, ((0, ntp - nt), (0, 0), (0, 0), (0, 0)))
        res = jnp.pad(res, ((0, ntp - nt), (0, 0), (0, 0), (0, 0)))

    M = nt * h * w
    cost = pl.CostEstimate(
        flops=2 * M * (9 * planes) * planes + 2 * M * planes * cexp,
        transcendentals=0,
        bytes_accessed=(z_pad.size * 2 + res.size * 2 + M * cexp * 2
                        + w2.size * 2 + w3.size * 2 + (planes + cexp) * 4))

    kernel = functools.partial(_conv23_kernel, h=h, w=w)
    out = pl.pallas_call(
        kernel,
        out_shape=jax.ShapeDtypeStruct((ntp, h, w, cexp), jnp.bfloat16),
        grid=(grid,),
        in_specs=[
            pl.BlockSpec((F, hp2, wp2, planes), lambda i: (i, 0, 0, 0)),
            pl.BlockSpec((9 * planes, planes), lambda i: (0, 0)),
            pl.BlockSpec((1, planes), lambda i: (0, 0)),
            pl.BlockSpec((planes, cexp), lambda i: (0, 0)),
            pl.BlockSpec((1, cexp), lambda i: (0, 0)),
            pl.BlockSpec((F, h, w, cexp), lambda i: (i, 0, 0, 0)),
        ],
        out_specs=pl.BlockSpec((F, h, w, cexp), lambda i: (i, 0, 0, 0)),
        scratch_shapes=[pltpu.VMEM((F * h * w, 9 * planes), jnp.bfloat16)],
        compiler_params=pltpu.CompilerParams(
            dimension_semantics=("parallel",),
            vmem_limit_bytes=vmem_budget),
        cost_estimate=cost,
    )(z_pad, w2, s2, w3, s3, res)
    return out[:nt]


# --------------------------------------------------------------------------
# Plain-JAX glue: BN folding, tiny gate convolutions, shift
# --------------------------------------------------------------------------
def bn_affine(gamma, beta, rm, rv, eps=1e-5):
    scale = gamma / jnp.sqrt(rv + eps)
    shift = beta - rm * scale
    return scale, shift


def conv3d_333(x, w):
    # x: (n, 1, T, H, W); w: (1, 1, 3, 3, 3); padding 1; no bias.
    return jax.lax.conv_general_dilated(
        x, w, window_strides=(1, 1, 1), padding=((1, 1), (1, 1), (1, 1)),
        dimension_numbers=('NCDHW', 'OIDHW', 'NCDHW'))


def conv1d_temporal(x, w):
    # x: (n, Cin, T); w: (Cout, Cin, 3); padding 1; no bias.
    return jax.lax.conv_general_dilated(
        x, w, window_strides=(1,), padding=((1, 1),),
        dimension_numbers=('NCH', 'OIH', 'NCH'))


def mste_gate(xr, p, n, T, h, w, path):
    # xr: (n*T, h, w) channel-mean of conv1 output. Returns sigmoid(y)-0.5.
    # TODO(synk): only path_num <= 2 gate branches are implemented here.
    x5 = xr.reshape(n, T, 1, h, w).transpose(0, 2, 1, 3, 4)          # (n,1,T,h,w)
    s1, b1 = bn_affine(*p['p1_bn'])
    y = conv3d_333(x5, p['p1_conv']) * s1 + b1
    if path > 1:
        assert h % 2 == 0 and w % 2 == 0, "path>1 nearest upsample needs even h,w"
        xp2 = xr.reshape(n * T, h // 2, 2, w // 2, 2).mean(axis=(2, 4))
        x5p2 = xp2.reshape(n, T, 1, h // 2, w // 2).transpose(0, 2, 1, 3, 4)
        s2, b2 = bn_affine(*p['p2_bn'])
        y2 = conv3d_333(x5p2, p['p2_conv']) * s2 + b2
        y2 = jnp.repeat(jnp.repeat(y2, 2, axis=3), 2, axis=4)        # nearest x2
        y = 0.5 * y + 0.5 * y2
    y = y.transpose(0, 2, 1, 3, 4).reshape(n * T, h, w)
    return jax.nn.sigmoid(y) - 0.5


def attention_gate(sm, p, n, T, planes):
    # sm: (nt, planes) spatial mean of conv1 output. Returns (nt, planes).
    x = sm.reshape(n, T, planes).transpose(0, 2, 1)                  # (n, C, T)
    s1, b1 = bn_affine(*p['fc1_bn'])
    o1 = jnp.maximum(conv1d_temporal(x, p['fc1_w'])
                     * s1[None, :, None] + b1[None, :, None], 0.0)
    s2, b2 = bn_affine(*p['fc2_bn'])
    o2 = jnp.maximum(conv1d_temporal(o1, p['fc2_w'])
                     * s2[None, :, None] + b2[None, :, None], 0.0)
    o = conv1d_temporal(o2 + o1, p['fc3_w'])                         # (n, planes, T)
    g = jax.nn.sigmoid(o) - 0.5
    return g.transpose(0, 2, 1).reshape(n * T, planes)


def temporal_shift(x, n, T, h, w, c, fold):
    # x: (n*T, h*w, c); per-channel temporal shift with zero pad (ShiftModule).
    x5 = x.reshape(n, T, h, w, c)
    xp = jnp.pad(x5, ((0, 0), (1, 1), (0, 0), (0, 0), (0, 0)))
    left = xp[:, 2:, :, :, :fold]               # out[t] = x[t+1]
    right = xp[:, :-2, :, :, fold:2 * fold]     # out[t] = x[t-1]
    rest = x5[..., 2 * fold:]                   # identity
    return jnp.concatenate([left, right, rest], axis=-1).reshape(n * T, h, w, c)


# --------------------------------------------------------------------------
# Full Bottleneck forward
# --------------------------------------------------------------------------
def bottleneck_forward(x_nchw, p, cfg, use_pallas=True):
    nt, cin, h, w = x_nchw.shape
    T = cfg['num_segments']
    n = nt // T
    planes = cfg['planes']
    path = cfg['path_num']
    hw = h * w
    M = nt * hw
    cexp = 4 * planes
    assert cin == cexp, "residual add requires inplanes == planes*expansion"

    vmem_budget = _vmem_budget_bytes()

    x_cl = jnp.transpose(x_nchw, (0, 2, 3, 1))                       # (nt,h,w,cin) f32
    x_rows_bf16 = x_cl.reshape(M, cin).astype(jnp.bfloat16)
    res_bf16 = x_rows_bf16.reshape(nt, h, w, cexp)                   # bf16 residual

    # --- fold BN(eval) scales into the conv weights (done once on constants) ---
    s1, sh1 = bn_affine(*p['bn1'])
    w1 = (p['conv1_w'].reshape(planes, cin).T * s1[None, :]).astype(jnp.bfloat16)
    b1 = (p['conv1_b'] * s1 + sh1).reshape(1, planes)

    s2, sh2 = bn_affine(*p['bn2'])
    w2 = jnp.transpose(p['conv2_w'], (2, 3, 1, 0)).reshape(9 * planes, planes)
    w2 = (w2 * s2[None, :]).astype(jnp.bfloat16)                     # (9*planes, planes)
    b2 = (p['conv2_b'] * s2 + sh2).reshape(1, planes)

    s3, sh3 = bn_affine(*p['bn3'])
    w3 = (p['conv3_w'].reshape(cexp, planes).T * s3[None, :]).astype(jnp.bfloat16)
    b3 = (p['conv3_b'] * s3 + sh3).reshape(1, cexp)

    # --- conv1 (1x1) + bn1 + relu ---
    if use_pallas:
        out1 = conv1_bn_relu_pallas(x_rows_bf16, w1, b1, vmem_budget)  # (M, planes) bf16
    else:
        out1 = jnp.maximum(
            jnp.dot(x_rows_bf16, w1, preferred_element_type=jnp.float32) + b1,
            0.0).astype(jnp.bfloat16)

    out1_3d = out1.reshape(nt, hw, planes)
    cmean = out1_3d.astype(jnp.float32).mean(axis=2)                 # (nt, hw)
    smean = out1_3d.astype(jnp.float32).mean(axis=1)                 # (nt, planes)

    # --- MSTE gate & multi-scale temporal attention gate (tiny convs, glue) ---
    g_mste = mste_gate(cmean.reshape(nt, h, w), p, n, T, h, w, path)   # (nt, h, w)
    g_attn = attention_gate(smean, p, n, T, planes)                    # (nt, planes)

    # --- gate combine + temporal shift + spatial halo pad (bf16 elementwise glue) ---
    fold = planes // 8
    gated = (out1_3d.astype(jnp.float32)
             * (1.0 + g_mste.reshape(nt, hw, 1) + g_attn.reshape(nt, 1, planes))
             ).astype(jnp.bfloat16)
    shifted = temporal_shift(gated, n, T, h, w, planes, fold)        # (nt,h,w,planes) bf16
    z_pad = jnp.pad(shifted, ((0, 0), (1, 1), (1, 1), (0, 0)))       # (nt,h+2,w+2,planes)

    # --- conv2 (3x3) + bn2 + relu  fused with  conv3 (1x1) + bn3 + residual + relu ---
    if use_pallas:
        out3 = conv23_fused_pallas(z_pad, w2, b2, w3, b3, res_bf16, vmem_budget)
    else:
        acc = None
        for kh in range(3):
            for kw in range(3):
                patch = z_pad[:, kh:kh + h, kw:kw + w, :].reshape(M, planes)
                part = jnp.dot(patch, w2[(kh * 3 + kw) * planes:(kh * 3 + kw + 1) * planes],
                               preferred_element_type=jnp.float32)
                acc = part if acc is None else acc + part
        y2 = jnp.maximum(acc + b2, 0.0).astype(jnp.bfloat16)
        y3 = jnp.dot(y2, w3, preferred_element_type=jnp.float32) + b3 \
             + res_bf16.reshape(M, cexp).astype(jnp.float32)
        out3 = jnp.maximum(y3, 0.0).astype(jnp.bfloat16).reshape(nt, h, w, cexp)

    out3 = out3.astype(jnp.float32)
    return jnp.transpose(out3, (0, 3, 1, 2))                         # back to NCHW


# --------------------------------------------------------------------------
# Deterministic synthetic parameters
# --------------------------------------------------------------------------
def init_params(key, inplanes, planes):
    ks = jax.random.split(key, 18)
    cdiv = planes // 4

    def bn(k, c):
        k1, k2, k3, k4 = jax.random.split(k, 4)
        return (1.0 + 0.1 * jax.random.normal(k1, (c,)),
                0.1 * jax.random.normal(k2, (c,)),
                0.1 * jax.random.normal(k3, (c,)),
                jax.random.uniform(k4, (c,), minval=0.5, maxval=1.5))

    p = {
        'conv1_w': 0.2 * jax.random.normal(ks[0], (planes, inplanes, 1, 1)),
        'conv1_b': 0.1 * jax.random.normal(ks[1], (planes,)),
        'bn1': bn(ks[2], planes),
        'fc1_w': 0.3 * jax.random.normal(ks[3], (cdiv, planes, 3)),   # (3,1,1) conv, squeezed
        'fc1_bn': bn(ks[4], cdiv),
        'fc2_w': 0.3 * jax.random.normal(ks[5], (cdiv, cdiv, 3)),
        'fc2_bn': bn(ks[6], cdiv),
        'fc3_w': 0.3 * jax.random.normal(ks[7], (planes, cdiv, 3)),
        'p1_conv': 0.3 * jax.random.normal(ks[8], (1, 1, 3, 3, 3)),
        'p1_bn': bn(ks[9], 1),
        'p2_conv': 0.3 * jax.random.normal(ks[10], (1, 1, 3, 3, 3)),
        'p2_bn': bn(ks[11], 1),
        'conv2_w': 0.2 * jax.random.normal(ks[12], (planes, planes, 3, 3)),
        'conv2_b': 0.1 * jax.random.normal(ks[13], (planes,)),
        'bn2': bn(ks[14], planes),
        'conv3_w': 0.2 * jax.random.normal(ks[15], (4 * planes, planes, 1, 1)),
        'conv3_b': 0.1 * jax.random.normal(ks[16], (4 * planes,)),
        'bn3': bn(ks[17], 4 * planes),
    }
    return jax.tree_util.tree_map(lambda a: a.astype(jnp.float32), p)


# --------------------------------------------------------------------------
if __name__ == "__main__":
    num_segments = 8
    planes = 8
    inplanes = 4 * planes      # residual add requires inplanes == planes*expansion
    path_num = 2
    n = 1
    nt = n * num_segments
    h = w = 8

    key = jax.random.PRNGKey(0)
    kx, kp = jax.random.split(key)
    x = jax.random.normal(kx, (nt, inplanes, h, w), dtype=jnp.float32)
    params = init_params(kp, inplanes, planes)
    cfg = dict(num_segments=num_segments, planes=planes, path_num=path_num)

    fwd_pallas = jax.jit(lambda xx, pp: bottleneck_forward(xx, pp, cfg, True))
    fwd_ref = jax.jit(lambda xx, pp: bottleneck_forward(xx, pp, cfg, False))

    out = jax.block_until_ready(fwd_pallas(x, params))
    ref = jax.block_until_ready(fwd_ref(x, params))

    assert out.shape == (nt, 4 * planes, h, w)
    # bf16 intermediates / output rounding (kernel vs XLA accumulation order)
    # account for the tolerance.
    np.testing.assert_allclose(np.asarray(out), np.asarray(ref), rtol=2e-2, atol=2e-2)
    print("KERNEL_OK")
</pallas_src>

<mosaic_0001>
module attributes {stable_mosaic.version = 11 : i64} {
  func.func @_conv1_kernel(%arg0: i32, %arg1: memref<256x32xbf16, #tpu.memory_space<vmem>>, %arg2: memref<32x8xbf16, #tpu.memory_space<vmem>>, %arg3: memref<1x8xf32, #tpu.memory_space<vmem>>, %arg4: memref<256x8xbf16, #tpu.memory_space<vmem>>) attributes {dimension_semantics = [#tpu.dimension_semantics<parallel>], iteration_bounds = array<i64: 2>, scalar_prefetch = 0 : i64, scratch_operands = 0 : i64, tpu.core_type = #tpu.core_type<tc>, window_params = [{transform_indices = @transform_0, window_bounds = array<i64: 256, 32>}, {pipeline_mode = #tpu.pipeline_mode<synchronous>, transform_indices = @transform_1, window_bounds = array<i64: 32, 8>}, {pipeline_mode = #tpu.pipeline_mode<synchronous>, transform_indices = @transform_2, window_bounds = array<i64: 1, 8>}, {transform_indices = @transform_3, window_bounds = array<i64: 256, 8>}]} {
    %c0 = arith.constant 0 : index
    %c0_0 = arith.constant 0 : index
    %0 = vector.load %arg1[%c0, %c0_0] : memref<256x32xbf16, #tpu.memory_space<vmem>>, vector<256x32xbf16>
    %c0_1 = arith.constant 0 : index
    %c0_2 = arith.constant 0 : index
    %1 = vector.load %arg2[%c0_1, %c0_2] : memref<32x8xbf16, #tpu.memory_space<vmem>>, vector<32x8xbf16>
    %cst = arith.constant dense<0.000000e+00> : vector<256x8xf32>
    %2 = tpu.matmul %0, %1, %cst {dimension_numbers = #tpu.dot_dimension_numbers<[1], [0], [0], [1], [0, 0, 1, 1], [], []>} : vector<256x32xbf16>, vector<32x8xbf16>, vector<256x8xf32> -> vector<256x8xf32>
    %c0_3 = arith.constant 0 : index
    %c0_4 = arith.constant 0 : index
    %3 = vector.load %arg3[%c0_3, %c0_4] : memref<1x8xf32, #tpu.memory_space<vmem>>, vector<1x8xf32>
    %4 = vector.broadcast %3 : vector<1x8xf32> to vector<256x8xf32>
    %5 = arith.addf %2, %4 : vector<256x8xf32>
    %cst_5 = arith.constant 0.000000e+00 : f32
    %6 = vector.broadcast %cst_5 : f32 to vector<256x8xf32>
    %7 = arith.maximumf %5, %6 : vector<256x8xf32>
    %8 = arith.truncf %7 : vector<256x8xf32> to vector<256x8xbf16>
    %c0_6 = arith.constant 0 : index
    %c0_7 = arith.constant 0 : index
    %9 = vector.load %arg4[%c0_6, %c0_7] : memref<256x8xbf16, #tpu.memory_space<vmem>>, vector<256x8xbf16>
    tpu.vector_store %arg4[%c0_6, %c0_7], %8 {strides = array<i32>} : memref<256x8xbf16, #tpu.memory_space<vmem>>, vector<256x8xbf16>,
    return
  }
  func.func @transform_0(%arg0: i32) -> (i32, i32) {
    %c0_i32 = arith.constant 0 : i32
    %c0_i32_0 = arith.constant 0 : i32
    return %arg0, %c0_i32 : i32, i32
  }
  func.func @transform_1(%arg0: i32) -> (i32, i32) {
    %c0_i32 = arith.constant 0 : i32
    %c0_i32_0 = arith.constant 0 : i32
    %c0_i32_1 = arith.constant 0 : i32
    return %c0_i32, %c0_i32_0 : i32, i32
  }
  func.func @transform_2(%arg0: i32) -> (i32, i32) {
    %c0_i32 = arith.constant 0 : i32
    %c0_i32_0 = arith.constant 0 : i32
    %c0_i32_1 = arith.constant 0 : i32
    return %c0_i32, %c0_i32_0 : i32, i32
  }
  func.func @transform_3(%arg0: i32) -> (i32, i32) {
    %c0_i32 = arith.constant 0 : i32
    %c0_i32_0 = arith.constant 0 : i32
    return %arg0, %c0_i32 : i32, i32
  }
}

module attributes {stable_mosaic.version = 11 : i64} {
  func.func @_conv23_kernel(%arg0: i32, %arg1: memref<4x10x10x8xbf16, #tpu.memory_space<vmem>>, %arg2: memref<72x8xbf16, #tpu.memory_space<vmem>>, %arg3: memref<1x8xf32, #tpu.memory_space<vmem>>, %arg4: memref<8x32xbf16, #tpu.memory_space<vmem>>, %arg5: memref<1x32xf32, #tpu.memory_space<vmem>>, %arg6: memref<4x8x8x32xbf16, #tpu.memory_space<vmem>>, %arg7: memref<4x8x8x32xbf16, #tpu.memory_space<vmem>>, %arg8: memref<256x72xbf16, #tpu.memory_space<vmem>>) attributes {dimension_semantics = [#tpu.dimension_semantics<parallel>], iteration_bounds = array<i64: 2>, scalar_prefetch = 0 : i64, scratch_operands = 1 : i64, tpu.core_type = #tpu.core_type<tc>, window_params = [{transform_indices = @transform_0, window_bounds = array<i64: 4, 10, 10, 8>}, {pipeline_mode = #tpu.pipeline_mode<synchronous>, transform_indices = @transform_1, window_bounds = array<i64: 72, 8>}, {pipeline_mode = #tpu.pipeline_mode<synchronous>, transform_indices = @transform_2, window_bounds = array<i64: 1, 8>}, {pipeline_mode = #tpu.pipeline_mode<synchronous>, transform_indices = @transform_3, window_bounds = array<i64: 8, 32>}, {pipeline_mode = #tpu.pipeline_mode<synchronous>, transform_indices = @transform_4, window_bounds = array<i64: 1, 32>}, {transform_indices = @transform_5, window_bounds = array<i64: 4, 8, 8, 32>}, {transform_indices = @transform_6, window_bounds = array<i64: 4, 8, 8, 32>}]} {
    %c0 = arith.constant 0 : index
    %c0_0 = arith.constant 0 : index
    %c0_1 = arith.constant 0 : index
    %c0_2 = arith.constant 0 : index
    %0 = vector.load %arg1[%c0, %c0_0, %c0_1, %c0_2] : memref<4x10x10x8xbf16, #tpu.memory_space<vmem>>, vector<4x10x10x8xbf16>
    %1 = vector.extract_strided_slice %0 {offsets = [0, 0, 0, 0], sizes = [4, 8, 8, 8], strides = [1, 1, 1, 1]} : vector<4x10x10x8xbf16> to vector<4x8x8x8xbf16>
    %2 = vector.shape_cast %1 : vector<4x8x8x8xbf16> to vector<256x8xbf16>
    %c0_3 = arith.constant 0 : index
    %c0_4 = arith.constant 0 : index
    %3 = vector.load %arg8[%c0_3, %c0_4] : memref<256x72xbf16, #tpu.memory_space<vmem>>, vector<256x8xbf16>
    tpu.vector_store %arg8[%c0_3, %c0_4], %2 {strides = array<i32>} : memref<256x72xbf16, #tpu.memory_space<vmem>>, vector<256x8xbf16>,
    %4 = vector.extract_strided_slice %0 {offsets = [0, 0, 1, 0], sizes = [4, 8, 8, 8], strides = [1, 1, 1, 1]} : vector<4x10x10x8xbf16> to vector<4x8x8x8xbf16>
    %5 = vector.shape_cast %4 : vector<4x8x8x8xbf16> to vector<256x8xbf16>
    %c0_5 = arith.constant 0 : index
    %c8 = arith.constant 8 : index
    %6 = vector.load %arg8[%c0_5, %c8] : memref<256x72xbf16, #tpu.memory_space<vmem>>, vector<256x8xbf16>
    tpu.vector_store %arg8[%c0_5, %c8], %5 {strides = array<i32>} : memref<256x72xbf16, #tpu.memory_space<vmem>>, vector<256x8xbf16>,
    %7 = vector.extract_strided_slice %0 {offsets = [0, 0, 2, 0], sizes = [4, 8, 8, 8], strides = [1, 1, 1, 1]} : vector<4x10x10x8xbf16> to vector<4x8x8x8xbf16>
    %8 = vector.shape_cast %7 : vector<4x8x8x8xbf16> to vector<256x8xbf16>
    %c0_6 = arith.constant 0 : index
    %c16 = arith.constant 16 : index
    %9 = vector.load %arg8[%c0_6, %c16] : memref<256x72xbf16, #tpu.memory_space<vmem>>, vector<256x8xbf16>
    tpu.vector_store %arg8[%c0_6, %c16], %8 {strides = array<i32>} : memref<256x72xbf16, #tpu.memory_space<vmem>>, vector<256x8xbf16>,
    %10 = vector.extract_strided_slice %0 {offsets = [0, 1, 0, 0], sizes = [4, 8, 8, 8], strides = [1, 1, 1, 1]} : vector<4x10x10x8xbf16> to vector<4x8x8x8xbf16>
    %11 = vector.shape_cast %10 : vector<4x8x8x8xbf16> to vector<256x8xbf16>
    %c0_7 = arith.constant 0 : index
    %c24 = arith.constant 24 : index
    %12 = vector.load %arg8[%c0_7, %c24] : memref<256x72xbf16, #tpu.memory_space<vmem>>, vector<256x8xbf16>
    tpu.vector_store %arg8[%c0_7, %c24], %11 {strides = array<i32>} : memref<256x72xbf16, #tpu.memory_space<vmem>>, vector<256x8xbf16>,
    %13 = vector.extract_strided_slice %0 {offsets = [0, 1, 1, 0], sizes = [4, 8, 8, 8], strides = [1, 1, 1, 1]} : vector<4x10x10x8xbf16> to vector<4x8x8x8xbf16>
    %14 = vector.shape_cast %13 : vector<4x8x8x8xbf16> to vector<256x8xbf16>
    %c0_8 = arith.constant 0 : index
    %c32 = arith.constant 32 : index
    %15 = vector.load %arg8[%c0_8, %c32] : memref<256x72xbf16, #tpu.memory_space<vmem>>, vector<256x8xbf16>
    tpu.vector_store %arg8[%c0_8, %c32], %14 {strides = array<i32>} : memref<256x72xbf16, #tpu.memory_space<vmem>>, vector<256x8xbf16>,
    %16 = vector.extract_strided_slice %0 {offsets = [0, 1, 2, 0], sizes = [4, 8, 8, 8], strides = [1, 1, 1, 1]} : vector<4x10x10x8xbf16> to vector<4x8x8x8xbf16>
    %17 = vector.shape_cast %16 : vector<4x8x8x8xbf16> to vector<256x8xbf16>
    %c0_9 = arith.constant 0 : index
    %c40 = arith.constant 40 : index
    %18 = vector.load %arg8[%c0_9, %c40] : memref<256x72xbf16, #tpu.memory_space<vmem>>, vector<256x8xbf16>
    tpu.vector_store %arg8[%c0_9, %c40], %17 {strides = array<i32>} : memref<256x72xbf16, #tpu.memory_space<vmem>>, vector<256x8xbf16>,
    %19 = vector.extract_strided_slice %0 {offsets = [0, 2, 0, 0], sizes = [4, 8, 8, 8], strides = [1, 1, 1, 1]} : vector<4x10x10x8xbf16> to vector<4x8x8x8xbf16>
    %20 = vector.shape_cast %19 : vector<4x8x8x8xbf16> to vector<256x8xbf16>
    %c0_10 = arith.constant 0 : index
    %c48 = arith.constant 48 : index
    %21 = vector.load %arg8[%c0_10, %c48] : memref<256x72xbf16, #tpu.memory_space<vmem>>, vector<256x8xbf16>
    tpu.vector_store %arg8[%c0_10, %c48], %20 {strides = array<i32>} : memref<256x72xbf16, #tpu.memory_space<vmem>>, vector<256x8xbf16>,
    %22 = vector.extract_strided_slice %0 {offsets = [0, 2, 1, 0], sizes = [4, 8, 8, 8], strides = [1, 1, 1, 1]} : vector<4x10x10x8xbf16> to vector<4x8x8x8xbf16>
    %23 = vector.shape_cast %22 : vector<4x8x8x8xbf16> to vector<256x8xbf16>
    %c0_11 = arith.constant 0 : index
    %c56 = arith.constant 56 : index
    %24 = vector.load %arg8[%c0_11, %c56] : memref<256x72xbf16, #tpu.memory_space<vmem>>, vector<256x8xbf16>
    tpu.vector_store %arg8[%c0_11, %c56], %23 {strides = array<i32>} : memref<256x72xbf16, #tpu.memory_space<vmem>>, vector<256x8xbf16>,
    %25 = vector.extract_strided_slice %0 {offsets = [0, 2, 2, 0], sizes = [4, 8, 8, 8], strides = [1, 1, 1, 1]} : vector<4x10x10x8xbf16> to vector<4x8x8x8xbf16>
    %26 = vector.shape_cast %25 : vector<4x8x8x8xbf16> to vector<256x8xbf16>
    %c0_12 = arith.constant 0 : index
    %c64 = arith.constant 64 : index
    %27 = vector.load %arg8[%c0_12, %c64] : memref<256x72xbf16, #tpu.memory_space<vmem>>, vector<256x8xbf16>
    tpu.vector_store %arg8[%c0_12, %c64], %26 {strides = array<i32>} : memref<256x72xbf16, #tpu.memory_space<vmem>>, vector<256x8xbf16>,
    %c0_13 = arith.constant 0 : index
    %c0_14 = arith.constant 0 : index
    %28 = vector.load %arg8[%c0_13, %c0_14] : memref<256x72xbf16, #tpu.memory_space<vmem>>, vector<256x72xbf16>
    %c0_15 = arith.constant 0 : index
    %c0_16 = arith.constant 0 : index
    %29 = vector.load %arg2[%c0_15, %c0_16] : memref<72x8xbf16, #tpu.memory_space<vmem>>, vector<72x8xbf16>
    %cst = arith.constant dense<0.000000e+00> : vector<256x8xf32>
    %30 = tpu.matmul %28, %29, %cst {dimension_numbers = #tpu.dot_dimension_numbers<[1], [0], [0], [1], [0, 0, 1, 1], [], []>} : vector<256x72xbf16>, vector<72x8xbf16>, vector<256x8xf32> -> vector<256x8xf32>
    %c0_17 = arith.constant 0 : index
    %c0_18 = arith.constant 0 : index
    %31 = vector.load %arg3[%c0_17, %c0_18] : memref<1x8xf32, #tpu.memory_space<vmem>>, vector<1x8xf32>
    %32 = vector.broadcast %31 : vector<1x8xf32> to vector<256x8xf32>
    %33 = arith.addf %30, %32 : vector<256x8xf32>
    %cst_19 = arith.constant 0.000000e+00 : f32
    %34 = vector.broadcast %cst_19 : f32 to vector<256x8xf32>
    %35 = arith.maximumf %33, %34 : vector<256x8xf32>
    %36 = arith.truncf %35 : vector<256x8xf32> to vector<256x8xbf16>
    %c0_20 = arith.constant 0 : index
    %c0_21 = arith.constant 0 : index
    %37 = vector.load %arg4[%c0_20, %c0_21] : memref<8x32xbf16, #tpu.memory_space<vmem>>, vector<8x32xbf16>
    %cst_22 = arith.constant dense<0.000000e+00> : vector<256x32xf32>
    %38 = tpu.matmul %36, %37, %cst_22 {dimension_numbers = #tpu.dot_dimension_numbers<[1], [0], [0], [1], [0, 0, 1, 1], [], []>} : vector<256x8xbf16>, vector<8x32xbf16>, vector<256x32xf32> -> vector<256x32xf32>
    %c0_23 = arith.constant 0 : index
    %c0_24 = arith.constant 0 : index
    %39 = vector.load %arg5[%c0_23, %c0_24] : memref<1x32xf32, #tpu.memory_space<vmem>>, vector<1x32xf32>
    %40 = vector.broadcast %39 : vector<1x32xf32> to vector<256x32xf32>
    %41 = arith.addf %38, %40 : vector<256x32xf32>
    %c0_25 = arith.constant 0 : index
    %c0_26 = arith.constant 0 : index
    %c0_27 = arith.constant 0 : index
    %c0_28 = arith.constant 0 : index
    %42 = vector.load %arg6[%c0_25, %c0_26, %c0_27, %c0_28] : memref<4x8x8x32xbf16, #tpu.memory_space<vmem>>, vector<4x8x8x32xbf16>
    %43 = vector.shape_cast %42 : vector<4x8x8x32xbf16> to vector<256x32xbf16>
    %44 = arith.extf %43 : vector<256x32xbf16> to vector<256x32xf32>
    %45 = arith.addf %41, %44 : vector<256x32xf32>
    %cst_29 = arith.constant 0.000000e+00 : f32
    %46 = vector.broadcast %cst_29 : f32 to vector<256x32xf32>
    %47 = arith.maximumf %45, %46 : vector<256x32xf32>
    %48 = arith.truncf %47 : vector<256x32xf32> to vector<256x32xbf16>
    %49 = vector.shape_cast %48 : vector<256x32xbf16> to vector<4x8x8x32xbf16>
    %c0_30 = arith.constant 0 : index
    %c0_31 = arith.constant 0 : index
    %c0_32 = arith.constant 0 : index
    %c0_33 = arith.constant 0 : index
    %50 = vector.load %arg7[%c0_30, %c0_31, %c0_32, %c0_33] : memref<4x8x8x32xbf16, #tpu.memory_space<vmem>>, vector<4x8x8x32xbf16>
    tpu.vector_store %arg7[%c0_30, %c0_31, %c0_32, %c0_33], %49 {strides = array<i32>} : memref<4x8x8x32xbf16, #tpu.memory_space<vmem>>, vector<4x8x8x32xbf16>,
    return
  }
  func.func @transform_0(%arg0: i32) -> (i32, i32, i32, i32) {
    %c0_i32 = arith.constant 0 : i32
    %c0_i32_0 = arith.constant 0 : i32
    %c0_i32_1 = arith.constant 0 : i32
    %c0_i32_2 = arith.constant 0 : i32
    return %arg0, %c0_i32, %c0_i32_0, %c0_i32_1 : i32, i32, i32, i32
  }
  func.func @transform_1(%arg0: i32) -> (i32, i32) {
    %c0_i32 = arith.constant 0 : i32
    %c0_i32_0 = arith.constant 0 : i32
    %c0_i32_1 = arith.constant 0 : i32
    return %c0_i32, %c0_i32_0 : i32, i32
  }
  func.func @transform_2(%arg0: i32) -> (i32, i32) {
    %c0_i32 = arith.constant 0 : i32
    %c0_i32_0 = arith.constant 0 : i32
    %c0_i32_1 = arith.constant 0 : i32
    return %c0_i32, %c0_i32_0 : i32, i32
  }
  func.func @transform_3(%arg0: i32) -> (i32, i32) {
    %c0_i32 = arith.constant 0 : i32
    %c0_i32_0 = arith.constant 0 : i32
    %c0_i32_1 = arith.constant 0 : i32
    return %c0_i32, %c0_i32_0 : i32, i32
  }
  func.func @transform_4(%arg0: i32) -> (i32, i32) {
    %c0_i32 = arith.constant 0 : i32
    %c0_i32_0 = arith.constant 0 : i32
    %c0_i32_1 = arith.constant 0 : i32
    return %c0_i32, %c0_i32_0 : i32, i32
  }
  func.func @transform_5(%arg0: i32) -> (i32, i32, i32, i32) {
    %c0_i32 = arith.constant 0 : i32
    %c0_i32_0 = arith.constant 0 : i32
    %c0_i32_1 = arith.constant 0 : i32
    %c0_i32_2 = arith.constant 0 : i32
    return %arg0, %c0_i32, %c0_i32_0, %c0_i32_1 : i32, i32, i32, i32
  }
  func.func @transform_6(%arg0: i32) -> (i32, i32, i32, i32) {
    %c0_i32 = arith.constant 0 : i32
    %c0_i32_0 = arith.constant 0 : i32
    %c0_i32_1 = arith.constant 0 : i32
    %c0_i32_2 = arith.constant 0 : i32
    return %arg0, %c0_i32, %c0_i32_0, %c0_i32_1 : i32, i32, i32, i32
  }
}

</mosaic_0001>

<llo_original>
// kernel: _lambda_.2
$region0: #{_lambda_.2}
  #allocation0 [shape = 'u32[]', space=smem, size = 0x4, offset = 0x4, fixed_abs, tag = 'smem constant byte address 0x4 - core index']
  #allocation1 [shape = 'u32[144,128]{1,0:T(1,128)}', space=vmem, size = 0x12000, scoped, tag = 'internal scratch']
  %s0 = inlined_call_operand.vmem [shape: bf16[512,32], index: 0, kind: input, shape index: {}]
  %s1 = inlined_call_operand.vmem [shape: bf16[32,8], index: 1, kind: input, shape index: {}]
  %s2 = inlined_call_operand.vmem [shape: f32[1,8], index: 2, kind: input, shape index: {}]
  %s3 = inlined_call_operand.vmem [shape: bf16[512,8], index: 3, kind: output, shape index: {}]
  %s4 = sld [smem:[#allocation0]]
  $region45: #{_lambda_.2} parent=0
    _
  %s6 = ssub.s32 1, %s4
  %s7 = scalar_select 0, %s6, %s4
  loop: start=0, step=1, limit=4
  $region2: #{_lambda_.2} parent=0 // loop_pre_header
    _
  $region3: #{_lambda_.2} parent=0 // loop_header
    %s9 = sphi 0, %s13
    %p10 = scmp.ge.s32.totalorder %s9, 4
    %s19 = sphi 0, %s21
    %s22 = sphi 0, %s19
    %s23 = sphi 0, %s22
    %s39 = sphi 0, %s23
    %s43 = sphi 0, %s43
    %s45 = sphi 0, %s43
    %s46 = sphi 0, %s45
    %s60 = sphi 0, %s46
    %s64 = sphi 0, %s64
    %s66 = sphi 0, %s64
    %s67 = sphi 0, %s66
    %s81 = sphi 0, %s67
    %s87 = sphi 0, %s89
    %s90 = sphi 0, %s87
    %s91 = sphi 0, %s90
    %s107 = sphi 0, %s91
  $region4: #{_lambda_.2} parent=0 // loop_header_branch
    %12 = sbr.rel (%p10) target = $region8
  $region5: #{_lambda_.2} parent=0 // loop_body
    %s14 = ssub.s32 %s9, 1
    %s15 = ssub.s32 %s9, 2
    %s16 = sadd.s32 %s9, 1
    %s17 = ssub.s32 %s9, %s16
    %p18 = scmp.eq.s32.totalorder %s17, 0
    %s20 = sadd.s32 %s19, 1
    %s21 = scalar_select %p18, %s19, %s20
    %p24 = pneg %p18
    %p25 = scmp.eq.s32.totalorder %s9, 1
    %p26 = por %p24, %p25
    %p27 = scmp.ne.s32.totalorder %s19, %s22
    %p28 = scmp.eq.s32.totalorder %s9, 0
    %p29 = por %p27, %p28
    %p30 = scmp.ne.s32.totalorder %s19, %s22
    %p31 = scmp.eq.s32.totalorder %s14, 1
    %p32 = por %p30, %p31
    %p33 = scmp.ne.s32.totalorder %s22, %s23
    %p34 = scmp.eq.s32.totalorder %s14, 0
    %p35 = por %p33, %p34
    %p36 = scmp.ne.s32.totalorder %s22, %s23
    %p37 = scmp.eq.s32.totalorder %s15, 1
    %p38 = por %p36, %p37
    %p40 = scmp.ne.s32.totalorder %s23, %s39
    %p41 = scmp.eq.s32.totalorder %s15, 0
    %p42 = por %p40, %p41
    %s44 = sadd.s32 %s43, 1
    %p47 = scmp.eq.s32.totalorder %s9, 1
    %p48 = scmp.ne.s32.totalorder %s43, %s45
    %p49 = scmp.eq.s32.totalorder %s9, 0
    %p50 = por %p48, %p49
    %p51 = scmp.ne.s32.totalorder %s43, %s45
    %p52 = scmp.eq.s32.totalorder %s14, 1
    %p53 = por %p51, %p52
    %p54 = scmp.ne.s32.totalorder %s45, %s46
    %p55 = scmp.eq.s32.totalorder %s14, 0
    %p56 = por %p54, %p55
    %p57 = scmp.ne.s32.totalorder %s45, %s46
    %p58 = scmp.eq.s32.totalorder %s15, 1
    %p59 = por %p57, %p58
    %p61 = scmp.ne.s32.totalorder %s46, %s60
    %p62 = scmp.eq.s32.totalorder %s15, 0
    %p63 = por %p61, %p62
    %s65 = sadd.s32 %s64, 1
    %p68 = scmp.eq.s32.totalorder %s9, 1
    %p69 = scmp.ne.s32.totalorder %s64, %s66
    %p70 = scmp.eq.s32.totalorder %s9, 0
    %p71 = por %p69, %p70
    %p72 = scmp.ne.s32.totalorder %s64, %s66
    %p73 = scmp.eq.s32.totalorder %s14, 1
    %p74 = por %p72, %p73
    %p75 = scmp.ne.s32.totalorder %s66, %s67
    %p76 = scmp.eq.s32.totalorder %s14, 0
    %p77 = por %p75, %p76
    %p78 = scmp.ne.s32.totalorder %s66, %s67
    %p79 = scmp.eq.s32.totalorder %s15, 1
    %p80 = por %p78, %p79
    %p82 = scmp.ne.s32.totalorder %s67, %s81
    %p83 = scmp.eq.s32.totalorder %s15, 0
    %p84 = por %p82, %p83
    %s85 = ssub.s32 %s9, %s16
    %p86 = scmp.eq.s32.totalorder %s85, 0
    %s88 = sadd.s32 %s87, 1
    %s89 = scalar_select %p86, %s87, %s88
    %p92 = pneg %p86
    %p93 = scmp.eq.s32.totalorder %s9, 1
    %p94 = por %p92, %p93
    %p95 = scmp.ne.s32.totalorder %s87, %s90
    %p96 = scmp.eq.s32.totalorder %s9, 0
    %p97 = por %p95, %p96
    %p98 = scmp.ne.s32.totalorder %s87, %s90
    %p99 = scmp.eq.s32.totalorder %s14, 1
    %p100 = por %p98, %p99
    %p101 = scmp.ne.s32.totalorder %s90, %s91
    %p102 = scmp.eq.s32.totalorder %s14, 0
    %p103 = por %p101, %p102
    %p104 = scmp.ne.s32.totalorder %s90, %s91
    %p105 = scmp.eq.s32.totalorder %s15, 1
    %p106 = por %p104, %p105
    %p108 = scmp.ne.s32.totalorder %s91, %s107
    %p109 = scmp.eq.s32.totalorder %s15, 0
    %p110 = por %p108, %p109
    %p111 = scmp.le.s32.totalorder 1, %s9
    %p112 = scmp.lt.s32.totalorder %s9, 3
    %p113 = pnand %p111, %p112
    %p114 = pneg %p113
    // Predicated region
    $region9: #{_lambda_.2} parent=5 // pred_check
      _
    $region10: #{_lambda_.2} parent=5 // pred_check_branch
      %116 = sbr.rel (%p113) target = $region12
    $region11: #{_lambda_.2} parent=5 // pred_region
      %s117 = ssub.s32 %s9, 1
      // Predicated region
      $region13: #{_lambda_.2} parent=11 // pred_check
        %p118 = pneg %p56
      $region14: #{_lambda_.2} parent=11 // pred_check_branch
        %120 = sbr.rel (%p118) target = $region16
      $region15: #{_lambda_.2} parent=11 // pred_region
        _
      $region16: #{_lambda_.2} parent=11 // pred_fallthru
        _
      // Predicated region
      $region17: #{_lambda_.2} parent=11 // pred_check
        %p121 = pneg %p77
      $region18: #{_lambda_.2} parent=11 // pred_check_branch
        %123 = sbr.rel (%p121) target = $region20
      $region19: #{_lambda_.2} parent=11 // pred_region
        _
      $region20: #{_lambda_.2} parent=11 // pred_fallthru
        _
    $region12: #{_lambda_.2} parent=5 // pred_fallthru
      _
    %p124 = scmp.lt.s32.totalorder %s9, 2
    // Predicated region
    $region21: #{_lambda_.2} parent=5 // pred_check
      %p125 = pneg %p124
    $region22: #{_lambda_.2} parent=5 // pred_check_branch
      %127 = sbr.rel (%p125) target = $region24
    $region23: #{_lambda_.2} parent=5 // pred_region
      // Predicated region
      $region25: #{_lambda_.2} parent=23 // pred_check
        %p128 = pneg %p29
      $region26: #{_lambda_.2} parent=23 // pred_check_branch
        %130 = sbr.rel (%p128) target = $region28
      $region27: #{_lambda_.2} parent=23 // pred_region
        %s131 = smul.u32 32, %s9
        %p132 = scmp.lt.s32.totalorder %s131, 63
        %s133 = scalar_select %p132, %s131, 63
        %s134 = smul.addr %s133, 4
        %s135 = scalar_lea.vmem %s0, %s134
        %s136 = smul.u32 32, %s9
      $region28: #{_lambda_.2} parent=23 // pred_fallthru
        _
    $region24: #{_lambda_.2} parent=5 // pred_fallthru
      _
    %p137 = scmp.le.s32.totalorder 1, %s9
    %p138 = scmp.lt.s32.totalorder %s9, 3
    %p139 = pnand %p137, %p138
    %p140 = pneg %p139
    // Predicated region
    $region29: #{_lambda_.2} parent=5 // pred_check
      _
    $region30: #{_lambda_.2} parent=5 // pred_check_branch
      %142 = sbr.rel (%p139) target = $region32
    $region31: #{_lambda_.2} parent=5 // pred_region
      %s143 = ssub.s32 %s9, 1
      %s144 = smul.u32 32, %s14
      %p145 = scmp.lt.s32.totalorder %s144, 63
      %s146 = scalar_select %p145, %s144, 63
      %s147 = smul.addr %s146, 4
      %s148 = scalar_lea.vmem %s0, %s147
      %p149 = pneg %p35
      %p150 = pneg %p32
      %p151 = pneg %p56
      %p152 = pneg %p53
      %p153 = pneg %p77
      %p154 = pneg %p74
      %p155 = pneg %p103
      %p156 = pneg %p100
      %s157 = smul.u32 32, %s14
      %p158 = scmp.lt.s32.totalorder %s157, 63
      %s159 = scalar_select %p158, %s157, 63
      %s160 = smul.addr %s159, 4
      %s161 = scalar_lea.vmem %s3, %s160
      %s162 = smul.u32 32, %s14
      %p163 = scmp.lt.s32.totalorder %s162, 63
      %s164 = scalar_select %p163, %s162, 63
      %s165 = smul.addr %s164, 4
      %s166 = scalar_lea.vmem %s0, %s165
      %s167 = smul.u32 32, %s14
      %s168 = smul.u32 32, %s14
      %p169 = scmp.lt.s32.totalorder %s168, 63
      %s170 = scalar_select %p169, %s168, 63
      %s171 = smul.addr %s170, 4
      %s172 = scalar_lea.vmem %s3, %s171
      %s173 = smul.u32 32, %s14
      %v175 = vld [vmem:[%s166] sm:$0xf]
      %v176 = vld [vmem:[%s166 + $0x4] sm:$0xf]
      %v177 = vld [vmem:[%s166 + $0x8] sm:$0xf]
      %v178 = vld [vmem:[%s166 + $0xc] sm:$0xf]
      %v179 = vld [vmem:[%s166 + $0x10] sm:$0xf]
      %v180 = vld [vmem:[%s166 + $0x14] sm:$0xf]
      %v181 = vld [vmem:[%s166 + $0x18] sm:$0xf]
      %v182 = vld [vmem:[%s166 + $0x1c] sm:$0xf]
      %v183 = vld [vmem:[%s166 + $0x20] sm:$0xf]
      %v184 = vld [vmem:[%s166 + $0x24] sm:$0xf]
      %v185 = vld [vmem:[%s166 + $0x28] sm:$0xf]
      %v186 = vld [vmem:[%s166 + $0x2c] sm:$0xf]
      %v187 = vld [vmem:[%s166 + $0x30] sm:$0xf]
      %v188 = vld [vmem:[%s166 + $0x34] sm:$0xf]
      %v189 = vld [vmem:[%s166 + $0x38] sm:$0xf]
      %v190 = vld [vmem:[%s166 + $0x3c] sm:$0xf]
      %v191 = vld [vmem:[%s166 + $0x40] sm:$0xf]
      %v192 = vld [vmem:[%s166 + $0x44] sm:$0xf]
      %v193 = vld [vmem:[%s166 + $0x48] sm:$0xf]
      %v194 = vld [vmem:[%s166 + $0x4c] sm:$0xf]
      %v195 = vld [vmem:[%s166 + $0x50] sm:$0xf]
      %v196 = vld [vmem:[%s166 + $0x54] sm:$0xf]
      %v197 = vld [vmem:[%s166 + $0x58] sm:$0xf]
      %v198 = vld [vmem:[%s166 + $0x5c] sm:$0xf]
      %v199 = vld [vmem:[%s166 + $0x60] sm:$0xf]
      %v200 = vld [vmem:[%s166 + $0x64] sm:$0xf]
      %v201 = vld [vmem:[%s166 + $0x68] sm:$0xf]
      %v202 = vld [vmem:[%s166 + $0x6c] sm:$0xf]
      %v203 = vld [vmem:[%s166 + $0x70] sm:$0xf]
      %v204 = vld [vmem:[%s166 + $0x74] sm:$0xf]
      %v205 = vld [vmem:[%s166 + $0x78] sm:$0xf]
      %v206 = vld [vmem:[%s166 + $0x7c] sm:$0xf]
      %v207 = vld [vmem:[%s1] sm:$0xf]
      %v208 = vld [vmem:[%s1 + $0x4] sm:$0xf]
      %v209 = vld [vmem:[%s1 + $0x8] sm:$0xf]
      %v210 = vld [vmem:[%s1 + $0xc] sm:$0xf]
      %v211 = vld [vmem:[%s2] sm:$0x1]
      %v213 = vlaneseq
      %v214 = vshrl.u32 %v213, 7
      %v215 = vsub.s32 0, %v214
      %v216 = vrot.slane %v211, %v215
      %v250 = vunpack.c.l.b16 %v175
      %v251 = vunpack.c.l.b16 %v176
      %v252 = vunpack.c.l.b16 %v177
      %v253 = vunpack.c.l.b16 %v178
      %v254 = vunpack.c.l.b16 %v179
      %v255 = vunpack.c.l.b16 %v180
      %v256 = vunpack.c.l.b16 %v181
      %v257 = vunpack.c.l.b16 %v182
      %v258 = vunpack.c.l.b16 %v183
      %v259 = vunpack.c.l.b16 %v184
      %v260 = vunpack.c.l.b16 %v185
      %v261 = vunpack.c.l.b16 %v186
      %v262 = vunpack.c.l.b16 %v187
      %v263 = vunpack.c.l.b16 %v188
      %v264 = vunpack.c.l.b16 %v189
      %v265 = vunpack.c.l.b16 %v190
      %v266 = vunpack.c.l.b16 %v191
      %v267 = vunpack.c.l.b16 %v192
      %v268 = vunpack.c.l.b16 %v193
      %v269 = vunpack.c.l.b16 %v194
      %v270 = vunpack.c.l.b16 %v195
      %v271 = vunpack.c.l.b16 %v196
      %v272 = vunpack.c.l.b16 %v197
      %v273 = vunpack.c.l.b16 %v198
      %v274 = vunpack.c.l.b16 %v199
      %v275 = vunpack.c.l.b16 %v200
      %v276 = vunpack.c.l.b16 %v201
      %v277 = vunpack.c.l.b16 %v202
      %v278 = vunpack.c.l.b16 %v203
      %v279 = vunpack.c.l.b16 %v204
      %v280 = vunpack.c.l.b16 %v205
      %v281 = vunpack.c.l.b16 %v206
      %v282 = vpack.c.b16 %v251, %v250
      %v283 = vpack.c.b16 %v253, %v252
      %v284 = vpack.c.b16 %v255, %v254
      %v285 = vpack.c.b16 %v257, %v256
      %v286 = vpack.c.b16 %v259, %v258
      %v287 = vpack.c.b16 %v261, %v260
      %v288 = vpack.c.b16 %v263, %v262
      %v289 = vpack.c.b16 %v265, %v264
      %v290 = vpack.c.b16 %v267, %v266
      %v291 = vpack.c.b16 %v269, %v268
      %v292 = vpack.c.b16 %v271, %v270
      %v293 = vpack.c.b16 %v273, %v272
      %v294 = vpack.c.b16 %v275, %v274
      %v295 = vpack.c.b16 %v277, %v276
      %v296 = vpack.c.b16 %v279, %v278
      %v297 = vpack.c.b16 %v281, %v280
      %v302 = vunpack.c.l.b16 %v207
      %v303 = vunpack.c.l.b16 %v208
      %v304 = vunpack.c.l.b16 %v209
      %v305 = vunpack.c.l.b16 %v210
      %v306 = vpack.c.b16 %v303, %v302
      %v307 = vpack.c.b16 %v305, %v304
      %vm310 = vcmask 261120
      %v312 = vsel %vm310, %v282, 0
      %v315 = vsel %vm310, %v283, 0
      %v318 = vsel %vm310, %v284, 0
      %v321 = vsel %vm310, %v285, 0
      %v324 = vsel %vm310, %v286, 0
      %v327 = vsel %vm310, %v287, 0
      %v330 = vsel %vm310, %v288, 0
      %v333 = vsel %vm310, %v289, 0
      %v336 = vsel %vm310, %v290, 0
      %v339 = vsel %vm310, %v291, 0
      %v342 = vsel %vm310, %v292, 0
      %v345 = vsel %vm310, %v293, 0
      %v348 = vsel %vm310, %v294, 0
      %v351 = vsel %vm310, %v295, 0
      %v354 = vsel %vm310, %v296, 0
      %v357 = vsel %vm310, %v297, 0
      %359 = vmatprep.subr.bf16.mxu0 0
      %360 = vmatpush1.bf16.msra.mxu0 0
      %361 = vmatprep.subr.bf16.mxu0 0
      %362 = vmatpush1.bf16.msra.mxu0 0
      %363 = vmatprep.subr.bf16.mxu0 0
      %364 = vmatpush1.bf16.msra.mxu0 0
      %365 = vmatprep.subr.bf16.mxu0 0
      %366 = vmatpush1.bf16.msra.mxu0 0
      %367 = vmatprep.subr.bf16.mxu0 0
      %368 = vmatpush1.bf16.msra.mxu0 0
      %369 = vmatprep.subr.bf16.mxu0 0
      %370 = vmatpush1.bf16.msra.mxu0 0
      %371 = vmatprep.subr.bf16.mxu0 0
      %372 = vmatpush1.bf16.msra.mxu0 %v307
      %373 = vmatprep.subr.bf16.mxu0 0
      %374 = vmatpush1.bf16.msra.mxu0 %v306
      %375 = vmatprep.subr.bf16.mxu0 0
      %376 = vmatpush2.bf16.msra.mxu0 0
      %377 = vmatprep.subr.bf16.mxu0 0
      %378 = vmatpush2.bf16.msra.mxu0 0
      %379 = vmatprep.subr.bf16.mxu0 0
      %380 = vmatpush2.bf16.msra.mxu0 0
      %381 = vmatprep.subr.bf16.mxu0 0
      %382 = vmatpush2.bf16.msra.mxu0 0
      %383 = vmatprep.subr.bf16.mxu0 0
      %384 = vmatpush2.bf16.msra.mxu0 0
      %385 = vmatprep.subr.bf16.mxu0 0
      %386 = vmatpush2.bf16.msra.mxu0 0
      %387 = vmatprep.subr.bf16.mxu0 0
      %388 = vmatpush2.bf16.msra.mxu0 0
      %389 = vmatprep.subr.bf16.mxu0 0
      %390 = vmatpush2.bf16.msra.mxu0 0
      %391 = vmatprep.mubr.bf16.mxu0 0
      %392 = vmatmul.mubr.bf16.gmra.mxu0 %v312
      %v393 = vpop.f32.mrf.mxu0
      %v394 = vadd.f32 %v216, %v393
      %v395 = vpop.f32.mrf.mxu0
      %v396 = vpop.f32.mrf.mxu0
      %v397 = vadd.f32 %v216, %v396
      %v398 = vpop.f32.mrf.mxu0
      %399 = vmatprep.mubr.bf16.mxu0 0
      %400 = vmatmul.mubr.bf16.gmra.mxu0 %v315
      %v401 = vpop.f32.mrf.mxu0
      %v402 = vadd.f32 %v216, %v401
      %v403 = vpop.f32.mrf.mxu0
      %v404 = vpop.f32.mrf.mxu0
      %v405 = vadd.f32 %v216, %v404
      %v406 = vpop.f32.mrf.mxu0
      %407 = vmatprep.mubr.bf16.mxu0 0
      %408 = vmatmul.mubr.bf16.gmra.mxu0 %v318
      %v409 = vpop.f32.mrf.mxu0
      %v410 = vadd.f32 %v216, %v409
      %v411 = vpop.f32.mrf.mxu0
      %v412 = vpop.f32.mrf.mxu0
      %v413 = vadd.f32 %v216, %v412
      %v414 = vpop.f32.mrf.mxu0
      %415 = vmatprep.mubr.bf16.mxu0 0
      %416 = vmatmul.mubr.bf16.gmra.mxu0 %v321
      %v417 = vpop.f32.mrf.mxu0
      %v418 = vadd.f32 %v216, %v417
      %v419 = vpop.f32.mrf.mxu0
      %v420 = vpop.f32.mrf.mxu0
      %v421 = vadd.f32 %v216, %v420
      %v422 = vpop.f32.mrf.mxu0
      %423 = vmatprep.mubr.bf16.mxu0 0
      %424 = vmatmul.mubr.bf16.gmra.mxu0 %v324
      %v425 = vpop.f32.mrf.mxu0
      %v426 = vadd.f32 %v216, %v425
      %v427 = vpop.f32.mrf.mxu0
      %v428 = vpop.f32.mrf.mxu0
      %v429 = vadd.f32 %v216, %v428
      %v430 = vpop.f32.mrf.mxu0
      %431 = vmatprep.mubr.bf16.mxu0 0
      %432 = vmatmul.mubr.bf16.gmra.mxu0 %v327
      %v433 = vpop.f32.mrf.mxu0
      %v434 = vadd.f32 %v216, %v433
      %v435 = vpop.f32.mrf.mxu0
      %v436 = vpop.f32.mrf.mxu0
      %v437 = vadd.f32 %v216, %v436
      %v438 = vpop.f32.mrf.mxu0
      %439 = vmatprep.mubr.bf16.mxu0 0
      %440 = vmatmul.mubr.bf16.gmra.mxu0 %v330
      %v441 = vpop.f32.mrf.mxu0
      %v442 = vadd.f32 %v216, %v441
      %v443 = vpop.f32.mrf.mxu0
      %v444 = vpop.f32.mrf.mxu0
      %v445 = vadd.f32 %v216, %v444
      %v446 = vpop.f32.mrf.mxu0
      %447 = vmatprep.mubr.bf16.mxu0 0
      %448 = vmatmul.mubr.bf16.gmra.mxu0 %v333
      %v449 = vpop.f32.mrf.mxu0
      %v450 = vadd.f32 %v216, %v449
      %v451 = vpop.f32.mrf.mxu0
      %v452 = vpop.f32.mrf.mxu0
      %v453 = vadd.f32 %v216, %v452
      %v454 = vpop.f32.mrf.mxu0
      %455 = vmatprep.mubr.bf16.mxu0 0
      %456 = vmatmul.mubr.bf16.gmra.mxu0 %v336
      %v457 = vpop.f32.mrf.mxu0
      %v458 = vadd.f32 %v216, %v457
      %v459 = vpop.f32.mrf.mxu0
      %v460 = vpop.f32.mrf.mxu0
      %v461 = vadd.f32 %v216, %v460
      %v462 = vpop.f32.mrf.mxu0
      %463 = vmatprep.mubr.bf16.mxu0 0
      %464 = vmatmul.mubr.bf16.gmra.mxu0 %v339
      %v465 = vpop.f32.mrf.mxu0
      %v466 = vadd.f32 %v216, %v465
      %v467 = vpop.f32.mrf.mxu0
      %v468 = vpop.f32.mrf.mxu0
      %v469 = vadd.f32 %v216, %v468
      %v470 = vpop.f32.mrf.mxu0
      %471 = vmatprep.mubr.bf16.mxu0 0
      %472 = vmatmul.mubr.bf16.gmra.mxu0 %v342
      %v473 = vpop.f32.mrf.mxu0
      %v474 = vadd.f32 %v216, %v473
      %v475 = vpop.f32.mrf.mxu0
      %v476 = vpop.f32.mrf.mxu0
      %v477 = vadd.f32 %v216, %v476
      %v478 = vpop.f32.mrf.mxu0
      %479 = vmatprep.mubr.bf16.mxu0 0
      %480 = vmatmul.mubr.bf16.gmra.mxu0 %v345
      %v481 = vpop.f32.mrf.mxu0
      %v482 = vadd.f32 %v216, %v481
      %v483 = vpop.f32.mrf.mxu0
      %v484 = vpop.f32.mrf.mxu0
      %v485 = vadd.f32 %v216, %v484
      %v486 = vpop.f32.mrf.mxu0
      %487 = vmatprep.mubr.bf16.mxu0 0
      %488 = vmatmul.mubr.bf16.gmra.mxu0 %v348
      %v489 = vpop.f32.mrf.mxu0
      %v490 = vadd.f32 %v216, %v489
      %v491 = vpop.f32.mrf.mxu0
      %v492 = vpop.f32.mrf.mxu0
      %v493 = vadd.f32 %v216, %v492
      %v494 = vpop.f32.mrf.mxu0
      %495 = vmatprep.mubr.bf16.mxu0 0
      %496 = vmatmul.mubr.bf16.gmra.mxu0 %v351
      %v497 = vpop.f32.mrf.mxu0
      %v498 = vadd.f32 %v216, %v497
      %v499 = vpop.f32.mrf.mxu0
      %v500 = vpop.f32.mrf.mxu0
      %v501 = vadd.f32 %v216, %v500
      %v502 = vpop.f32.mrf.mxu0
      %503 = vmatprep.mubr.bf16.mxu0 0
      %504 = vmatmul.mubr.bf16.gmra.mxu0 %v354
      %v505 = vpop.f32.mrf.mxu0
      %v506 = vadd.f32 %v216, %v505
      %v507 = vpop.f32.mrf.mxu0
      %v508 = vpop.f32.mrf.mxu0
      %v509 = vadd.f32 %v216, %v508
      %v510 = vpop.f32.mrf.mxu0
      %511 = vmatprep.mubr.bf16.mxu0 0
      %512 = vmatmul.mubr.bf16.gmra.mxu0 %v357
      %v513 = vpop.f32.mrf.mxu0
      %v514 = vadd.f32 %v216, %v513
      %v515 = vpop.f32.mrf.mxu0
      %v516 = vpop.f32.mrf.mxu0
      %v517 = vadd.f32 %v216, %v516
      %v518 = vpop.f32.mrf.mxu0
      %519 = vdwg.mxu0
      %v520 = vmax.f32 %v394, 0.0
      %v521 = vmax.f32 %v397, 0.0
      %v522 = vmax.f32 %v402, 0.0
      %v523 = vmax.f32 %v405, 0.0
      %v524 = vmax.f32 %v410, 0.0
      %v525 = vmax.f32 %v413, 0.0
      %v526 = vmax.f32 %v418, 0.0
      %v527 = vmax.f32 %v421, 0.0
      %v528 = vmax.f32 %v426, 0.0
      %v529 = vmax.f32 %v429, 0.0
      %v530 = vmax.f32 %v434, 0.0
      %v531 = vmax.f32 %v437, 0.0
      %v532 = vmax.f32 %v442, 0.0
      %v533 = vmax.f32 %v445, 0.0
      %v534 = vmax.f32 %v450, 0.0
      %v535 = vmax.f32 %v453, 0.0
      %v536 = vmax.f32 %v458, 0.0
      %v537 = vmax.f32 %v461, 0.0
      %v538 = vmax.f32 %v466, 0.0
      %v539 = vmax.f32 %v469, 0.0
      %v540 = vmax.f32 %v474, 0.0
      %v541 = vmax.f32 %v477, 0.0
      %v542 = vmax.f32 %v482, 0.0
      %v543 = vmax.f32 %v485, 0.0
      %v544 = vmax.f32 %v490, 0.0
      %v545 = vmax.f32 %v493, 0.0
      %v546 = vmax.f32 %v498, 0.0
      %v547 = vmax.f32 %v501, 0.0
      %v548 = vmax.f32 %v506, 0.0
      %v549 = vmax.f32 %v509, 0.0
      %v550 = vmax.f32 %v514, 0.0
      %v551 = vmax.f32 %v517, 0.0
      %v552 = vpack.c.bf16 %v521, %v520
      %v553 = vpack.c.bf16 %v523, %v522
      %v554 = vpack.c.bf16 %v525, %v524
      %v555 = vpack.c.bf16 %v527, %v526
      %v556 = vpack.c.bf16 %v529, %v528
      %v557 = vpack.c.bf16 %v531, %v530
      %v558 = vpack.c.bf16 %v533, %v532
      %v559 = vpack.c.bf16 %v535, %v534
      %v560 = vpack.c.bf16 %v537, %v536
      %v561 = vpack.c.bf16 %v539, %v538
      %v562 = vpack.c.bf16 %v541, %v540
      %v563 = vpack.c.bf16 %v543, %v542
      %v564 = vpack.c.bf16 %v545, %v544
      %v565 = vpack.c.bf16 %v547, %v546
      %v566 = vpack.c.bf16 %v549, %v548
      %v567 = vpack.c.bf16 %v551, %v550
      %v584 = vunpack.c.l.b16 %v552
      %v585 = vunpack.c.h.b16 %v552
      %v586 = vunpack.c.l.b16 %v553
      %v587 = vunpack.c.h.b16 %v553
      %v588 = vunpack.c.l.b16 %v554
      %v589 = vunpack.c.h.b16 %v554
      %v590 = vunpack.c.l.b16 %v555
      %v591 = vunpack.c.h.b16 %v555
      %v592 = vunpack.c.l.b16 %v556
      %v593 = vunpack.c.h.b16 %v556
      %v594 = vunpack.c.l.b16 %v557
      %v595 = vunpack.c.h.b16 %v557
      %v596 = vunpack.c.l.b16 %v558
      %v597 = vunpack.c.h.b16 %v558
      %v598 = vunpack.c.l.b16 %v559
      %v599 = vunpack.c.h.b16 %v559
      %v600 = vunpack.c.l.b16 %v560
      %v601 = vunpack.c.h.b16 %v560
      %v602 = vunpack.c.l.b16 %v561
      %v603 = vunpack.c.h.b16 %v561
      %v604 = vunpack.c.l.b16 %v562
      %v605 = vunpack.c.h.b16 %v562
      %v606 = vunpack.c.l.b16 %v563
      %v607 = vunpack.c.h.b16 %v563
      %v608 = vunpack.c.l.b16 %v564
      %v609 = vunpack.c.h.b16 %v564
      %v610 = vunpack.c.l.b16 %v565
      %v611 = vunpack.c.h.b16 %v565
      %v612 = vunpack.c.l.b16 %v566
      %v613 = vunpack.c.h.b16 %v566
      %v614 = vunpack.c.l.b16 %v567
      %v615 = vunpack.c.h.b16 %v567
      %v616 = vpack.c.b16 %v584, %v584
      %v617 = vpack.c.b16 %v585, %v585
      %v618 = vpack.c.b16 %v586, %v586
      %v619 = vpack.c.b16 %v587, %v587
      %v620 = vpack.c.b16 %v588, %v588
      %v621 = vpack.c.b16 %v589, %v589
      %v622 = vpack.c.b16 %v590, %v590
      %v623 = vpack.c.b16 %v591, %v591
      %v624 = vpack.c.b16 %v592, %v592
      %v625 = vpack.c.b16 %v593, %v593
      %v626 = vpack.c.b16 %v594, %v594
      %v627 = vpack.c.b16 %v595, %v595
      %v628 = vpack.c.b16 %v596, %v596
      %v629 = vpack.c.b16 %v597, %v597
      %v630 = vpack.c.b16 %v598, %v598
      %v631 = vpack.c.b16 %v599, %v599
      %v632 = vpack.c.b16 %v600, %v600
      %v633 = vpack.c.b16 %v601, %v601
      %v634 = vpack.c.b16 %v602, %v602
      %v635 = vpack.c.b16 %v603, %v603
      %v636 = vpack.c.b16 %v604, %v604
      %v637 = vpack.c.b16 %v605, %v605
      %v638 = vpack.c.b16 %v606, %v606
      %v639 = vpack.c.b16 %v607, %v607
      %v640 = vpack.c.b16 %v608, %v608
      %v641 = vpack.c.b16 %v609, %v609
      %v642 = vpack.c.b16 %v610, %v610
      %v643 = vpack.c.b16 %v611, %v611
      %v644 = vpack.c.b16 %v612, %v612
      %v645 = vpack.c.b16 %v613, %v613
      %v646 = vpack.c.b16 %v614, %v614
      %v647 = vpack.c.b16 %v615, %v615
      %vm680 = vcmask 60416
      %681 = vst.msk [vmem:[%s172] sm:$0xf] %vm680, %v616
      %682 = vst.msk [vmem:[%s172 + $0x4] sm:$0xf] %vm680, %v617
      %683 = vst.msk [vmem:[%s172 + $0x8] sm:$0xf] %vm680, %v618
      %684 = vst.msk [vmem:[%s172 + $0xc] sm:$0xf] %vm680, %v619
      %685 = vst.msk [vmem:[%s172 + $0x10] sm:$0xf] %vm680, %v620
      %686 = vst.msk [vmem:[%s172 + $0x14] sm:$0xf] %vm680, %v621
      %687 = vst.msk [vmem:[%s172 + $0x18] sm:$0xf] %vm680, %v622
      %688 = vst.msk [vmem:[%s172 + $0x1c] sm:$0xf] %vm680, %v623
      %689 = vst.msk [vmem:[%s172 + $0x20] sm:$0xf] %vm680, %v624
      %690 = vst.msk [vmem:[%s172 + $0x24] sm:$0xf] %vm680, %v625
      %691 = vst.msk [vmem:[%s172 + $0x28] sm:$0xf] %vm680, %v626
      %692 = vst.msk [vmem:[%s172 + $0x2c] sm:$0xf] %vm680, %v627
      %693 = vst.msk [vmem:[%s172 + $0x30] sm:$0xf] %vm680, %v628
      %694 = vst.msk [vmem:[%s172 + $0x34] sm:$0xf] %vm680, %v629
      %695 = vst.msk [vmem:[%s172 + $0x38] sm:$0xf] %vm680, %v630
      %696 = vst.msk [vmem:[%s172 + $0x3c] sm:$0xf] %vm680, %v631
      %697 = vst.msk [vmem:[%s172 + $0x40] sm:$0xf] %vm680, %v632
      %698 = vst.msk [vmem:[%s172 + $0x44] sm:$0xf] %vm680, %v633
      %699 = vst.msk [vmem:[%s172 + $0x48] sm:$0xf] %vm680, %v634
      %700 = vst.msk [vmem:[%s172 + $0x4c] sm:$0xf] %vm680, %v635
      %701 = vst.msk [vmem:[%s172 + $0x50] sm:$0xf] %vm680, %v636
      %702 = vst.msk [vmem:[%s172 + $0x54] sm:$0xf] %vm680, %v637
      %703 = vst.msk [vmem:[%s172 + $0x58] sm:$0xf] %vm680, %v638
      %704 = vst.msk [vmem:[%s172 + $0x5c] sm:$0xf] %vm680, %v639
      %705 = vst.msk [vmem:[%s172 + $0x60] sm:$0xf] %vm680, %v640
      %706 = vst.msk [vmem:[%s172 + $0x64] sm:$0xf] %vm680, %v641
      %707 = vst.msk [vmem:[%s172 + $0x68] sm:$0xf] %vm680, %v642
      %708 = vst.msk [vmem:[%s172 + $0x6c] sm:$0xf] %vm680, %v643
      %709 = vst.msk [vmem:[%s172 + $0x70] sm:$0xf] %vm680, %v644
      %710 = vst.msk [vmem:[%s172 + $0x74] sm:$0xf] %vm680, %v645
      %711 = vst.msk [vmem:[%s172 + $0x78] sm:$0xf] %vm680, %v646
      %712 = vst.msk [vmem:[%s172 + $0x7c] sm:$0xf] %vm680, %v647
      %s713 = smul.u32 32, %s14
      %p714 = scmp.lt.s32.totalorder %s713, 63
      %s715 = scalar_select %p714, %s713, 63
      %s716 = smul.addr %s715, 4
      %s717 = scalar_lea.vmem %s3, %s716
      // Predicated region
      $region33: #{_lambda_.2} parent=31 // pred_check
        %p718 = pneg %p100
      $region34: #{_lambda_.2} parent=31 // pred_check_branch
        %720 = sbr.rel (%p718) target = $region36
      $region35: #{_lambda_.2} parent=31 // pred_region
        %s721 = smul.u32 32, %s14
      $region36: #{_lambda_.2} parent=31 // pred_fallthru
        _
    $region32: #{_lambda_.2} parent=5 // pred_fallthru
      _
    %p722 = scmp.le.s32.totalorder 2, %s9
    // Predicated region
    $region37: #{_lambda_.2} parent=5 // pred_check
      %p723 = pneg %p722
    $region38: #{_lambda_.2} parent=5 // pred_check_branch
      %725 = sbr.rel (%p723) target = $region40
    $region39: #{_lambda_.2} parent=5 // pred_region
      %s726 = ssub.s32 %s9, 2
      // Predicated region
      $region41: #{_lambda_.2} parent=39 // pred_check
        %p727 = pneg %p106
      $region42: #{_lambda_.2} parent=39 // pred_check_branch
        %729 = sbr.rel (%p727) target = $region44
      $region43: #{_lambda_.2} parent=39 // pred_region
        %s730 = smul.u32 32, %s15
        %p731 = scmp.lt.s32.totalorder %s730, 63
        %s732 = scalar_select %p731, %s730, 63
        %s733 = smul.addr %s732, 4
        %s734 = scalar_lea.vmem %s3, %s733
      $region44: #{_lambda_.2} parent=39 // pred_fallthru
        _
    $region40: #{_lambda_.2} parent=5 // pred_fallthru
      _
  $region6: #{_lambda_.2} parent=0 // loop_footer
    %s13 = sadd.s32 1, %s9
  $region7: #{_lambda_.2} parent=0 // loop_footer_branch
    %8 = sbr.rel target = $region3
  $region8: #{_lambda_.2} parent=0 // loop_exit
    _

// kernel: _lambda_.3
$region0: #{_lambda_.3}
  #allocation0 [shape = 'u32[]', space=smem, size = 0x4, offset = 0x4, fixed_abs, tag = 'smem constant byte address 0x4 - core index']
  #allocation1 [shape = 'u32[144,128]{1,0:T(1,128)}', space=vmem, size = 0x12000, scoped, tag = 'internal scratch']
  #allocation2 [shape = 'bf16[256,72]{1,0:T(8,128)(2,1)}', space=vmem, size = 0x10000, scoped, tag = 'scratch operand']
  %s0 = inlined_call_operand.vmem [shape: bf16[8,10,10,8], index: 0, kind: input, shape index: {}]
  %s1 = inlined_call_operand.vmem [shape: bf16[72,8], index: 1, kind: input, shape index: {}]
  %s2 = inlined_call_operand.vmem [shape: f32[1,8], index: 2, kind: input, shape index: {}]
  %s3 = inlined_call_operand.vmem [shape: bf16[8,32], index: 3, kind: input, shape index: {}]
  %s4 = inlined_call_operand.vmem [shape: f32[1,32], index: 4, kind: input, shape index: {}]
  %s5 = inlined_call_operand.vmem [shape: bf16[8,8,8,32], index: 5, kind: input, shape index: {}]
  %s6 = inlined_call_operand.vmem [shape: bf16[8,8,8,32], index: 6, kind: output, shape index: {}]
  %s7 = sld [smem:[#allocation0]]
  $region57: #{_lambda_.3} parent=0
    _
  %s9 = ssub.s32 1, %s7
  %s10 = scalar_select 0, %s9, %s7
  loop: start=0, step=1, limit=4
  $region2: #{_lambda_.3} parent=0 // loop_pre_header
    _
  $region3: #{_lambda_.3} parent=0 // loop_header
    %s12 = sphi 0, %s16
    %p13 = scmp.ge.s32.totalorder %s12, 4
    %s22 = sphi 0, %s24
    %s25 = sphi 0, %s22
    %s26 = sphi 0, %s25
    %s42 = sphi 0, %s26
    %s46 = sphi 0, %s46
    %s48 = sphi 0, %s46
    %s49 = sphi 0, %s48
    %s63 = sphi 0, %s49
    %s67 = sphi 0, %s67
    %s69 = sphi 0, %s67
    %s70 = sphi 0, %s69
    %s84 = sphi 0, %s70
    %s88 = sphi 0, %s88
    %s90 = sphi 0, %s88
    %s91 = sphi 0, %s90
    %s105 = sphi 0, %s91
    %s109 = sphi 0, %s109
    %s111 = sphi 0, %s109
    %s112 = sphi 0, %s111
    %s126 = sphi 0, %s112
    %s132 = sphi 0, %s134
    %s135 = sphi 0, %s132
    %s136 = sphi 0, %s135
    %s152 = sphi 0, %s136
    %s158 = sphi 0, %s160
    %s161 = sphi 0, %s158
    %s162 = sphi 0, %s161
    %s178 = sphi 0, %s162
  $region4: #{_lambda_.3} parent=0 // loop_header_branch
    %15 = sbr.rel (%p13) target = $region8
  $region5: #{_lambda_.3} parent=0 // loop_body
    %s17 = ssub.s32 %s12, 1
    %s18 = ssub.s32 %s12, 2
    %s19 = sadd.s32 %s12, 1
    %s20 = ssub.s32 %s12, %s19
    %p21 = scmp.eq.s32.totalorder %s20, 0
    %s23 = sadd.s32 %s22, 1
    %s24 = scalar_select %p21, %s22, %s23
    %p27 = pneg %p21
    %p28 = scmp.eq.s32.totalorder %s12, 1
    %p29 = por %p27, %p28
    %p30 = scmp.ne.s32.totalorder %s22, %s25
    %p31 = scmp.eq.s32.totalorder %s12, 0
    %p32 = por %p30, %p31
    %p33 = scmp.ne.s32.totalorder %s22, %s25
    %p34 = scmp.eq.s32.totalorder %s17, 1
    %p35 = por %p33, %p34
    %p36 = scmp.ne.s32.totalorder %s25, %s26
    %p37 = scmp.eq.s32.totalorder %s17, 0
    %p38 = por %p36, %p37
    %p39 = scmp.ne.s32.totalorder %s25, %s26
    %p40 = scmp.eq.s32.totalorder %s18, 1
    %p41 = por %p39, %p40
    %p43 = scmp.ne.s32.totalorder %s26, %s42
    %p44 = scmp.eq.s32.totalorder %s18, 0
    %p45 = por %p43, %p44
    %s47 = sadd.s32 %s46, 1
    %p50 = scmp.eq.s32.totalorder %s12, 1
    %p51 = scmp.ne.s32.totalorder %s46, %s48
    %p52 = scmp.eq.s32.totalorder %s12, 0
    %p53 = por %p51, %p52
    %p54 = scmp.ne.s32.totalorder %s46, %s48
    %p55 = scmp.eq.s32.totalorder %s17, 1
    %p56 = por %p54, %p55
    %p57 = scmp.ne.s32.totalorder %s48, %s49
    %p58 = scmp.eq.s32.totalorder %s17, 0
    %p59 = por %p57, %p58
    %p60 = scmp.ne.s32.totalorder %s48, %s49
    %p61 = scmp.eq.s32.totalorder %s18, 1
    %p62 = por %p60, %p61
    %p64 = scmp.ne.s32.totalorder %s49, %s63
    %p65 = scmp.eq.s32.totalorder %s18, 0
    %p66 = por %p64, %p65
    %s68 = sadd.s32 %s67, 1
    %p71 = scmp.eq.s32.totalorder %s12, 1
    %p72 = scmp.ne.s32.totalorder %s67, %s69
    %p73 = scmp.eq.s32.totalorder %s12, 0
    %p74 = por %p72, %p73
    %p75 = scmp.ne.s32.totalorder %s67, %s69
    %p76 = scmp.eq.s32.totalorder %s17, 1
    %p77 = por %p75, %p76
    %p78 = scmp.ne.s32.totalorder %s69, %s70
    %p79 = scmp.eq.s32.totalorder %s17, 0
    %p80 = por %p78, %p79
    %p81 = scmp.ne.s32.totalorder %s69, %s70
    %p82 = scmp.eq.s32.totalorder %s18, 1
    %p83 = por %p81, %p82
    %p85 = scmp.ne.s32.totalorder %s70, %s84
    %p86 = scmp.eq.s32.totalorder %s18, 0
    %p87 = por %p85, %p86
    %s89 = sadd.s32 %s88, 1
    %p92 = scmp.eq.s32.totalorder %s12, 1
    %p93 = scmp.ne.s32.totalorder %s88, %s90
    %p94 = scmp.eq.s32.totalorder %s12, 0
    %p95 = por %p93, %p94
    %p96 = scmp.ne.s32.totalorder %s88, %s90
    %p97 = scmp.eq.s32.totalorder %s17, 1
    %p98 = por %p96, %p97
    %p99 = scmp.ne.s32.totalorder %s90, %s91
    %p100 = scmp.eq.s32.totalorder %s17, 0
    %p101 = por %p99, %p100
    %p102 = scmp.ne.s32.totalorder %s90, %s91
    %p103 = scmp.eq.s32.totalorder %s18, 1
    %p104 = por %p102, %p103
    %p106 = scmp.ne.s32.totalorder %s91, %s105
    %p107 = scmp.eq.s32.totalorder %s18, 0
    %p108 = por %p106, %p107
    %s110 = sadd.s32 %s109, 1
    %p113 = scmp.eq.s32.totalorder %s12, 1
    %p114 = scmp.ne.s32.totalorder %s109, %s111
    %p115 = scmp.eq.s32.totalorder %s12, 0
    %p116 = por %p114, %p115
    %p117 = scmp.ne.s32.totalorder %s109, %s111
    %p118 = scmp.eq.s32.totalorder %s17, 1
    %p119 = por %p117, %p118
    %p120 = scmp.ne.s32.totalorder %s111, %s112
    %p121 = scmp.eq.s32.totalorder %s17, 0
    %p122 = por %p120, %p121
    %p123 = scmp.ne.s32.totalorder %s111, %s112
    %p124 = scmp.eq.s32.totalorder %s18, 1
    %p125 = por %p123, %p124
    %p127 = scmp.ne.s32.totalorder %s112, %s126
    %p128 = scmp.eq.s32.totalorder %s18, 0
    %p129 = por %p127, %p128
    %s130 = ssub.s32 %s12, %s19
    %p131 = scmp.eq.s32.totalorder %s130, 0
    %s133 = sadd.s32 %s132, 1
    %s134 = scalar_select %p131, %s132, %s133
    %p137 = pneg %p131
    %p138 = scmp.eq.s32.totalorder %s12, 1
    %p139 = por %p137, %p138
    %p140 = scmp.ne.s32.totalorder %s132, %s135
    %p141 = scmp.eq.s32.totalorder %s12, 0
    %p142 = por %p140, %p141
    %p143 = scmp.ne.s32.totalorder %s132, %s135
    %p144 = scmp.eq.s32.totalorder %s17, 1
    %p145 = por %p143, %p144
    %p146 = scmp.ne.s32.totalorder %s135, %s136
    %p147 = scmp.eq.s32.totalorder %s17, 0
    %p148 = por %p146, %p147
    %p149 = scmp.ne.s32.totalorder %s135, %s136
    %p150 = scmp.eq.s32.totalorder %s18, 1
    %p151 = por %p149, %p150
    %p153 = scmp.ne.s32.totalorder %s136, %s152
    %p154 = scmp.eq.s32.totalorder %s18, 0
    %p155 = por %p153, %p154
    %s156 = ssub.s32 %s12, %s19
    %p157 = scmp.eq.s32.totalorder %s156, 0
    %s159 = sadd.s32 %s158, 1
    %s160 = scalar_select %p157, %s158, %s159
    %p163 = pneg %p157
    %p164 = scmp.eq.s32.totalorder %s12, 1
    %p165 = por %p163, %p164
    %p166 = scmp.ne.s32.totalorder %s158, %s161
    %p167 = scmp.eq.s32.totalorder %s12, 0
    %p168 = por %p166, %p167
    %p169 = scmp.ne.s32.totalorder %s158, %s161
    %p170 = scmp.eq.s32.totalorder %s17, 1
    %p171 = por %p169, %p170
    %p172 = scmp.ne.s32.totalorder %s161, %s162
    %p173 = scmp.eq.s32.totalorder %s17, 0
    %p174 = por %p172, %p173
    %p175 = scmp.ne.s32.totalorder %s161, %s162
    %p176 = scmp.eq.s32.totalorder %s18, 1
    %p177 = por %p175, %p176
    %p179 = scmp.ne.s32.totalorder %s162, %s178
    %p180 = scmp.eq.s32.totalorder %s18, 0
    %p181 = por %p179, %p180
    %p182 = scmp.le.s32.totalorder 1, %s12
    %p183 = scmp.lt.s32.totalorder %s12, 3
    %p184 = pnand %p182, %p183
    %p185 = pneg %p184
    // Predicated region
    $region9: #{_lambda_.3} parent=5 // pred_check
      _
    $region10: #{_lambda_.3} parent=5 // pred_check_branch
      %187 = sbr.rel (%p184) target = $region12
    $region11: #{_lambda_.3} parent=5 // pred_region
      %s188 = ssub.s32 %s12, 1
      // Predicated region
      $region13: #{_lambda_.3} parent=11 // pred_check
        %p189 = pneg %p59
      $region14: #{_lambda_.3} parent=11 // pred_check_branch
        %191 = sbr.rel (%p189) target = $region16
      $region15: #{_lambda_.3} parent=11 // pred_region
        _
      $region16: #{_lambda_.3} parent=11 // pred_fallthru
        _
      // Predicated region
      $region17: #{_lambda_.3} parent=11 // pred_check
        %p192 = pneg %p80
      $region18: #{_lambda_.3} parent=11 // pred_check_branch
        %194 = sbr.rel (%p192) target = $region20
      $region19: #{_lambda_.3} parent=11 // pred_region
        _
      $region20: #{_lambda_.3} parent=11 // pred_fallthru
        _
      // Predicated region
      $region21: #{_lambda_.3} parent=11 // pred_check
        %p195 = pneg %p101
      $region22: #{_lambda_.3} parent=11 // pred_check_branch
        %197 = sbr.rel (%p195) target = $region24
      $region23: #{_lambda_.3} parent=11 // pred_region
        _
      $region24: #{_lambda_.3} parent=11 // pred_fallthru
        _
      // Predicated region
      $region25: #{_lambda_.3} parent=11 // pred_check
        %p198 = pneg %p122
      $region26: #{_lambda_.3} parent=11 // pred_check_branch
        %200 = sbr.rel (%p198) target = $region28
      $region27: #{_lambda_.3} parent=11 // pred_region
        _
      $region28: #{_lambda_.3} parent=11 // pred_fallthru
        _
    $region12: #{_lambda_.3} parent=5 // pred_fallthru
      _
    %p201 = scmp.lt.s32.totalorder %s12, 2
    // Predicated region
    $region29: #{_lambda_.3} parent=5 // pred_check
      %p202 = pneg %p201
    $region30: #{_lambda_.3} parent=5 // pred_check_branch
      %204 = sbr.rel (%p202) target = $region32
    $region31: #{_lambda_.3} parent=5 // pred_region
      // Predicated region
      $region33: #{_lambda_.3} parent=31 // pred_check
        %p205 = pneg %p32
      $region34: #{_lambda_.3} parent=31 // pred_check_branch
        %207 = sbr.rel (%p205) target = $region36
      $region35: #{_lambda_.3} parent=31 // pred_region
        %s208 = smul.u32 4, %s12
        %p209 = scmp.lt.s32.totalorder %s208, 7
        %s210 = scalar_select %p209, %s208, 7
        %s211 = smul.addr %s210, 20
        %s212 = smul.addr %s211, 4
        %s213 = scalar_lea.vmem %s0, %s212
        %s214 = smul.u32 4, %s12
      $region36: #{_lambda_.3} parent=31 // pred_fallthru
        _
      // Predicated region
      $region37: #{_lambda_.3} parent=31 // pred_check
        %p215 = pneg %p142
      $region38: #{_lambda_.3} parent=31 // pred_check_branch
        %217 = sbr.rel (%p215) target = $region40
      $region39: #{_lambda_.3} parent=31 // pred_region
        %s218 = smul.u32 4, %s12
        %p219 = scmp.lt.s32.totalorder %s218, 7
        %s220 = scalar_select %p219, %s218, 7
        %s221 = smul.addr %s220, 8
        %s222 = smul.addr %s221, 4
        %s223 = scalar_lea.vmem %s5, %s222
        %s224 = smul.u32 4, %s12
      $region40: #{_lambda_.3} parent=31 // pred_fallthru
        _
    $region32: #{_lambda_.3} parent=5 // pred_fallthru
      _
    %p225 = scmp.le.s32.totalorder 1, %s12
    %p226 = scmp.lt.s32.totalorder %s12, 3
    %p227 = pnand %p225, %p226
    %p228 = pneg %p227
    // Predicated region
    $region41: #{_lambda_.3} parent=5 // pred_check
      _
    $region42: #{_lambda_.3} parent=5 // pred_check_branch
      %230 = sbr.rel (%p227) target = $region44
    $region43: #{_lambda_.3} parent=5 // pred_region
      %s231 = ssub.s32 %s12, 1
      %s232 = smul.u32 4, %s17
      %p233 = scmp.lt.s32.totalorder %s232, 7
      %s234 = scalar_select %p233, %s232, 7
      %s235 = smul.addr %s234, 20
      %s236 = smul.addr %s235, 4
      %s237 = scalar_lea.vmem %s0, %s236
      %p238 = pneg %p38
      %p239 = pneg %p35
      %p240 = pneg %p59
      %p241 = pneg %p56
      %p242 = pneg %p80
      %p243 = pneg %p77
      %p244 = pneg %p101
      %p245 = pneg %p98
      %p246 = pneg %p122
      %p247 = pneg %p119
      %s248 = smul.u32 4, %s17
      %p249 = scmp.lt.s32.totalorder %s248, 7
      %s250 = scalar_select %p249, %s248, 7
      %s251 = smul.addr %s250, 8
      %s252 = smul.addr %s251, 4
      %s253 = scalar_lea.vmem %s5, %s252
      %p254 = pneg %p148
      %p255 = pneg %p145
      %p256 = pneg %p174
      %p257 = pneg %p171
      %s258 = smul.u32 4, %s17
      %p259 = scmp.lt.s32.totalorder %s258, 7
      %s260 = scalar_select %p259, %s258, 7
      %s261 = smul.addr %s260, 8
      %s262 = smul.addr %s261, 4
      %s263 = scalar_lea.vmem %s6, %s262
      %s264 = smul.u32 4, %s17
      %p265 = scmp.lt.s32.totalorder %s264, 7
      %s266 = scalar_select %p265, %s264, 7
      %s267 = smul.addr %s266, 20
      %s268 = smul.addr %s267, 4
      %s269 = scalar_lea.vmem %s0, %s268
      %s270 = smul.u32 4, %s17
      %s271 = smul.u32 4, %s17
      %p272 = scmp.lt.s32.totalorder %s271, 7
      %s273 = scalar_select %p272, %s271, 7
      %s274 = smul.addr %s273, 8
      %s275 = smul.addr %s274, 4
      %s276 = scalar_lea.vmem %s5, %s275
      %s277 = smul.u32 4, %s17
      %s278 = smul.u32 4, %s17
      %p279 = scmp.lt.s32.totalorder %s278, 7
      %s280 = scalar_select %p279, %s278, 7
      %s281 = smul.addr %s280, 8
      %s282 = smul.addr %s281, 4
      %s283 = scalar_lea.vmem %s6, %s282
      %s284 = smul.u32 4, %s17
      %v286 = vld [vmem:[%s269] sm:$0xf]
      %v287 = vld [vmem:[%s269 + $0x4] sm:$0x1]
      %v288 = vld [vmem:[%s269 + $0x8] sm:$0xf]
      %v289 = vld [vmem:[%s269 + $0xc] sm:$0x1]
      %v290 = vld [vmem:[%s269 + $0x10] sm:$0xf]
      %v291 = vld [vmem:[%s269 + $0x14] sm:$0x1]
      %v292 = vld [vmem:[%s269 + $0x18] sm:$0xf]
      %v293 = vld [vmem:[%s269 + $0x1c] sm:$0x1]
      %v294 = vld [vmem:[%s269 + $0x20] sm:$0xf]
      %v295 = vld [vmem:[%s269 + $0x24] sm:$0x1]
      %v296 = vld [vmem:[%s269 + $0x28] sm:$0xf]
      %v297 = vld [vmem:[%s269 + $0x2c] sm:$0x1]
      %v298 = vld [vmem:[%s269 + $0x30] sm:$0xf]
      %v299 = vld [vmem:[%s269 + $0x34] sm:$0x1]
      %v300 = vld [vmem:[%s269 + $0x38] sm:$0xf]
      %v301 = vld [vmem:[%s269 + $0x3c] sm:$0x1]
      %v302 = vld [vmem:[%s269 + $0x40] sm:$0xf]
      %v303 = vld [vmem:[%s269 + $0x44] sm:$0x1]
      %v304 = vld [vmem:[%s269 + $0x48] sm:$0xf]
      %v305 = vld [vmem:[%s269 + $0x4c] sm:$0x1]
      %v306 = vld [vmem:[%s269 + $0x50] sm:$0xf]
      %v307 = vld [vmem:[%s269 + $0x54] sm:$0x1]
      %v308 = vld [vmem:[%s269 + $0x58] sm:$0xf]
      %v309 = vld [vmem:[%s269 + $0x5c] sm:$0x1]
      %v310 = vld [vmem:[%s269 + $0x60] sm:$0xf]
      %v311 = vld [vmem:[%s269 + $0x64] sm:$0x1]
      %v312 = vld [vmem:[%s269 + $0x68] sm:$0xf]
      %v313 = vld [vmem:[%s269 + $0x6c] sm:$0x1]
      %v314 = vld [vmem:[%s269 + $0x70] sm:$0xf]
      %v315 = vld [vmem:[%s269 + $0x74] sm:$0x1]
      %v316 = vld [vmem:[%s269 + $0x78] sm:$0xf]
      %v317 = vld [vmem:[%s269 + $0x7c] sm:$0x1]
      %v318 = vld [vmem:[%s269 + $0x80] sm:$0xf]
      %v319 = vld [vmem:[%s269 + $0x84] sm:$0x1]
      %v320 = vld [vmem:[%s269 + $0x88] sm:$0xf]
      %v321 = vld [vmem:[%s269 + $0x8c] sm:$0x1]
      %v322 = vld [vmem:[%s269 + $0x90] sm:$0xf]
      %v323 = vld [vmem:[%s269 + $0x94] sm:$0x1]
      %v324 = vld [vmem:[%s269 + $0x98] sm:$0xf]
      %v325 = vld [vmem:[%s269 + $0x9c] sm:$0x1]
      %v326 = vld [vmem:[%s269 + $0xa0] sm:$0xf]
      %v327 = vld [vmem:[%s269 + $0xa4] sm:$0x1]
      %v328 = vld [vmem:[%s269 + $0xa8] sm:$0xf]
      %v329 = vld [vmem:[%s269 + $0xac] sm:$0x1]
      %v330 = vld [vmem:[%s269 + $0xb0] sm:$0xf]
      %v331 = vld [vmem:[%s269 + $0xb4] sm:$0x1]
      %v332 = vld [vmem:[%s269 + $0xb8] sm:$0xf]
      %v333 = vld [vmem:[%s269 + $0xbc] sm:$0x1]
      %v334 = vld [vmem:[%s269 + $0xc0] sm:$0xf]
      %v335 = vld [vmem:[%s269 + $0xc4] sm:$0x1]
      %v336 = vld [vmem:[%s269 + $0xc8] sm:$0xf]
      %v337 = vld [vmem:[%s269 + $0xcc] sm:$0x1]
      %v338 = vld [vmem:[%s269 + $0xd0] sm:$0xf]
      %v339 = vld [vmem:[%s269 + $0xd4] sm:$0x1]
      %v340 = vld [vmem:[%s269 + $0xd8] sm:$0xf]
      %v341 = vld [vmem:[%s269 + $0xdc] sm:$0x1]
      %v342 = vld [vmem:[%s269 + $0xe0] sm:$0xf]
      %v343 = vld [vmem:[%s269 + $0xe4] sm:$0x1]
      %v344 = vld [vmem:[%s269 + $0xe8] sm:$0xf]
      %v345 = vld [vmem:[%s269 + $0xec] sm:$0x1]
      %v346 = vld [vmem:[%s269 + $0xf0] sm:$0xf]
      %v347 = vld [vmem:[%s269 + $0xf4] sm:$0x1]
      %v348 = vld [vmem:[%s269 + $0xf8] sm:$0xf]
      %v349 = vld [vmem:[%s269 + $0xfc] sm:$0x1]
      %v350 = vld [vmem:[%s269 + $0x100] sm:$0xf]
      %v351 = vld [vmem:[%s269 + $0x104] sm:$0x1]
      %v352 = vld [vmem:[%s269 + $0x108] sm:$0xf]
      %v353 = vld [vmem:[%s269 + $0x10c] sm:$0x1]
      %v354 = vld [vmem:[%s269 + $0x110] sm:$0xf]
      %v355 = vld [vmem:[%s269 + $0x114] sm:$0x1]
      %v356 = vld [vmem:[%s269 + $0x118] sm:$0xf]
      %v357 = vld [vmem:[%s269 + $0x11c] sm:$0x1]
      %v358 = vld [vmem:[%s269 + $0x120] sm:$0xf]
      %v359 = vld [vmem:[%s269 + $0x124] sm:$0x1]
      %v360 = vld [vmem:[%s269 + $0x128] sm:$0xf]
      %v361 = vld [vmem:[%s269 + $0x12c] sm:$0x1]
      %v362 = vld [vmem:[%s269 + $0x130] sm:$0xf]
      %v363 = vld [vmem:[%s269 + $0x134] sm:$0x1]
      %v364 = vld [vmem:[%s269 + $0x138] sm:$0xf]
      %v365 = vld [vmem:[%s269 + $0x13c] sm:$0x1]
      %vm366 = vcmask 60416
      %367 = vst.msk [vmem:[#allocation2] sm:$0xf] %vm366, %v286
      %368 = vst.msk [vmem:[#allocation2 + $0x4] sm:$0xf] %vm366, %v288
      %369 = vst.msk [vmem:[#allocation2 + $0x8] sm:$0xf] %vm366, %v290
      %370 = vst.msk [vmem:[#allocation2 + $0xc] sm:$0xf] %vm366, %v292
      %371 = vst.msk [vmem:[#allocation2 + $0x10] sm:$0xf] %vm366, %v294
      %372 = vst.msk [vmem:[#allocation2 + $0x14] sm:$0xf] %vm366, %v296
      %373 = vst.msk [vmem:[#allocation2 + $0x18] sm:$0xf] %vm366, %v298
      %374 = vst.msk [vmem:[#allocation2 + $0x1c] sm:$0xf] %vm366, %v300
      %375 = vst.msk [vmem:[#allocation2 + $0x20] sm:$0xf] %vm366, %v306
      %376 = vst.msk [vmem:[#allocation2 + $0x24] sm:$0xf] %vm366, %v308
      %377 = vst.msk [vmem:[#allocation2 + $0x28] sm:$0xf] %vm366, %v310
      %378 = vst.msk [vmem:[#allocation2 + $0x2c] sm:$0xf] %vm366, %v312
      %379 = vst.msk [vmem:[#allocation2 + $0x30] sm:$0xf] %vm366, %v314
      %380 = vst.msk [vmem:[#allocation2 + $0x34] sm:$0xf] %vm366, %v316
      %381 = vst.msk [vmem:[#allocation2 + $0x38] sm:$0xf] %vm366, %v318
      %382 = vst.msk [vmem:[#allocation2 + $0x3c] sm:$0xf] %vm366, %v320
      %383 = vst.msk [vmem:[#allocation2 + $0x40] sm:$0xf] %vm366, %v326
      %384 = vst.msk [vmem:[#allocation2 + $0x44] sm:$0xf] %vm366, %v328
      %385 = vst.msk [vmem:[#allocation2 + $0x48] sm:$0xf] %vm366, %v330
      %386 = vst.msk [vmem:[#allocation2 + $0x4c] sm:$0xf] %vm366, %v332
      %387 = vst.msk [vmem:[#allocation2 + $0x50] sm:$0xf] %vm366, %v334
      %388 = vst.msk [vmem:[#allocation2 + $0x54] sm:$0xf] %vm366, %v336
      %389 = vst.msk [vmem:[#allocation2 + $0x58] sm:$0xf] %vm366, %v338
      %390 = vst.msk [vmem:[#allocation2 + $0x5c] sm:$0xf] %vm366, %v340
      %391 = vst.msk [vmem:[#allocation2 + $0x60] sm:$0xf] %vm366, %v346
      %392 = vst.msk [vmem:[#allocation2 + $0x64] sm:$0xf] %vm366, %v348
      %393 = vst.msk [vmem:[#allocation2 + $0x68] sm:$0xf] %vm366, %v350
      %394 = vst.msk [vmem:[#allocation2 + $0x6c] sm:$0xf] %vm366, %v352
      %395 = vst.msk [vmem:[#allocation2 + $0x70] sm:$0xf] %vm366, %v354
      %396 = vst.msk [vmem:[#allocation2 + $0x74] sm:$0xf] %vm366, %v356
      %397 = vst.msk [vmem:[#allocation2 + $0x78] sm:$0xf] %vm366, %v358
      %398 = vst.msk [vmem:[#allocation2 + $0x7c] sm:$0xf] %vm366, %v360
      %vm399 = vsmask.f32 3328
      %vm400 = vsmask.f32 7440
      %vm401 = vmor %vm399, %vm400
      %v403 = vshrl.u32 %v286, 16
      %v405 = vrot.slane %v403, 4
      %v406 = vshll.u32 %v286, 16
      %v408 = vrot.slane %v406, 5
      %v409 = vor.u32 %v405, %v408
      %v410 = vrot.slane %v409, 4
      %v412 = vshll.u32 %v287, 16
      %v414 = vrot.slane %v412, 5
      %v415 = vsel %vm401, %v410, %v414
      %v417 = vshrl.u32 %v288, 16
      %v419 = vrot.slane %v417, 4
      %v420 = vshll.u32 %v288, 16
      %v422 = vrot.slane %v420, 5
      %v423 = vor.u32 %v419, %v422
      %v424 = vrot.slane %v423, 4
      %v426 = vshll.u32 %v289, 16
      %v428 = vrot.slane %v426, 5
      %v429 = vsel %vm401, %v424, %v428
      %v431 = vshrl.u32 %v290, 16
      %v433 = vrot.slane %v431, 4
      %v434 = vshll.u32 %v290, 16
      %v436 = vrot.slane %v434, 5
      %v437 = vor.u32 %v433, %v436
      %v438 = vrot.slane %v437, 4
      %v440 = vshll.u32 %v291, 16
      %v442 = vrot.slane %v440, 5
      %v443 = vsel %vm401, %v438, %v442
      %v445 = vshrl.u32 %v292, 16
      %v447 = vrot.slane %v445, 4
      %v448 = vshll.u32 %v292, 16
      %v450 = vrot.slane %v448, 5
      %v451 = vor.u32 %v447, %v450
      %v452 = vrot.slane %v451, 4
      %v454 = vshll.u32 %v293, 16
      %v456 = vrot.slane %v454, 5
      %v457 = vsel %vm401, %v452, %v456
      %v459 = vshrl.u32 %v294, 16
      %v461 = vrot.slane %v459, 4
      %v462 = vshll.u32 %v294, 16
      %v464 = vrot.slane %v462, 5
      %v465 = vor.u32 %v461, %v464
      %v466 = vrot.slane %v465, 4
      %v468 = vshll.u32 %v295, 16
      %v470 = vrot.slane %v468, 5
      %v471 = vsel %vm401, %v466, %v470
      %v473 = vshrl.u32 %v296, 16
      %v475 = vrot.slane %v473, 4
      %v476 = vshll.u32 %v296, 16
      %v478 = vrot.slane %v476, 5
      %v479 = vor.u32 %v475, %v478
      %v480 = vrot.slane %v479, 4
      %v482 = vshll.u32 %v297, 16
      %v484 = vrot.slane %v482, 5
      %v485 = vsel %vm401, %v480, %v484
      %v487 = vshrl.u32 %v298, 16
      %v489 = vrot.slane %v487, 4
      %v490 = vshll.u32 %v298, 16
      %v492 = vrot.slane %v490, 5
      %v493 = vor.u32 %v489, %v492
      %v494 = vrot.slane %v493, 4
      %v496 = vshll.u32 %v299, 16
      %v498 = vrot.slane %v496, 5
      %v499 = vsel %vm401, %v494, %v498
      %v501 = vshrl.u32 %v300, 16
      %v503 = vrot.slane %v501, 4
      %v504 = vshll.u32 %v300, 16
      %v506 = vrot.slane %v504, 5
      %v507 = vor.u32 %v503, %v506
      %v508 = vrot.slane %v507, 4
      %v510 = vshll.u32 %v301, 16
      %v512 = vrot.slane %v510, 5
      %v513 = vsel %vm401, %v508, %v512
      %v515 = vshrl.u32 %v306, 16
      %v517 = vrot.slane %v515, 4
      %v518 = vshll.u32 %v306, 16
      %v520 = vrot.slane %v518, 5
      %v521 = vor.u32 %v517, %v520
      %v522 = vrot.slane %v521, 4
      %v524 = vshll.u32 %v307, 16
      %v526 = vrot.slane %v524, 5
      %v527 = vsel %vm401, %v522, %v526
      %v529 = vshrl.u32 %v308, 16
      %v531 = vrot.slane %v529, 4
      %v532 = vshll.u32 %v308, 16
      %v534 = vrot.slane %v532, 5
      %v535 = vor.u32 %v531, %v534
      %v536 = vrot.slane %v535, 4
      %v538 = vshll.u32 %v309, 16
      %v540 = vrot.slane %v538, 5
      %v541 = vsel %vm401, %v536, %v540
      %v543 = vshrl.u32 %v310, 16
      %v545 = vrot.slane %v543, 4
      %v546 = vshll.u32 %v310, 16
      %v548 = vrot.slane %v546, 5
      %v549 = vor.u32 %v545, %v548
      %v550 = vrot.slane %v549, 4
      %v552 = vshll.u32 %v311, 16
      %v554 = vrot.slane %v552, 5
      %v555 = vsel %vm401, %v550, %v554
      %v557 = vshrl.u32 %v312, 16
      %v559 = vrot.slane %v557, 4
      %v560 = vshll.u32 %v312, 16
      %v562 = vrot.slane %v560, 5
      %v563 = vor.u32 %v559, %v562
      %v564 = vrot.slane %v563, 4
      %v566 = vshll.u32 %v313, 16
      %v568 = vrot.slane %v566, 5
      %v569 = vsel %vm401, %v564, %v568
      %v571 = vshrl.u32 %v314, 16
      %v573 = vrot.slane %v571, 4
      %v574 = vshll.u32 %v314, 16
      %v576 = vrot.slane %v574, 5
      %v577 = vor.u32 %v573, %v576
      %v578 = vrot.slane %v577, 4
      %v580 = vshll.u32 %v315, 16
      %v582 = vrot.slane %v580, 5
      %v583 = vsel %vm401, %v578, %v582
      %v585 = vshrl.u32 %v316, 16
      %v587 = vrot.slane %v585, 4
      %v588 = vshll.u32 %v316, 16
      %v590 = vrot.slane %v588, 5
      %v591 = vor.u32 %v587, %v590
      %v592 = vrot.slane %v591, 4
      %v594 = vshll.u32 %v317, 16
      %v596 = vrot.slane %v594, 5
      %v597 = vsel %vm401, %v592, %v596
      %v599 = vshrl.u32 %v318, 16
      %v601 = vrot.slane %v599, 4
      %v602 = vshll.u32 %v318, 16
      %v604 = vrot.slane %v602, 5
      %v605 = vor.u32 %v601, %v604
      %v606 = vrot.slane %v605, 4
      %v608 = vshll.u32 %v319, 16
      %v610 = vrot.slane %v608, 5
      %v611 = vsel %vm401, %v606, %v610
      %v613 = vshrl.u32 %v320, 16
      %v615 = vrot.slane %v613, 4
      %v616 = vshll.u32 %v320, 16
      %v618 = vrot.slane %v616, 5
      %v619 = vor.u32 %v615, %v618
      %v620 = vrot.slane %v619, 4
      %v622 = vshll.u32 %v321, 16
      %v624 = vrot.slane %v622, 5
      %v625 = vsel %vm401, %v620, %v624
      %v627 = vshrl.u32 %v326, 16
      %v629 = vrot.slane %v627, 4
      %v630 = vshll.u32 %v326, 16
      %v632 = vrot.slane %v630, 5
      %v633 = vor.u32 %v629, %v632
      %v634 = vrot.slane %v633, 4
      %v636 = vshll.u32 %v327, 16
      %v638 = vrot.slane %v636, 5
      %v639 = vsel %vm401, %v634, %v638
      %v641 = vshrl.u32 %v328, 16
      %v643 = vrot.slane %v641, 4
      %v644 = vshll.u32 %v328, 16
      %v646 = vrot.slane %v644, 5
      %v647 = vor.u32 %v643, %v646
      %v648 = vrot.slane %v647, 4
      %v650 = vshll.u32 %v329, 16
      %v652 = vrot.slane %v650, 5
      %v653 = vsel %vm401, %v648, %v652
      %v655 = vshrl.u32 %v330, 16
      %v657 = vrot.slane %v655, 4
      %v658 = vshll.u32 %v330, 16
      %v660 = vrot.slane %v658, 5
      %v661 = vor.u32 %v657, %v660
      %v662 = vrot.slane %v661, 4
      %v664 = vshll.u32 %v331, 16
      %v666 = vrot.slane %v664, 5
      %v667 = vsel %vm401, %v662, %v666
      %v669 = vshrl.u32 %v332, 16
      %v671 = vrot.slane %v669, 4
      %v672 = vshll.u32 %v332, 16
      %v674 = vrot.slane %v672, 5
      %v675 = vor.u32 %v671, %v674
      %v676 = vrot.slane %v675, 4
      %v678 = vshll.u32 %v333, 16
      %v680 = vrot.slane %v678, 5
      %v681 = vsel %vm401, %v676, %v680
      %v683 = vshrl.u32 %v334, 16
      %v685 = vrot.slane %v683, 4
      %v686 = vshll.u32 %v334, 16
      %v688 = vrot.slane %v686, 5
      %v689 = vor.u32 %v685, %v688
      %v690 = vrot.slane %v689, 4
      %v692 = vshll.u32 %v335, 16
      %v694 = vrot.slane %v692, 5
      %v695 = vsel %vm401, %v690, %v694
      %v697 = vshrl.u32 %v336, 16
      %v699 = vrot.slane %v697, 4
      %v700 = vshll.u32 %v336, 16
      %v702 = vrot.slane %v700, 5
      %v703 = vor.u32 %v699, %v702
      %v704 = vrot.slane %v703, 4
      %v706 = vshll.u32 %v337, 16
      %v708 = vrot.slane %v706, 5
      %v709 = vsel %vm401, %v704, %v708
      %v711 = vshrl.u32 %v338, 16
      %v713 = vrot.slane %v711, 4
      %v714 = vshll.u32 %v338, 16
      %v716 = vrot.slane %v714, 5
      %v717 = vor.u32 %v713, %v716
      %v718 = vrot.slane %v717, 4
      %v720 = vshll.u32 %v339, 16
      %v722 = vrot.slane %v720, 5
      %v723 = vsel %vm401, %v718, %v722
      %v725 = vshrl.u32 %v340, 16
      %v727 = vrot.slane %v725, 4
      %v728 = vshll.u32 %v340, 16
      %v730 = vrot.slane %v728, 5
      %v731 = vor.u32 %v727, %v730
      %v732 = vrot.slane %v731, 4
      %v734 = vshll.u32 %v341, 16
      %v736 = vrot.slane %v734, 5
      %v737 = vsel %vm401, %v732, %v736
      %v739 = vshrl.u32 %v346, 16
      %v741 = vrot.slane %v739, 4
      %v742 = vshll.u32 %v346, 16
      %v744 = vrot.slane %v742, 5
      %v745 = vor.u32 %v741, %v744
      %v746 = vrot.slane %v745, 4
      %v748 = vshll.u32 %v347, 16
      %v750 = vrot.slane %v748, 5
      %v751 = vsel %vm401, %v746, %v750
      %v753 = vshrl.u32 %v348, 16
      %v755 = vrot.slane %v753, 4
      %v756 = vshll.u32 %v348, 16
      %v758 = vrot.slane %v756, 5
      %v759 = vor.u32 %v755, %v758
      %v760 = vrot.slane %v759, 4
      %v762 = vshll.u32 %v349, 16
      %v764 = vrot.slane %v762, 5
      %v765 = vsel %vm401, %v760, %v764
      %v767 = vshrl.u32 %v350, 16
      %v769 = vrot.slane %v767, 4
      %v770 = vshll.u32 %v350, 16
      %v772 = vrot.slane %v770, 5
      %v773 = vor.u32 %v769, %v772
      %v774 = vrot.slane %v773, 4
      %v776 = vshll.u32 %v351, 16
      %v778 = vrot.slane %v776, 5
      %v779 = vsel %vm401, %v774, %v778
      %v781 = vshrl.u32 %v352, 16
      %v783 = vrot.slane %v781, 4
      %v784 = vshll.u32 %v352, 16
      %v786 = vrot.slane %v784, 5
      %v787 = vor.u32 %v783, %v786
      %v788 = vrot.slane %v787, 4
      %v790 = vshll.u32 %v353, 16
      %v792 = vrot.slane %v790, 5
      %v793 = vsel %vm401, %v788, %v792
      %v795 = vshrl.u32 %v354, 16
      %v797 = vrot.slane %v795, 4
      %v798 = vshll.u32 %v354, 16
      %v800 = vrot.slane %v798, 5
      %v801 = vor.u32 %v797, %v800
      %v802 = vrot.slane %v801, 4
      %v804 = vshll.u32 %v355, 16
      %v806 = vrot.slane %v804, 5
      %v807 = vsel %vm401, %v802, %v806
      %v809 = vshrl.u32 %v356, 16
      %v811 = vrot.slane %v809, 4
      %v812 = vshll.u32 %v356, 16
      %v814 = vrot.slane %v812, 5
      %v815 = vor.u32 %v811, %v814
      %v816 = vrot.slane %v815, 4
      %v818 = vshll.u32 %v357, 16
      %v820 = vrot.slane %v818, 5
      %v821 = vsel %vm401, %v816, %v820
      %v823 = vshrl.u32 %v358, 16
      %v825 = vrot.slane %v823, 4
      %v826 = vshll.u32 %v358, 16
      %v828 = vrot.slane %v826, 5
      %v829 = vor.u32 %v825, %v828
      %v830 = vrot.slane %v829, 4
      %v832 = vshll.u32 %v359, 16
      %v834 = vrot.slane %v832, 5
      %v835 = vsel %vm401, %v830, %v834
      %v837 = vshrl.u32 %v360, 16
      %v839 = vrot.slane %v837, 4
      %v840 = vshll.u32 %v360, 16
      %v842 = vrot.slane %v840, 5
      %v843 = vor.u32 %v839, %v842
      %v844 = vrot.slane %v843, 4
      %v846 = vshll.u32 %v361, 16
      %v848 = vrot.slane %v846, 5
      %v849 = vsel %vm401, %v844, %v848
      %850 = vrot.lane.b32.xlu0 %v415, 8
      %v851 = vpop.permute.xlu0 %850
      %852 = vrot.lane.b32.xlu0 %v429, 8
      %v853 = vpop.permute.xlu0 %852
      %854 = vrot.lane.b32.xlu0 %v443, 8
      %v855 = vpop.permute.xlu0 %854
      %856 = vrot.lane.b32.xlu0 %v457, 8
      %v857 = vpop.permute.xlu0 %856
      %858 = vrot.lane.b32.xlu0 %v471, 8
      %v859 = vpop.permute.xlu0 %858
      %860 = vrot.lane.b32.xlu0 %v485, 8
      %v861 = vpop.permute.xlu0 %860
      %862 = vrot.lane.b32.xlu0 %v499, 8
      %v863 = vpop.permute.xlu0 %862
      %864 = vrot.lane.b32.xlu0 %v513, 8
      %v865 = vpop.permute.xlu0 %864
      %866 = vrot.lane.b32.xlu0 %v527, 8
      %v867 = vpop.permute.xlu0 %866
      %868 = vrot.lane.b32.xlu0 %v541, 8
      %v869 = vpop.permute.xlu0 %868
      %870 = vrot.lane.b32.xlu0 %v555, 8
      %v871 = vpop.permute.xlu0 %870
      %872 = vrot.lane.b32.xlu0 %v569, 8
      %v873 = vpop.permute.xlu0 %872
      %874 = vrot.lane.b32.xlu0 %v583, 8
      %v875 = vpop.permute.xlu0 %874
      %876 = vrot.lane.b32.xlu0 %v597, 8
      %v877 = vpop.permute.xlu0 %876
      %878 = vrot.lane.b32.xlu0 %v611, 8
      %v879 = vpop.permute.xlu0 %878
      %880 = vrot.lane.b32.xlu0 %v625, 8
      %v881 = vpop.permute.xlu0 %880
      %882 = vrot.lane.b32.xlu0 %v639, 8
      %v883 = vpop.permute.xlu0 %882
      %884 = vrot.lane.b32.xlu0 %v653, 8
      %v885 = vpop.permute.xlu0 %884
      %886 = vrot.lane.b32.xlu0 %v667, 8
      %v887 = vpop.permute.xlu0 %886
      %888 = vrot.lane.b32.xlu0 %v681, 8
      %v889 = vpop.permute.xlu0 %888
      %890 = vrot.lane.b32.xlu0 %v695, 8
      %v891 = vpop.permute.xlu0 %890
      %892 = vrot.lane.b32.xlu0 %v709, 8
      %v893 = vpop.permute.xlu0 %892
      %894 = vrot.lane.b32.xlu0 %v723, 8
      %v895 = vpop.permute.xlu0 %894
      %896 = vrot.lane.b32.xlu0 %v737, 8
      %v897 = vpop.permute.xlu0 %896
      %898 = vrot.lane.b32.xlu0 %v751, 8
      %v899 = vpop.permute.xlu0 %898
      %900 = vrot.lane.b32.xlu0 %v765, 8
      %v901 = vpop.permute.xlu0 %900
      %902 = vrot.lane.b32.xlu0 %v779, 8
      %v903 = vpop.permute.xlu0 %902
      %904 = vrot.lane.b32.xlu0 %v793, 8
      %v905 = vpop.permute.xlu0 %904
      %906 = vrot.lane.b32.xlu0 %v807, 8
      %v907 = vpop.permute.xlu0 %906
      %908 = vrot.lane.b32.xlu0 %v821, 8
      %v909 = vpop.permute.xlu0 %908
      %910 = vrot.lane.b32.xlu0 %v835, 8
      %v911 = vpop.permute.xlu0 %910
      %912 = vrot.lane.b32.xlu0 %v849, 8
      %v913 = vpop.permute.xlu0 %912
      %vm946 = vcmask 126016
      %947 = vst.msk [vmem:[#allocation2] sm:$0xf] %vm946, %v851
      %948 = vst.msk [vmem:[#allocation2 + $0x4] sm:$0xf] %vm946, %v853
      %949 = vst.msk [vmem:[#allocation2 + $0x8] sm:$0xf] %vm946, %v855
      %950 = vst.msk [vmem:[#allocation2 + $0xc] sm:$0xf] %vm946, %v857
      %951 = vst.msk [vmem:[#allocation2 + $0x10] sm:$0xf] %vm946, %v859
      %952 = vst.msk [vmem:[#allocation2 + $0x14] sm:$0xf] %vm946, %v861
      %953 = vst.msk [vmem:[#allocation2 + $0x18] sm:$0xf] %vm946, %v863
      %954 = vst.msk [vmem:[#allocation2 + $0x1c] sm:$0xf] %vm946, %v865
      %955 = vst.msk [vmem:[#allocation2 + $0x20] sm:$0xf] %vm946, %v867
      %956 = vst.msk [vmem:[#allocation2 + $0x24] sm:$0xf] %vm946, %v869
      %957 = vst.msk [vmem:[#allocation2 + $0x28] sm:$0xf] %vm946, %v871
      %958 = vst.msk [vmem:[#allocation2 + $0x2c] sm:$0xf] %vm946, %v873
      %959 = vst.msk [vmem:[#allocation2 + $0x30] sm:$0xf] %vm946, %v875
      %960 = vst.msk [vmem:[#allocation2 + $0x34] sm:$0xf] %vm946, %v877
      %961 = vst.msk [vmem:[#allocation2 + $0x38] sm:$0xf] %vm946, %v879
      %962 = vst.msk [vmem:[#allocation2 + $0x3c] sm:$0xf] %vm946, %v881
      %963 = vst.msk [vmem:[#allocation2 + $0x40] sm:$0xf] %vm946, %v883
      %964 = vst.msk [vmem:[#allocation2 + $0x44] sm:$0xf] %vm946, %v885
      %965 = vst.msk [vmem:[#allocation2 + $0x48] sm:$0xf] %vm946, %v887
      %966 = vst.msk [vmem:[#allocation2 + $0x4c] sm:$0xf] %vm946, %v889
      %967 = vst.msk [vmem:[#allocation2 + $0x50] sm:$0xf] %vm946, %v891
      %968 = vst.msk [vmem:[#allocation2 + $0x54] sm:$0xf] %vm946, %v893
      %969 = vst.msk [vmem:[#allocation2 + $0x58] sm:$0xf] %vm946, %v895
      %970 = vst.msk [vmem:[#allocation2 + $0x5c] sm:$0xf] %vm946, %v897
      %971 = vst.msk [vmem:[#allocation2 + $0x60] sm:$0xf] %vm946, %v899
      %972 = vst.msk [vmem:[#allocation2 + $0x64] sm:$0xf] %vm946, %v901
      %973 = vst.msk [vmem:[#allocation2 + $0x68] sm:$0xf] %vm946, %v903
      %974 = vst.msk [vmem:[#allocation2 + $0x6c] sm:$0xf] %vm946, %v905
      %975 = vst.msk [vmem:[#allocation2 + $0x70] sm:$0xf] %vm946, %v907
      %976 = vst.msk [vmem:[#allocation2 + $0x74] sm:$0xf] %vm946, %v909
      %977 = vst.msk [vmem:[#allocation2 + $0x78] sm:$0xf] %vm946, %v911
      %978 = vst.msk [vmem:[#allocation2 + $0x7c] sm:$0xf] %vm946, %v913
      %vm1043 = vcmask 1042432
      %vm1044 = vcmask 1046532
      %vm1045 = vmor %vm1043, %vm1044
      %v1046 = vrot.slane %v286, 5
      %v1047 = vrot.slane %v1046, 4
      %v1048 = vrot.slane %v287, 5
      %v1049 = vsel %vm1045, %v1047, %v1048
      %v1050 = vrot.slane %v288, 5
      %v1051 = vrot.slane %v1050, 4
      %v1052 = vrot.slane %v289, 5
      %v1053 = vsel %vm1045, %v1051, %v1052
      %v1054 = vrot.slane %v290, 5
      %v1055 = vrot.slane %v1054, 4
      %v1056 = vrot.slane %v291, 5
      %v1057 = vsel %vm1045, %v1055, %v1056
      %v1058 = vrot.slane %v292, 5
      %v1059 = vrot.slane %v1058, 4
      %v1060 = vrot.slane %v293, 5
      %v1061 = vsel %vm1045, %v1059, %v1060
      %v1062 = vrot.slane %v294, 5
      %v1063 = vrot.slane %v1062, 4
      %v1064 = vrot.slane %v295, 5
      %v1065 = vsel %vm1045, %v1063, %v1064
      %v1066 = vrot.slane %v296, 5
      %v1067 = vrot.slane %v1066, 4
      %v1068 = vrot.slane %v297, 5
      %v1069 = vsel %vm1045, %v1067, %v1068
      %v1070 = vrot.slane %v298, 5
      %v1071 = vrot.slane %v1070, 4
      %v1072 = vrot.slane %v299, 5
      %v1073 = vsel %vm1045, %v1071, %v1072
      %v1074 = vrot.slane %v300, 5
      %v1075 = vrot.slane %v1074, 4
      %v1076 = vrot.slane %v301, 5
      %v1077 = vsel %vm1045, %v1075, %v1076
      %v1078 = vrot.slane %v306, 5
      %v1079 = vrot.slane %v1078, 4
      %v1080 = vrot.slane %v307, 5
      %v1081 = vsel %vm1045, %v1079, %v1080
      %v1082 = vrot.slane %v308, 5
      %v1083 = vrot.slane %v1082, 4
      %v1084 = vrot.slane %v309, 5
      %v1085 = vsel %vm1045, %v1083, %v1084
      %v1086 = vrot.slane %v310, 5
      %v1087 = vrot.slane %v1086, 4
      %v1088 = vrot.slane %v311, 5
      %v1089 = vsel %vm1045, %v1087, %v1088
      %v1090 = vrot.slane %v312, 5
      %v1091 = vrot.slane %v1090, 4
      %v1092 = vrot.slane %v313, 5
      %v1093 = vsel %vm1045, %v1091, %v1092
      %v1094 = vrot.slane %v314, 5
      %v1095 = vrot.slane %v1094, 4
      %v1096 = vrot.slane %v315, 5
      %v1097 = vsel %vm1045, %v1095, %v1096
      %v1098 = vrot.slane %v316, 5
      %v1099 = vrot.slane %v1098, 4
      %v1100 = vrot.slane %v317, 5
      %v1101 = vsel %vm1045, %v1099, %v1100
      %v1102 = vrot.slane %v318, 5
      %v1103 = vrot.slane %v1102, 4
      %v1104 = vrot.slane %v319, 5
      %v1105 = vsel %vm1045, %v1103, %v1104
      %v1106 = vrot.slane %v320, 5
      %v1107 = vrot.slane %v1106, 4
      %v1108 = vrot.slane %v321, 5
      %v1109 = vsel %vm1045, %v1107, %v1108
      %v1110 = vrot.slane %v326, 5
      %v1111 = vrot.slane %v1110, 4
      %v1112 = vrot.slane %v327, 5
      %v1113 = vsel %vm1045, %v1111, %v1112
      %v1114 = vrot.slane %v328, 5
      %v1115 = vrot.slane %v1114, 4
      %v1116 = vrot.slane %v329, 5
      %v1117 = vsel %vm1045, %v1115, %v1116
      %v1118 = vrot.slane %v330, 5
      %v1119 = vrot.slane %v1118, 4
      %v1120 = vrot.slane %v331, 5
      %v1121 = vsel %vm1045, %v1119, %v1120
      %v1122 = vrot.slane %v332, 5
      %v1123 = vrot.slane %v1122, 4
      %v1124 = vrot.slane %v333, 5
      %v1125 = vsel %vm1045, %v1123, %v1124
      %v1126 = vrot.slane %v334, 5
      %v1127 = vrot.slane %v1126, 4
      %v1128 = vrot.slane %v335, 5
      %v1129 = vsel %vm1045, %v1127, %v1128
      %v1130 = vrot.slane %v336, 5
      %v1131 = vrot.slane %v1130, 4
      %v1132 = vrot.slane %v337, 5
      %v1133 = vsel %vm1045, %v1131, %v1132
      %v1134 = vrot.slane %v338, 5
      %v1135 = vrot.slane %v1134, 4
      %v1136 = vrot.slane %v339, 5
      %v1137 = vsel %vm1045, %v1135, %v1136
      %v1138 = vrot.slane %v340, 5
      %v1139 = vrot.slane %v1138, 4
      %v1140 = vrot.slane %v341, 5
      %v1141 = vsel %vm1045, %v1139, %v1140
      %v1142 = vrot.slane %v346, 5
      %v1143 = vrot.slane %v1142, 4
      %v1144 = vrot.slane %v347, 5
      %v1145 = vsel %vm1045, %v1143, %v1144
      %v1146 = vrot.slane %v348, 5
      %v1147 = vrot.slane %v1146, 4
      %v1148 = vrot.slane %v349, 5
      %v1149 = vsel %vm1045, %v1147, %v1148
      %v1150 = vrot.slane %v350, 5
      %v1151 = vrot.slane %v1150, 4
      %v1152 = vrot.slane %v351, 5
      %v1153 = vsel %vm1045, %v1151, %v1152
      %v1154 = vrot.slane %v352, 5
      %v1155 = vrot.slane %v1154, 4
      %v1156 = vrot.slane %v353, 5
      %v1157 = vsel %vm1045, %v1155, %v1156
      %v1158 = vrot.slane %v354, 5
      %v1159 = vrot.slane %v1158, 4
      %v1160 = vrot.slane %v355, 5
      %v1161 = vsel %vm1045, %v1159, %v1160
      %v1162 = vrot.slane %v356, 5
      %v1163 = vrot.slane %v1162, 4
      %v1164 = vrot.slane %v357, 5
      %v1165 = vsel %vm1045, %v1163, %v1164
      %v1166 = vrot.slane %v358, 5
      %v1167 = vrot.slane %v1166, 4
      %v1168 = vrot.slane %v359, 5
      %v1169 = vsel %vm1045, %v1167, %v1168
      %v1170 = vrot.slane %v360, 5
      %v1171 = vrot.slane %v1170, 4
      %v1172 = vrot.slane %v361, 5
      %v1173 = vsel %vm1045, %v1171, %v1172
      %1174 = vrot.lane.b32.xlu0 %v1049, 16
      %v1175 = vpop.permute.xlu0 %1174
      %1176 = vrot.lane.b32.xlu0 %v1053, 16
      %v1177 = vpop.permute.xlu0 %1176
      %1178 = vrot.lane.b32.xlu0 %v1057, 16
      %v1179 = vpop.permute.xlu0 %1178
      %1180 = vrot.lane.b32.xlu0 %v1061, 16
      %v1181 = vpop.permute.xlu0 %1180
      %1182 = vrot.lane.b32.xlu0 %v1065, 16
      %v1183 = vpop.permute.xlu0 %1182
      %1184 = vrot.lane.b32.xlu0 %v1069, 16
      %v1185 = vpop.permute.xlu0 %1184
      %1186 = vrot.lane.b32.xlu0 %v1073, 16
      %v1187 = vpop.permute.xlu0 %1186
      %1188 = vrot.lane.b32.xlu0 %v1077, 16
      %v1189 = vpop.permute.xlu0 %1188
      %1190 = vrot.lane.b32.xlu0 %v1081, 16
      %v1191 = vpop.permute.xlu0 %1190
      %1192 = vrot.lane.b32.xlu0 %v1085, 16
      %v1193 = vpop.permute.xlu0 %1192
      %1194 = vrot.lane.b32.xlu0 %v1089, 16
      %v1195 = vpop.permute.xlu0 %1194
      %1196 = vrot.lane.b32.xlu0 %v1093, 16
      %v1197 = vpop.permute.xlu0 %1196
      %1198 = vrot.lane.b32.xlu0 %v1097, 16
      %v1199 = vpop.permute.xlu0 %1198
      %1200 = vrot.lane.b32.xlu0 %v1101, 16
      %v1201 = vpop.permute.xlu0 %1200
      %1202 = vrot.lane.b32.xlu0 %v1105, 16
      %v1203 = vpop.permute.xlu0 %1202
      %1204 = vrot.lane.b32.xlu0 %v1109, 16
      %v1205 = vpop.permute.xlu0 %1204
      %1206 = vrot.lane.b32.xlu0 %v1113, 16
      %v1207 = vpop.permute.xlu0 %1206
      %1208 = vrot.lane.b32.xlu0 %v1117, 16
      %v1209 = vpop.permute.xlu0 %1208
      %1210 = vrot.lane.b32.xlu0 %v1121, 16
      %v1211 = vpop.permute.xlu0 %1210
      %1212 = vrot.lane.b32.xlu0 %v1125, 16
      %v1213 = vpop.permute.xlu0 %1212
      %1214 = vrot.lane.b32.xlu0 %v1129, 16
      %v1215 = vpop.permute.xlu0 %1214
      %1216 = vrot.lane.b32.xlu0 %v1133, 16
      %v1217 = vpop.permute.xlu0 %1216
      %1218 = vrot.lane.b32.xlu0 %v1137, 16
      %v1219 = vpop.permute.xlu0 %1218
      %1220 = vrot.lane.b32.xlu0 %v1141, 16
      %v1221 = vpop.permute.xlu0 %1220
      %1222 = vrot.lane.b32.xlu0 %v1145, 16
      %v1223 = vpop.permute.xlu0 %1222
      %1224 = vrot.lane.b32.xlu0 %v1149, 16
      %v1225 = vpop.permute.xlu0 %1224
      %1226 = vrot.lane.b32.xlu0 %v1153, 16
      %v1227 = vpop.permute.xlu0 %1226
      %1228 = vrot.lane.b32.xlu0 %v1157, 16
      %v1229 = vpop.permute.xlu0 %1228
      %1230 = vrot.lane.b32.xlu0 %v1161, 16
      %v1231 = vpop.permute.xlu0 %1230
      %1232 = vrot.lane.b32.xlu0 %v1165, 16
      %v1233 = vpop.permute.xlu0 %1232
      %1234 = vrot.lane.b32.xlu0 %v1169, 16
      %v1235 = vpop.permute.xlu0 %1234
      %1236 = vrot.lane.b32.xlu0 %v1173, 16
      %v1237 = vpop.permute.xlu0 %1236
      %vm1270 = vcmask 191616
      %1271 = vst.msk [vmem:[#allocation2] sm:$0xf] %vm1270, %v1175
      %1272 = vst.msk [vmem:[#allocation2 + $0x4] sm:$0xf] %vm1270, %v1177
      %1273 = vst.msk [vmem:[#allocation2 + $0x8] sm:$0xf] %vm1270, %v1179
      %1274 = vst.msk [vmem:[#allocation2 + $0xc] sm:$0xf] %vm1270, %v1181
      %1275 = vst.msk [vmem:[#allocation2 + $0x10] sm:$0xf] %vm1270, %v1183
      %1276 = vst.msk [vmem:[#allocation2 + $0x14] sm:$0xf] %vm1270, %v1185
      %1277 = vst.msk [vmem:[#allocation2 + $0x18] sm:$0xf] %vm1270, %v1187
      %1278 = vst.msk [vmem:[#allocation2 + $0x1c] sm:$0xf] %vm1270, %v1189
      %1279 = vst.msk [vmem:[#allocation2 + $0x20] sm:$0xf] %vm1270, %v1191
      %1280 = vst.msk [vmem:[#allocation2 + $0x24] sm:$0xf] %vm1270, %v1193
      %1281 = vst.msk [vmem:[#allocation2 + $0x28] sm:$0xf] %vm1270, %v1195
      %1282 = vst.msk [vmem:[#allocation2 + $0x2c] sm:$0xf] %vm1270, %v1197
      %1283 = vst.msk [vmem:[#allocation2 + $0x30] sm:$0xf] %vm1270, %v1199
      %1284 = vst.msk [vmem:[#allocation2 + $0x34] sm:$0xf] %vm1270, %v1201
      %1285 = vst.msk [vmem:[#allocation2 + $0x38] sm:$0xf] %vm1270, %v1203
      %1286 = vst.msk [vmem:[#allocation2 + $0x3c] sm:$0xf] %vm1270, %v1205
      %1287 = vst.msk [vmem:[#allocation2 + $0x40] sm:$0xf] %vm1270, %v1207
      %1288 = vst.msk [vmem:[#allocation2 + $0x44] sm:$0xf] %vm1270, %v1209
      %1289 = vst.msk [vmem:[#allocation2 + $0x48] sm:$0xf] %vm1270, %v1211
      %1290 = vst.msk [vmem:[#allocation2 + $0x4c] sm:$0xf] %vm1270, %v1213
      %1291 = vst.msk [vmem:[#allocation2 + $0x50] sm:$0xf] %vm1270, %v1215
      %1292 = vst.msk [vmem:[#allocation2 + $0x54] sm:$0xf] %vm1270, %v1217
      %1293 = vst.msk [vmem:[#allocation2 + $0x58] sm:$0xf] %vm1270, %v1219
      %1294 = vst.msk [vmem:[#allocation2 + $0x5c] sm:$0xf] %vm1270, %v1221
      %1295 = vst.msk [vmem:[#allocation2 + $0x60] sm:$0xf] %vm1270, %v1223
      %1296 = vst.msk [vmem:[#allocation2 + $0x64] sm:$0xf] %vm1270, %v1225
      %1297 = vst.msk [vmem:[#allocation2 + $0x68] sm:$0xf] %vm1270, %v1227
      %1298 = vst.msk [vmem:[#allocation2 + $0x6c] sm:$0xf] %vm1270, %v1229
      %1299 = vst.msk [vmem:[#allocation2 + $0x70] sm:$0xf] %vm1270, %v1231
      %1300 = vst.msk [vmem:[#allocation2 + $0x74] sm:$0xf] %vm1270, %v1233
      %1301 = vst.msk [vmem:[#allocation2 + $0x78] sm:$0xf] %vm1270, %v1235
      %1302 = vst.msk [vmem:[#allocation2 + $0x7c] sm:$0xf] %vm1270, %v1237
      %1307 = vrot.lane.b32.xlu0 %v288, 24
      %v1308 = vpop.permute.xlu0 %1307
      %1309 = vrot.lane.b32.xlu0 %v290, 24
      %v1310 = vpop.permute.xlu0 %1309
      %1311 = vrot.lane.b32.xlu0 %v292, 24
      %v1312 = vpop.permute.xlu0 %1311
      %1313 = vrot.lane.b32.xlu0 %v294, 24
      %v1314 = vpop.permute.xlu0 %1313
      %1315 = vrot.lane.b32.xlu0 %v296, 24
      %v1316 = vpop.permute.xlu0 %1315
      %1317 = vrot.lane.b32.xlu0 %v298, 24
      %v1318 = vpop.permute.xlu0 %1317
      %1319 = vrot.lane.b32.xlu0 %v300, 24
      %v1320 = vpop.permute.xlu0 %1319
      %1321 = vrot.lane.b32.xlu0 %v302, 24
      %v1322 = vpop.permute.xlu0 %1321
      %1323 = vrot.lane.b32.xlu0 %v308, 24
      %v1324 = vpop.permute.xlu0 %1323
      %1325 = vrot.lane.b32.xlu0 %v310, 24
      %v1326 = vpop.permute.xlu0 %1325
      %1327 = vrot.lane.b32.xlu0 %v312, 24
      %v1328 = vpop.permute.xlu0 %1327
      %1329 = vrot.lane.b32.xlu0 %v314, 24
      %v1330 = vpop.permute.xlu0 %1329
      %1331 = vrot.lane.b32.xlu0 %v316, 24
      %v1332 = vpop.permute.xlu0 %1331
      %1333 = vrot.lane.b32.xlu0 %v318, 24
      %v1334 = vpop.permute.xlu0 %1333
      %1335 = vrot.lane.b32.xlu0 %v320, 24
      %v1336 = vpop.permute.xlu0 %1335
      %1337 = vrot.lane.b32.xlu0 %v322, 24
      %v1338 = vpop.permute.xlu0 %1337
      %1339 = vrot.lane.b32.xlu0 %v328, 24
      %v1340 = vpop.permute.xlu0 %1339
      %1341 = vrot.lane.b32.xlu0 %v330, 24
      %v1342 = vpop.permute.xlu0 %1341
      %1343 = vrot.lane.b32.xlu0 %v332, 24
      %v1344 = vpop.permute.xlu0 %1343
      %1345 = vrot.lane.b32.xlu0 %v334, 24
      %v1346 = vpop.permute.xlu0 %1345
      %1347 = vrot.lane.b32.xlu0 %v336, 24
      %v1348 = vpop.permute.xlu0 %1347
      %1349 = vrot.lane.b32.xlu0 %v338, 24
      %v1350 = vpop.permute.xlu0 %1349
      %1351 = vrot.lane.b32.xlu0 %v340, 24
      %v1352 = vpop.permute.xlu0 %1351
      %1353 = vrot.lane.b32.xlu0 %v342, 24
      %v1354 = vpop.permute.xlu0 %1353
      %1355 = vrot.lane.b32.xlu0 %v348, 24
      %v1356 = vpop.permute.xlu0 %1355
      %1357 = vrot.lane.b32.xlu0 %v350, 24
      %v1358 = vpop.permute.xlu0 %1357
      %1359 = vrot.lane.b32.xlu0 %v352, 24
      %v1360 = vpop.permute.xlu0 %1359
      %1361 = vrot.lane.b32.xlu0 %v354, 24
      %v1362 = vpop.permute.xlu0 %1361
      %1363 = vrot.lane.b32.xlu0 %v356, 24
      %v1364 = vpop.permute.xlu0 %1363
      %1365 = vrot.lane.b32.xlu0 %v358, 24
      %v1366 = vpop.permute.xlu0 %1365
      %1367 = vrot.lane.b32.xlu0 %v360, 24
      %v1368 = vpop.permute.xlu0 %1367
      %1369 = vrot.lane.b32.xlu0 %v362, 24
      %v1370 = vpop.permute.xlu0 %1369
      %vm1403 = vcmask 257216
      %1404 = vst.msk [vmem:[#allocation2] sm:$0xf] %vm1403, %v1308
      %1405 = vst.msk [vmem:[#allocation2 + $0x4] sm:$0xf] %vm1403, %v1310
      %1406 = vst.msk [vmem:[#allocation2 + $0x8] sm:$0xf] %vm1403, %v1312
      %1407 = vst.msk [vmem:[#allocation2 + $0xc] sm:$0xf] %vm1403, %v1314
      %1408 = vst.msk [vmem:[#allocation2 + $0x10] sm:$0xf] %vm1403, %v1316
      %1409 = vst.msk [vmem:[#allocation2 + $0x14] sm:$0xf] %vm1403, %v1318
      %1410 = vst.msk [vmem:[#allocation2 + $0x18] sm:$0xf] %vm1403, %v1320
      %1411 = vst.msk [vmem:[#allocation2 + $0x1c] sm:$0xf] %vm1403, %v1322
      %1412 = vst.msk [vmem:[#allocation2 + $0x20] sm:$0xf] %vm1403, %v1324
      %1413 = vst.msk [vmem:[#allocation2 + $0x24] sm:$0xf] %vm1403, %v1326
      %1414 = vst.msk [vmem:[#allocation2 + $0x28] sm:$0xf] %vm1403, %v1328
      %1415 = vst.msk [vmem:[#allocation2 + $0x2c] sm:$0xf] %vm1403, %v1330
      %1416 = vst.msk [vmem:[#allocation2 + $0x30] sm:$0xf] %vm1403, %v1332
      %1417 = vst.msk [vmem:[#allocation2 + $0x34] sm:$0xf] %vm1403, %v1334
      %1418 = vst.msk [vmem:[#allocation2 + $0x38] sm:$0xf] %vm1403, %v1336
      %1419 = vst.msk [vmem:[#allocation2 + $0x3c] sm:$0xf] %vm1403, %v1338
      %1420 = vst.msk [vmem:[#allocation2 + $0x40] sm:$0xf] %vm1403, %v1340
      %1421 = vst.msk [vmem:[#allocation2 + $0x44] sm:$0xf] %vm1403, %v1342
      %1422 = vst.msk [vmem:[#allocation2 + $0x48] sm:$0xf] %vm1403, %v1344
      %1423 = vst.msk [vmem:[#allocation2 + $0x4c] sm:$0xf] %vm1403, %v1346
      %1424 = vst.msk [vmem:[#allocation2 + $0x50] sm:$0xf] %vm1403, %v1348
      %1425 = vst.msk [vmem:[#allocation2 + $0x54] sm:$0xf] %vm1403, %v1350
      %1426 = vst.msk [vmem:[#allocation2 + $0x58] sm:$0xf] %vm1403, %v1352
      %1427 = vst.msk [vmem:[#allocation2 + $0x5c] sm:$0xf] %vm1403, %v1354
      %1428 = vst.msk [vmem:[#allocation2 + $0x60] sm:$0xf] %vm1403, %v1356
      %1429 = vst.msk [vmem:[#allocation2 + $0x64] sm:$0xf] %vm1403, %v1358
      %1430 = vst.msk [vmem:[#allocation2 + $0x68] sm:$0xf] %vm1403, %v1360
      %1431 = vst.msk [vmem:[#allocation2 + $0x6c] sm:$0xf] %vm1403, %v1362
      %1432 = vst.msk [vmem:[#allocation2 + $0x70] sm:$0xf] %vm1403, %v1364
      %1433 = vst.msk [vmem:[#allocation2 + $0x74] sm:$0xf] %vm1403, %v1366
      %1434 = vst.msk [vmem:[#allocation2 + $0x78] sm:$0xf] %vm1403, %v1368
      %1435 = vst.msk [vmem:[#allocation2 + $0x7c] sm:$0xf] %vm1403, %v1370
      %v1437 = vshrl.u32 %v302, 16
      %v1439 = vrot.slane %v1437, 4
      %v1440 = vshll.u32 %v302, 16
      %v1442 = vrot.slane %v1440, 5
      %v1443 = vor.u32 %v1439, %v1442
      %v1444 = vrot.slane %v1443, 4
      %v1446 = vshll.u32 %v303, 16
      %v1448 = vrot.slane %v1446, 5
      %v1449 = vsel %vm401, %v1444, %v1448
      %v1451 = vshrl.u32 %v322, 16
      %v1453 = vrot.slane %v1451, 4
      %v1454 = vshll.u32 %v322, 16
      %v1456 = vrot.slane %v1454, 5
      %v1457 = vor.u32 %v1453, %v1456
      %v1458 = vrot.slane %v1457, 4
      %v1460 = vshll.u32 %v323, 16
      %v1462 = vrot.slane %v1460, 5
      %v1463 = vsel %vm401, %v1458, %v1462
      %v1465 = vshrl.u32 %v342, 16
      %v1467 = vrot.slane %v1465, 4
      %v1468 = vshll.u32 %v342, 16
      %v1470 = vrot.slane %v1468, 5
      %v1471 = vor.u32 %v1467, %v1470
      %v1472 = vrot.slane %v1471, 4
      %v1474 = vshll.u32 %v343, 16
      %v1476 = vrot.slane %v1474, 5
      %v1477 = vsel %vm401, %v1472, %v1476
      %v1479 = vshrl.u32 %v362, 16
      %v1481 = vrot.slane %v1479, 4
      %v1482 = vshll.u32 %v362, 16
      %v1484 = vrot.slane %v1482, 5
      %v1485 = vor.u32 %v1481, %v1484
      %v1486 = vrot.slane %v1485, 4
      %v1488 = vshll.u32 %v363, 16
      %v1490 = vrot.slane %v1488, 5
      %v1491 = vsel %vm401, %v1486, %v1490
      %1492 = vrot.lane.b32.xlu0 %v429, 32
      %v1493 = vpop.permute.xlu0 %1492
      %1494 = vrot.lane.b32.xlu0 %v443, 32
      %v1495 = vpop.permute.xlu0 %1494
      %1496 = vrot.lane.b32.xlu0 %v457, 32
      %v1497 = vpop.permute.xlu0 %1496
      %1498 = vrot.lane.b32.xlu0 %v471, 32
      %v1499 = vpop.permute.xlu0 %1498
      %1500 = vrot.lane.b32.xlu0 %v485, 32
      %v1501 = vpop.permute.xlu0 %1500
      %1502 = vrot.lane.b32.xlu0 %v499, 32
      %v1503 = vpop.permute.xlu0 %1502
      %1504 = vrot.lane.b32.xlu0 %v513, 32
      %v1505 = vpop.permute.xlu0 %1504
      %1506 = vrot.lane.b32.xlu0 %v1449, 32
      %v1507 = vpop.permute.xlu0 %1506
      %1508 = vrot.lane.b32.xlu0 %v541, 32
      %v1509 = vpop.permute.xlu0 %1508
      %1510 = vrot.lane.b32.xlu0 %v555, 32
      %v1511 = vpop.permute.xlu0 %1510
      %1512 = vrot.lane.b32.xlu0 %v569, 32
      %v1513 = vpop.permute.xlu0 %1512
      %1514 = vrot.lane.b32.xlu0 %v583, 32
      %v1515 = vpop.permute.xlu0 %1514
      %1516 = vrot.lane.b32.xlu0 %v597, 32
      %v1517 = vpop.permute.xlu0 %1516
      %1518 = vrot.lane.b32.xlu0 %v611, 32
      %v1519 = vpop.permute.xlu0 %1518
      %1520 = vrot.lane.b32.xlu0 %v625, 32
      %v1521 = vpop.permute.xlu0 %1520
      %1522 = vrot.lane.b32.xlu0 %v1463, 32
      %v1523 = vpop.permute.xlu0 %1522
      %1524 = vrot.lane.b32.xlu0 %v653, 32
      %v1525 = vpop.permute.xlu0 %1524
      %1526 = vrot.lane.b32.xlu0 %v667, 32
      %v1527 = vpop.permute.xlu0 %1526
      %1528 = vrot.lane.b32.xlu0 %v681, 32
      %v1529 = vpop.permute.xlu0 %1528
      %1530 = vrot.lane.b32.xlu0 %v695, 32
      %v1531 = vpop.permute.xlu0 %1530
      %1532 = vrot.lane.b32.xlu0 %v709, 32
      %v1533 = vpop.permute.xlu0 %1532
      %1534 = vrot.lane.b32.xlu0 %v723, 32
      %v1535 = vpop.permute.xlu0 %1534
      %1536 = vrot.lane.b32.xlu0 %v737, 32
      %v1537 = vpop.permute.xlu0 %1536
      %1538 = vrot.lane.b32.xlu0 %v1477, 32
      %v1539 = vpop.permute.xlu0 %1538
      %1540 = vrot.lane.b32.xlu0 %v765, 32
      %v1541 = vpop.permute.xlu0 %1540
      %1542 = vrot.lane.b32.xlu0 %v779, 32
      %v1543 = vpop.permute.xlu0 %1542
      %1544 = vrot.lane.b32.xlu0 %v793, 32
      %v1545 = vpop.permute.xlu0 %1544
      %1546 = vrot.lane.b32.xlu0 %v807, 32
      %v1547 = vpop.permute.xlu0 %1546
      %1548 = vrot.lane.b32.xlu0 %v821, 32
      %v1549 = vpop.permute.xlu0 %1548
      %1550 = vrot.lane.b32.xlu0 %v835, 32
      %v1551 = vpop.permute.xlu0 %1550
      %1552 = vrot.lane.b32.xlu0 %v849, 32
      %v1553 = vpop.permute.xlu0 %1552
      %1554 = vrot.lane.b32.xlu0 %v1491, 32
      %v1555 = vpop.permute.xlu0 %1554
      %vm1588 = vcmask 322816
      %1589 = vst.msk [vmem:[#allocation2] sm:$0xf] %vm1588, %v1493
      %1590 = vst.msk [vmem:[#allocation2 + $0x4] sm:$0xf] %vm1588, %v1495
      %1591 = vst.msk [vmem:[#allocation2 + $0x8] sm:$0xf] %vm1588, %v1497
      %1592 = vst.msk [vmem:[#allocation2 + $0xc] sm:$0xf] %vm1588, %v1499
      %1593 = vst.msk [vmem:[#allocation2 + $0x10] sm:$0xf] %vm1588, %v1501
      %1594 = vst.msk [vmem:[#allocation2 + $0x14] sm:$0xf] %vm1588, %v1503
      %1595 = vst.msk [vmem:[#allocation2 + $0x18] sm:$0xf] %vm1588, %v1505
      %1596 = vst.msk [vmem:[#allocation2 + $0x1c] sm:$0xf] %vm1588, %v1507
      %1597 = vst.msk [vmem:[#allocation2 + $0x20] sm:$0xf] %vm1588, %v1509
      %1598 = vst.msk [vmem:[#allocation2 + $0x24] sm:$0xf] %vm1588, %v1511
      %1599 = vst.msk [vmem:[#allocation2 + $0x28] sm:$0xf] %vm1588, %v1513
      %1600 = vst.msk [vmem:[#allocation2 + $0x2c] sm:$0xf] %vm1588, %v1515
      %1601 = vst.msk [vmem:[#allocation2 + $0x30] sm:$0xf] %vm1588, %v1517
      %1602 = vst.msk [vmem:[#allocation2 + $0x34] sm:$0xf] %vm1588, %v1519
      %1603 = vst.msk [vmem:[#allocation2 + $0x38] sm:$0xf] %vm1588, %v1521
      %1604 = vst.msk [vmem:[#allocation2 + $0x3c] sm:$0xf] %vm1588, %v1523
      %1605 = vst.msk [vmem:[#allocation2 + $0x40] sm:$0xf] %vm1588, %v1525
      %1606 = vst.msk [vmem:[#allocation2 + $0x44] sm:$0xf] %vm1588, %v1527
      %1607 = vst.msk [vmem:[#allocation2 + $0x48] sm:$0xf] %vm1588, %v1529
      %1608 = vst.msk [vmem:[#allocation2 + $0x4c] sm:$0xf] %vm1588, %v1531
      %1609 = vst.msk [vmem:[#allocation2 + $0x50] sm:$0xf] %vm1588, %v1533
      %1610 = vst.msk [vmem:[#allocation2 + $0x54] sm:$0xf] %vm1588, %v1535
      %1611 = vst.msk [vmem:[#allocation2 + $0x58] sm:$0xf] %vm1588, %v1537
      %1612 = vst.msk [vmem:[#allocation2 + $0x5c] sm:$0xf] %vm1588, %v1539
      %1613 = vst.msk [vmem:[#allocation2 + $0x60] sm:$0xf] %vm1588, %v1541
      %1614 = vst.msk [vmem:[#allocation2 + $0x64] sm:$0xf] %vm1588, %v1543
      %1615 = vst.msk [vmem:[#allocation2 + $0x68] sm:$0xf] %vm1588, %v1545
      %1616 = vst.msk [vmem:[#allocation2 + $0x6c] sm:$0xf] %vm1588, %v1547
      %1617 = vst.msk [vmem:[#allocation2 + $0x70] sm:$0xf] %vm1588, %v1549
      %1618 = vst.msk [vmem:[#allocation2 + $0x74] sm:$0xf] %vm1588, %v1551
      %1619 = vst.msk [vmem:[#allocation2 + $0x78] sm:$0xf] %vm1588, %v1553
      %1620 = vst.msk [vmem:[#allocation2 + $0x7c] sm:$0xf] %vm1588, %v1555
      %v1625 = vrot.slane %v302, 5
      %v1626 = vrot.slane %v1625, 4
      %v1627 = vrot.slane %v303, 5
      %v1628 = vsel %vm1045, %v1626, %v1627
      %v1629 = vrot.slane %v322, 5
      %v1630 = vrot.slane %v1629, 4
      %v1631 = vrot.slane %v323, 5
      %v1632 = vsel %vm1045, %v1630, %v1631
      %v1633 = vrot.slane %v342, 5
      %v1634 = vrot.slane %v1633, 4
      %v1635 = vrot.slane %v343, 5
      %v1636 = vsel %vm1045, %v1634, %v1635
      %v1637 = vrot.slane %v362, 5
      %v1638 = vrot.slane %v1637, 4
      %v1639 = vrot.slane %v363, 5
      %v1640 = vsel %vm1045, %v1638, %v1639
      %1641 = vrot.lane.b32.xlu0 %v1053, 40
      %v1642 = vpop.permute.xlu0 %1641
      %1643 = vrot.lane.b32.xlu0 %v1057, 40
      %v1644 = vpop.permute.xlu0 %1643
      %1645 = vrot.lane.b32.xlu0 %v1061, 40
      %v1646 = vpop.permute.xlu0 %1645
      %1647 = vrot.lane.b32.xlu0 %v1065, 40
      %v1648 = vpop.permute.xlu0 %1647
      %1649 = vrot.lane.b32.xlu0 %v1069, 40
      %v1650 = vpop.permute.xlu0 %1649
      %1651 = vrot.lane.b32.xlu0 %v1073, 40
      %v1652 = vpop.permute.xlu0 %1651
      %1653 = vrot.lane.b32.xlu0 %v1077, 40
      %v1654 = vpop.permute.xlu0 %1653
      %1655 = vrot.lane.b32.xlu0 %v1628, 40
      %v1656 = vpop.permute.xlu0 %1655
      %1657 = vrot.lane.b32.xlu0 %v1085, 40
      %v1658 = vpop.permute.xlu0 %1657
      %1659 = vrot.lane.b32.xlu0 %v1089, 40
      %v1660 = vpop.permute.xlu0 %1659
      %1661 = vrot.lane.b32.xlu0 %v1093, 40
      %v1662 = vpop.permute.xlu0 %1661
      %1663 = vrot.lane.b32.xlu0 %v1097, 40
      %v1664 = vpop.permute.xlu0 %1663
      %1665 = vrot.lane.b32.xlu0 %v1101, 40
      %v1666 = vpop.permute.xlu0 %1665
      %1667 = vrot.lane.b32.xlu0 %v1105, 40
      %v1668 = vpop.permute.xlu0 %1667
      %1669 = vrot.lane.b32.xlu0 %v1109, 40
      %v1670 = vpop.permute.xlu0 %1669
      %1671 = vrot.lane.b32.xlu0 %v1632, 40
      %v1672 = vpop.permute.xlu0 %1671
      %1673 = vrot.lane.b32.xlu0 %v1117, 40
      %v1674 = vpop.permute.xlu0 %1673
      %1675 = vrot.lane.b32.xlu0 %v1121, 40
      %v1676 = vpop.permute.xlu0 %1675
      %1677 = vrot.lane.b32.xlu0 %v1125, 40
      %v1678 = vpop.permute.xlu0 %1677
      %1679 = vrot.lane.b32.xlu0 %v1129, 40
      %v1680 = vpop.permute.xlu0 %1679
      %1681 = vrot.lane.b32.xlu0 %v1133, 40
      %v1682 = vpop.permute.xlu0 %1681
      %1683 = vrot.lane.b32.xlu0 %v1137, 40
      %v1684 = vpop.permute.xlu0 %1683
      %1685 = vrot.lane.b32.xlu0 %v1141, 40
      %v1686 = vpop.permute.xlu0 %1685
      %1687 = vrot.lane.b32.xlu0 %v1636, 40
      %v1688 = vpop.permute.xlu0 %1687
      %1689 = vrot.lane.b32.xlu0 %v1149, 40
      %v1690 = vpop.permute.xlu0 %1689
      %1691 = vrot.lane.b32.xlu0 %v1153, 40
      %v1692 = vpop.permute.xlu0 %1691
      %1693 = vrot.lane.b32.xlu0 %v1157, 40
      %v1694 = vpop.permute.xlu0 %1693
      %1695 = vrot.lane.b32.xlu0 %v1161, 40
      %v1696 = vpop.permute.xlu0 %1695
      %1697 = vrot.lane.b32.xlu0 %v1165, 40
      %v1698 = vpop.permute.xlu0 %1697
      %1699 = vrot.lane.b32.xlu0 %v1169, 40
      %v1700 = vpop.permute.xlu0 %1699
      %1701 = vrot.lane.b32.xlu0 %v1173, 40
      %v1702 = vpop.permute.xlu0 %1701
      %1703 = vrot.lane.b32.xlu0 %v1640, 40
      %v1704 = vpop.permute.xlu0 %1703
      %vm1737 = vcmask 388416
      %1738 = vst.msk [vmem:[#allocation2] sm:$0xf] %vm1737, %v1642
      %1739 = vst.msk [vmem:[#allocation2 + $0x4] sm:$0xf] %vm1737, %v1644
      %1740 = vst.msk [vmem:[#allocation2 + $0x8] sm:$0xf] %vm1737, %v1646
      %1741 = vst.msk [vmem:[#allocation2 + $0xc] sm:$0xf] %vm1737, %v1648
      %1742 = vst.msk [vmem:[#allocation2 + $0x10] sm:$0xf] %vm1737, %v1650
      %1743 = vst.msk [vmem:[#allocation2 + $0x14] sm:$0xf] %vm1737, %v1652
      %1744 = vst.msk [vmem:[#allocation2 + $0x18] sm:$0xf] %vm1737, %v1654
      %1745 = vst.msk [vmem:[#allocation2 + $0x1c] sm:$0xf] %vm1737, %v1656
      %1746 = vst.msk [vmem:[#allocation2 + $0x20] sm:$0xf] %vm1737, %v1658
      %1747 = vst.msk [vmem:[#allocation2 + $0x24] sm:$0xf] %vm1737, %v1660
      %1748 = vst.msk [vmem:[#allocation2 + $0x28] sm:$0xf] %vm1737, %v1662
      %1749 = vst.msk [vmem:[#allocation2 + $0x2c] sm:$0xf] %vm1737, %v1664
      %1750 = vst.msk [vmem:[#allocation2 + $0x30] sm:$0xf] %vm1737, %v1666
      %1751 = vst.msk [vmem:[#allocation2 + $0x34] sm:$0xf] %vm1737, %v1668
      %1752 = vst.msk [vmem:[#allocation2 + $0x38] sm:$0xf] %vm1737, %v1670
      %1753 = vst.msk [vmem:[#allocation2 + $0x3c] sm:$0xf] %vm1737, %v1672
      %1754 = vst.msk [vmem:[#allocation2 + $0x40] sm:$0xf] %vm1737, %v1674
      %1755 = vst.msk [vmem:[#allocation2 + $0x44] sm:$0xf] %vm1737, %v1676
      %1756 = vst.msk [vmem:[#allocation2 + $0x48] sm:$0xf] %vm1737, %v1678
      %1757 = vst.msk [vmem:[#allocation2 + $0x4c] sm:$0xf] %vm1737, %v1680
      %1758 = vst.msk [vmem:[#allocation2 + $0x50] sm:$0xf] %vm1737, %v1682
      %1759 = vst.msk [vmem:[#allocation2 + $0x54] sm:$0xf] %vm1737, %v1684
      %1760 = vst.msk [vmem:[#allocation2 + $0x58] sm:$0xf] %vm1737, %v1686
      %1761 = vst.msk [vmem:[#allocation2 + $0x5c] sm:$0xf] %vm1737, %v1688
      %1762 = vst.msk [vmem:[#allocation2 + $0x60] sm:$0xf] %vm1737, %v1690
      %1763 = vst.msk [vmem:[#allocation2 + $0x64] sm:$0xf] %vm1737, %v1692
      %1764 = vst.msk [vmem:[#allocation2 + $0x68] sm:$0xf] %vm1737, %v1694
      %1765 = vst.msk [vmem:[#allocation2 + $0x6c] sm:$0xf] %vm1737, %v1696
      %1766 = vst.msk [vmem:[#allocation2 + $0x70] sm:$0xf] %vm1737, %v1698
      %1767 = vst.msk [vmem:[#allocation2 + $0x74] sm:$0xf] %vm1737, %v1700
      %1768 = vst.msk [vmem:[#allocation2 + $0x78] sm:$0xf] %vm1737, %v1702
      %1769 = vst.msk [vmem:[#allocation2 + $0x7c] sm:$0xf] %vm1737, %v1704
      %1774 = vrot.lane.b32.xlu0 %v290, 48
      %v1775 = vpop.permute.xlu0 %1774
      %1776 = vrot.lane.b32.xlu0 %v292, 48
      %v1777 = vpop.permute.xlu0 %1776
      %1778 = vrot.lane.b32.xlu0 %v294, 48
      %v1779 = vpop.permute.xlu0 %1778
      %1780 = vrot.lane.b32.xlu0 %v296, 48
      %v1781 = vpop.permute.xlu0 %1780
      %1782 = vrot.lane.b32.xlu0 %v298, 48
      %v1783 = vpop.permute.xlu0 %1782
      %1784 = vrot.lane.b32.xlu0 %v300, 48
      %v1785 = vpop.permute.xlu0 %1784
      %1786 = vrot.lane.b32.xlu0 %v302, 48
      %v1787 = vpop.permute.xlu0 %1786
      %1788 = vrot.lane.b32.xlu0 %v304, 48
      %v1789 = vpop.permute.xlu0 %1788
      %1790 = vrot.lane.b32.xlu0 %v310, 48
      %v1791 = vpop.permute.xlu0 %1790
      %1792 = vrot.lane.b32.xlu0 %v312, 48
      %v1793 = vpop.permute.xlu0 %1792
      %1794 = vrot.lane.b32.xlu0 %v314, 48
      %v1795 = vpop.permute.xlu0 %1794
      %1796 = vrot.lane.b32.xlu0 %v316, 48
      %v1797 = vpop.permute.xlu0 %1796
      %1798 = vrot.lane.b32.xlu0 %v318, 48
      %v1799 = vpop.permute.xlu0 %1798
      %1800 = vrot.lane.b32.xlu0 %v320, 48
      %v1801 = vpop.permute.xlu0 %1800
      %1802 = vrot.lane.b32.xlu0 %v322, 48
      %v1803 = vpop.permute.xlu0 %1802
      %1804 = vrot.lane.b32.xlu0 %v324, 48
      %v1805 = vpop.permute.xlu0 %1804
      %1806 = vrot.lane.b32.xlu0 %v330, 48
      %v1807 = vpop.permute.xlu0 %1806
      %1808 = vrot.lane.b32.xlu0 %v332, 48
      %v1809 = vpop.permute.xlu0 %1808
      %1810 = vrot.lane.b32.xlu0 %v334, 48
      %v1811 = vpop.permute.xlu0 %1810
      %1812 = vrot.lane.b32.xlu0 %v336, 48
      %v1813 = vpop.permute.xlu0 %1812
      %1814 = vrot.lane.b32.xlu0 %v338, 48
      %v1815 = vpop.permute.xlu0 %1814
      %1816 = vrot.lane.b32.xlu0 %v340, 48
      %v1817 = vpop.permute.xlu0 %1816
      %1818 = vrot.lane.b32.xlu0 %v342, 48
      %v1819 = vpop.permute.xlu0 %1818
      %1820 = vrot.lane.b32.xlu0 %v344, 48
      %v1821 = vpop.permute.xlu0 %1820
      %1822 = vrot.lane.b32.xlu0 %v350, 48
      %v1823 = vpop.permute.xlu0 %1822
      %1824 = vrot.lane.b32.xlu0 %v352, 48
      %v1825 = vpop.permute.xlu0 %1824
      %1826 = vrot.lane.b32.xlu0 %v354, 48
      %v1827 = vpop.permute.xlu0 %1826
      %1828 = vrot.lane.b32.xlu0 %v356, 48
      %v1829 = vpop.permute.xlu0 %1828
      %1830 = vrot.lane.b32.xlu0 %v358, 48
      %v1831 = vpop.permute.xlu0 %1830
      %1832 = vrot.lane.b32.xlu0 %v360, 48
      %v1833 = vpop.permute.xlu0 %1832
      %1834 = vrot.lane.b32.xlu0 %v362, 48
      %v1835 = vpop.permute.xlu0 %1834
      %1836 = vrot.lane.b32.xlu0 %v364, 48
      %v1837 = vpop.permute.xlu0 %1836
      %vm1870 = vcmask 454016
      %1871 = vst.msk [vmem:[#allocation2] sm:$0xf] %vm1870, %v1775
      %1872 = vst.msk [vmem:[#allocation2 + $0x4] sm:$0xf] %vm1870, %v1777
      %1873 = vst.msk [vmem:[#allocation2 + $0x8] sm:$0xf] %vm1870, %v1779
      %1874 = vst.msk [vmem:[#allocation2 + $0xc] sm:$0xf] %vm1870, %v1781
      %1875 = vst.msk [vmem:[#allocation2 + $0x10] sm:$0xf] %vm1870, %v1783
      %1876 = vst.msk [vmem:[#allocation2 + $0x14] sm:$0xf] %vm1870, %v1785
      %1877 = vst.msk [vmem:[#allocation2 + $0x18] sm:$0xf] %vm1870, %v1787
      %1878 = vst.msk [vmem:[#allocation2 + $0x1c] sm:$0xf] %vm1870, %v1789
      %1879 = vst.msk [vmem:[#allocation2 + $0x20] sm:$0xf] %vm1870, %v1791
      %1880 = vst.msk [vmem:[#allocation2 + $0x24] sm:$0xf] %vm1870, %v1793
      %1881 = vst.msk [vmem:[#allocation2 + $0x28] sm:$0xf] %vm1870, %v1795
      %1882 = vst.msk [vmem:[#allocation2 + $0x2c] sm:$0xf] %vm1870, %v1797
      %1883 = vst.msk [vmem:[#allocation2 + $0x30] sm:$0xf] %vm1870, %v1799
      %1884 = vst.msk [vmem:[#allocation2 + $0x34] sm:$0xf] %vm1870, %v1801
      %1885 = vst.msk [vmem:[#allocation2 + $0x38] sm:$0xf] %vm1870, %v1803
      %1886 = vst.msk [vmem:[#allocation2 + $0x3c] sm:$0xf] %vm1870, %v1805
      %1887 = vst.msk [vmem:[#allocation2 + $0x40] sm:$0xf] %vm1870, %v1807
      %1888 = vst.msk [vmem:[#allocation2 + $0x44] sm:$0xf] %vm1870, %v1809
      %1889 = vst.msk [vmem:[#allocation2 + $0x48] sm:$0xf] %vm1870, %v1811
      %1890 = vst.msk [vmem:[#allocation2 + $0x4c] sm:$0xf] %vm1870, %v1813
      %1891 = vst.msk [vmem:[#allocation2 + $0x50] sm:$0xf] %vm1870, %v1815
      %1892 = vst.msk [vmem:[#allocation2 + $0x54] sm:$0xf] %vm1870, %v1817
      %1893 = vst.msk [vmem:[#allocation2 + $0x58] sm:$0xf] %vm1870, %v1819
      %1894 = vst.msk [vmem:[#allocation2 + $0x5c] sm:$0xf] %vm1870, %v1821
      %1895 = vst.msk [vmem:[#allocation2 + $0x60] sm:$0xf] %vm1870, %v1823
      %1896 = vst.msk [vmem:[#allocation2 + $0x64] sm:$0xf] %vm1870, %v1825
      %1897 = vst.msk [vmem:[#allocation2 + $0x68] sm:$0xf] %vm1870, %v1827
      %1898 = vst.msk [vmem:[#allocation2 + $0x6c] sm:$0xf] %vm1870, %v1829
      %1899 = vst.msk [vmem:[#allocation2 + $0x70] sm:$0xf] %vm1870, %v1831
      %1900 = vst.msk [vmem:[#allocation2 + $0x74] sm:$0xf] %vm1870, %v1833
      %1901 = vst.msk [vmem:[#allocation2 + $0x78] sm:$0xf] %vm1870, %v1835
      %1902 = vst.msk [vmem:[#allocation2 + $0x7c] sm:$0xf] %vm1870, %v1837
      %v1904 = vshrl.u32 %v304, 16
      %v1906 = vrot.slane %v1904, 4
      %v1907 = vshll.u32 %v304, 16
      %v1909 = vrot.slane %v1907, 5
      %v1910 = vor.u32 %v1906, %v1909
      %v1911 = vrot.slane %v1910, 4
      %v1913 = vshll.u32 %v305, 16
      %v1915 = vrot.slane %v1913, 5
      %v1916 = vsel %vm401, %v1911, %v1915
      %v1918 = vshrl.u32 %v324, 16
      %v1920 = vrot.slane %v1918, 4
      %v1921 = vshll.u32 %v324, 16
      %v1923 = vrot.slane %v1921, 5
      %v1924 = vor.u32 %v1920, %v1923
      %v1925 = vrot.slane %v1924, 4
      %v1927 = vshll.u32 %v325, 16
      %v1929 = vrot.slane %v1927, 5
      %v1930 = vsel %vm401, %v1925, %v1929
      %v1932 = vshrl.u32 %v344, 16
      %v1934 = vrot.slane %v1932, 4
      %v1935 = vshll.u32 %v344, 16
      %v1937 = vrot.slane %v1935, 5
      %v1938 = vor.u32 %v1934, %v1937
      %v1939 = vrot.slane %v1938, 4
      %v1941 = vshll.u32 %v345, 16
      %v1943 = vrot.slane %v1941, 5
      %v1944 = vsel %vm401, %v1939, %v1943
      %v1946 = vshrl.u32 %v364, 16
      %v1948 = vrot.slane %v1946, 4
      %v1949 = vshll.u32 %v364, 16
      %v1951 = vrot.slane %v1949, 5
      %v1952 = vor.u32 %v1948, %v1951
      %v1953 = vrot.slane %v1952, 4
      %v1955 = vshll.u32 %v365, 16
      %v1957 = vrot.slane %v1955, 5
      %v1958 = vsel %vm401, %v1953, %v1957
      %1959 = vrot.lane.b32.xlu0 %v443, 56
      %v1960 = vpop.permute.xlu0 %1959
      %1961 = vrot.lane.b32.xlu0 %v457, 56
      %v1962 = vpop.permute.xlu0 %1961
      %1963 = vrot.lane.b32.xlu0 %v471, 56
      %v1964 = vpop.permute.xlu0 %1963
      %1965 = vrot.lane.b32.xlu0 %v485, 56
      %v1966 = vpop.permute.xlu0 %1965
      %1967 = vrot.lane.b32.xlu0 %v499, 56
      %v1968 = vpop.permute.xlu0 %1967
      %1969 = vrot.lane.b32.xlu0 %v513, 56
      %v1970 = vpop.permute.xlu0 %1969
      %1971 = vrot.lane.b32.xlu0 %v1449, 56
      %v1972 = vpop.permute.xlu0 %1971
      %1973 = vrot.lane.b32.xlu0 %v1916, 56
      %v1974 = vpop.permute.xlu0 %1973
      %1975 = vrot.lane.b32.xlu0 %v555, 56
      %v1976 = vpop.permute.xlu0 %1975
      %1977 = vrot.lane.b32.xlu0 %v569, 56
      %v1978 = vpop.permute.xlu0 %1977
      %1979 = vrot.lane.b32.xlu0 %v583, 56
      %v1980 = vpop.permute.xlu0 %1979
      %1981 = vrot.lane.b32.xlu0 %v597, 56
      %v1982 = vpop.permute.xlu0 %1981
      %1983 = vrot.lane.b32.xlu0 %v611, 56
      %v1984 = vpop.permute.xlu0 %1983
      %1985 = vrot.lane.b32.xlu0 %v625, 56
      %v1986 = vpop.permute.xlu0 %1985
      %1987 = vrot.lane.b32.xlu0 %v1463, 56
      %v1988 = vpop.permute.xlu0 %1987
      %1989 = vrot.lane.b32.xlu0 %v1930, 56
      %v1990 = vpop.permute.xlu0 %1989
      %1991 = vrot.lane.b32.xlu0 %v667, 56
      %v1992 = vpop.permute.xlu0 %1991
      %1993 = vrot.lane.b32.xlu0 %v681, 56
      %v1994 = vpop.permute.xlu0 %1993
      %1995 = vrot.lane.b32.xlu0 %v695, 56
      %v1996 = vpop.permute.xlu0 %1995
      %1997 = vrot.lane.b32.xlu0 %v709, 56
      %v1998 = vpop.permute.xlu0 %1997
      %1999 = vrot.lane.b32.xlu0 %v723, 56
      %v2000 = vpop.permute.xlu0 %1999
      %2001 = vrot.lane.b32.xlu0 %v737, 56
      %v2002 = vpop.permute.xlu0 %2001
      %2003 = vrot.lane.b32.xlu0 %v1477, 56
      %v2004 = vpop.permute.xlu0 %2003
      %2005 = vrot.lane.b32.xlu0 %v1944, 56
      %v2006 = vpop.permute.xlu0 %2005
      %2007 = vrot.lane.b32.xlu0 %v779, 56
      %v2008 = vpop.permute.xlu0 %2007
      %2009 = vrot.lane.b32.xlu0 %v793, 56
      %v2010 = vpop.permute.xlu0 %2009
      %2011 = vrot.lane.b32.xlu0 %v807, 56
      %v2012 = vpop.permute.xlu0 %2011
      %2013 = vrot.lane.b32.xlu0 %v821, 56
      %v2014 = vpop.permute.xlu0 %2013
      %2015 = vrot.lane.b32.xlu0 %v835, 56
      %v2016 = vpop.permute.xlu0 %2015
      %2017 = vrot.lane.b32.xlu0 %v849, 56
      %v2018 = vpop.permute.xlu0 %2017
      %2019 = vrot.lane.b32.xlu0 %v1491, 56
      %v2020 = vpop.permute.xlu0 %2019
      %2021 = vrot.lane.b32.xlu0 %v1958, 56
      %v2022 = vpop.permute.xlu0 %2021
      %vm2055 = vcmask 519616
      %2056 = vst.msk [vmem:[#allocation2] sm:$0xf] %vm2055, %v1960
      %2057 = vst.msk [vmem:[#allocation2 + $0x4] sm:$0xf] %vm2055, %v1962
      %2058 = vst.msk [vmem:[#allocation2 + $0x8] sm:$0xf] %vm2055, %v1964
      %2059 = vst.msk [vmem:[#allocation2 + $0xc] sm:$0xf] %vm2055, %v1966
      %2060 = vst.msk [vmem:[#allocation2 + $0x10] sm:$0xf] %vm2055, %v1968
      %2061 = vst.msk [vmem:[#allocation2 + $0x14] sm:$0xf] %vm2055, %v1970
      %2062 = vst.msk [vmem:[#allocation2 + $0x18] sm:$0xf] %vm2055, %v1972
      %2063 = vst.msk [vmem:[#allocation2 + $0x1c] sm:$0xf] %vm2055, %v1974
      %2064 = vst.msk [vmem:[#allocation2 + $0x20] sm:$0xf] %vm2055, %v1976
      %2065 = vst.msk [vmem:[#allocation2 + $0x24] sm:$0xf] %vm2055, %v1978
      %2066 = vst.msk [vmem:[#allocation2 + $0x28] sm:$0xf] %vm2055, %v1980
      %2067 = vst.msk [vmem:[#allocation2 + $0x2c] sm:$0xf] %vm2055, %v1982
      %2068 = vst.msk [vmem:[#allocation2 + $0x30] sm:$0xf] %vm2055, %v1984
      %2069 = vst.msk [vmem:[#allocation2 + $0x34] sm:$0xf] %vm2055, %v1986
      %2070 = vst.msk [vmem:[#allocation2 + $0x38] sm:$0xf] %vm2055, %v1988
      %2071 = vst.msk [vmem:[#allocation2 + $0x3c] sm:$0xf] %vm2055, %v1990
      %2072 = vst.msk [vmem:[#allocation2 + $0x40] sm:$0xf] %vm2055, %v1992
      %2073 = vst.msk [vmem:[#allocation2 + $0x44] sm:$0xf] %vm2055, %v1994
      %2074 = vst.msk [vmem:[#allocation2 + $0x48] sm:$0xf] %vm2055, %v1996
      %2075 = vst.msk [vmem:[#allocation2 + $0x4c] sm:$0xf] %vm2055, %v1998
      %2076 = vst.msk [vmem:[#allocation2 + $0x50] sm:$0xf] %vm2055, %v2000
      %2077 = vst.msk [vmem:[#allocation2 + $0x54] sm:$0xf] %vm2055, %v2002
      %2078 = vst.msk [vmem:[#allocation2 + $0x58] sm:$0xf] %vm2055, %v2004
      %2079 = vst.msk [vmem:[#allocation2 + $0x5c] sm:$0xf] %vm2055, %v2006
      %2080 = vst.msk [vmem:[#allocation2 + $0x60] sm:$0xf] %vm2055, %v2008
      %2081 = vst.msk [vmem:[#allocation2 + $0x64] sm:$0xf] %vm2055, %v2010
      %2082 = vst.msk [vmem:[#allocation2 + $0x68] sm:$0xf] %vm2055, %v2012
      %2083 = vst.msk [vmem:[#allocation2 + $0x6c] sm:$0xf] %vm2055, %v2014
      %2084 = vst.msk [vmem:[#allocation2 + $0x70] sm:$0xf] %vm2055, %v2016
      %2085 = vst.msk [vmem:[#allocation2 + $0x74] sm:$0xf] %vm2055, %v2018
      %2086 = vst.msk [vmem:[#allocation2 + $0x78] sm:$0xf] %vm2055, %v2020
      %2087 = vst.msk [vmem:[#allocation2 + $0x7c] sm:$0xf] %vm2055, %v2022
      %v2092 = vrot.slane %v304, 5
      %v2093 = vrot.slane %v2092, 4
      %v2094 = vrot.slane %v305, 5
      %v2095 = vsel %vm1045, %v2093, %v2094
      %v2096 = vrot.slane %v324, 5
      %v2097 = vrot.slane %v2096, 4
      %v2098 = vrot.slane %v325, 5
      %v2099 = vsel %vm1045, %v2097, %v2098
      %v2100 = vrot.slane %v344, 5
      %v2101 = vrot.slane %v2100, 4
      %v2102 = vrot.slane %v345, 5
      %v2103 = vsel %vm1045, %v2101, %v2102
      %v2104 = vrot.slane %v364, 5
      %v2105 = vrot.slane %v2104, 4
      %v2106 = vrot.slane %v365, 5
      %v2107 = vsel %vm1045, %v2105, %v2106
      %2108 = vrot.lane.b32.xlu0 %v1057, 64
      %v2109 = vpop.permute.xlu0 %2108
      %2110 = vrot.lane.b32.xlu0 %v1061, 64
      %v2111 = vpop.permute.xlu0 %2110
      %2112 = vrot.lane.b32.xlu0 %v1065, 64
      %v2113 = vpop.permute.xlu0 %2112
      %2114 = vrot.lane.b32.xlu0 %v1069, 64
      %v2115 = vpop.permute.xlu0 %2114
      %2116 = vrot.lane.b32.xlu0 %v1073, 64
      %v2117 = vpop.permute.xlu0 %2116
      %2118 = vrot.lane.b32.xlu0 %v1077, 64
      %v2119 = vpop.permute.xlu0 %2118
      %2120 = vrot.lane.b32.xlu0 %v1628, 64
      %v2121 = vpop.permute.xlu0 %2120
      %2122 = vrot.lane.b32.xlu0 %v2095, 64
      %v2123 = vpop.permute.xlu0 %2122
      %2124 = vrot.lane.b32.xlu0 %v1089, 64
      %v2125 = vpop.permute.xlu0 %2124
      %2126 = vrot.lane.b32.xlu0 %v1093, 64
      %v2127 = vpop.permute.xlu0 %2126
      %2128 = vrot.lane.b32.xlu0 %v1097, 64
      %v2129 = vpop.permute.xlu0 %2128
      %2130 = vrot.lane.b32.xlu0 %v1101, 64
      %v2131 = vpop.permute.xlu0 %2130
      %2132 = vrot.lane.b32.xlu0 %v1105, 64
      %v2133 = vpop.permute.xlu0 %2132
      %2134 = vrot.lane.b32.xlu0 %v1109, 64
      %v2135 = vpop.permute.xlu0 %2134
      %2136 = vrot.lane.b32.xlu0 %v1632, 64
      %v2137 = vpop.permute.xlu0 %2136
      %2138 = vrot.lane.b32.xlu0 %v2099, 64
      %v2139 = vpop.permute.xlu0 %2138
      %2140 = vrot.lane.b32.xlu0 %v1121, 64
      %v2141 = vpop.permute.xlu0 %2140
      %2142 = vrot.lane.b32.xlu0 %v1125, 64
      %v2143 = vpop.permute.xlu0 %2142
      %2144 = vrot.lane.b32.xlu0 %v1129, 64
      %v2145 = vpop.permute.xlu0 %2144
      %2146 = vrot.lane.b32.xlu0 %v1133, 64
      %v2147 = vpop.permute.xlu0 %2146
      %2148 = vrot.lane.b32.xlu0 %v1137, 64
      %v2149 = vpop.permute.xlu0 %2148
      %2150 = vrot.lane.b32.xlu0 %v1141, 64
      %v2151 = vpop.permute.xlu0 %2150
      %2152 = vrot.lane.b32.xlu0 %v1636, 64
      %v2153 = vpop.permute.xlu0 %2152
      %2154 = vrot.lane.b32.xlu0 %v2103, 64
      %v2155 = vpop.permute.xlu0 %2154
      %2156 = vrot.lane.b32.xlu0 %v1153, 64
      %v2157 = vpop.permute.xlu0 %2156
      %2158 = vrot.lane.b32.xlu0 %v1157, 64
      %v2159 = vpop.permute.xlu0 %2158
      %2160 = vrot.lane.b32.xlu0 %v1161, 64
      %v2161 = vpop.permute.xlu0 %2160
      %2162 = vrot.lane.b32.xlu0 %v1165, 64
      %v2163 = vpop.permute.xlu0 %2162
      %2164 = vrot.lane.b32.xlu0 %v1169, 64
      %v2165 = vpop.permute.xlu0 %2164
      %2166 = vrot.lane.b32.xlu0 %v1173, 64
      %v2167 = vpop.permute.xlu0 %2166
      %2168 = vrot.lane.b32.xlu0 %v1640, 64
      %v2169 = vpop.permute.xlu0 %2168
      %2170 = vrot.lane.b32.xlu0 %v2107, 64
      %v2171 = vpop.permute.xlu0 %2170
      %vm2204 = vcmask 585216
      %2205 = vst.msk [vmem:[#allocation2] sm:$0xf] %vm2204, %v2109
      %2206 = vst.msk [vmem:[#allocation2 + $0x4] sm:$0xf] %vm2204, %v2111
      %2207 = vst.msk [vmem:[#allocation2 + $0x8] sm:$0xf] %vm2204, %v2113
      %2208 = vst.msk [vmem:[#allocation2 + $0xc] sm:$0xf] %vm2204, %v2115
      %2209 = vst.msk [vmem:[#allocation2 + $0x10] sm:$0xf] %vm2204, %v2117
      %2210 = vst.msk [vmem:[#allocation2 + $0x14] sm:$0xf] %vm2204, %v2119
      %2211 = vst.msk [vmem:[#allocation2 + $0x18] sm:$0xf] %vm2204, %v2121
      %2212 = vst.msk [vmem:[#allocation2 + $0x1c] sm:$0xf] %vm2204, %v2123
      %2213 = vst.msk [vmem:[#allocation2 + $0x20] sm:$0xf] %vm2204, %v2125
      %2214 = vst.msk [vmem:[#allocation2 + $0x24] sm:$0xf] %vm2204, %v2127
      %2215 = vst.msk [vmem:[#allocation2 + $0x28] sm:$0xf] %vm2204, %v2129
      %2216 = vst.msk [vmem:[#allocation2 + $0x2c] sm:$0xf] %vm2204, %v2131
      %2217 = vst.msk [vmem:[#allocation2 + $0x30] sm:$0xf] %vm2204, %v2133
      %2218 = vst.msk [vmem:[#allocation2 + $0x34] sm:$0xf] %vm2204, %v2135
      %2219 = vst.msk [vmem:[#allocation2 + $0x38] sm:$0xf] %vm2204, %v2137
      %2220 = vst.msk [vmem:[#allocation2 + $0x3c] sm:$0xf] %vm2204, %v2139
      %2221 = vst.msk [vmem:[#allocation2 + $0x40] sm:$0xf] %vm2204, %v2141
      %2222 = vst.msk [vmem:[#allocation2 + $0x44] sm:$0xf] %vm2204, %v2143
      %2223 = vst.msk [vmem:[#allocation2 + $0x48] sm:$0xf] %vm2204, %v2145
      %2224 = vst.msk [vmem:[#allocation2 + $0x4c] sm:$0xf] %vm2204, %v2147
      %2225 = vst.msk [vmem:[#allocation2 + $0x50] sm:$0xf] %vm2204, %v2149
      %2226 = vst.msk [vmem:[#allocation2 + $0x54] sm:$0xf] %vm2204, %v2151
      %2227 = vst.msk [vmem:[#allocation2 + $0x58] sm:$0xf] %vm2204, %v2153
      %2228 = vst.msk [vmem:[#allocation2 + $0x5c] sm:$0xf] %vm2204, %v2155
      %2229 = vst.msk [vmem:[#allocation2 + $0x60] sm:$0xf] %vm2204, %v2157
      %2230 = vst.msk [vmem:[#allocation2 + $0x64] sm:$0xf] %vm2204, %v2159
      %2231 = vst.msk [vmem:[#allocation2 + $0x68] sm:$0xf] %vm2204, %v2161
      %2232 = vst.msk [vmem:[#allocation2 + $0x6c] sm:$0xf] %vm2204, %v2163
      %2233 = vst.msk [vmem:[#allocation2 + $0x70] sm:$0xf] %vm2204, %v2165
      %2234 = vst.msk [vmem:[#allocation2 + $0x74] sm:$0xf] %vm2204, %v2167
      %2235 = vst.msk [vmem:[#allocation2 + $0x78] sm:$0xf] %vm2204, %v2169
      %2236 = vst.msk [vmem:[#allocation2 + $0x7c] sm:$0xf] %vm2204, %v2171
      %v2237 = vld [vmem:[#allocation2] sm:$0xf]
      %v2238 = vld [vmem:[#allocation2 + $0x4] sm:$0xf]
      %v2239 = vld [vmem:[#allocation2 + $0x8] sm:$0xf]
      %v2240 = vld [vmem:[#allocation2 + $0xc] sm:$0xf]
      %v2241 = vld [vmem:[#allocation2 + $0x10] sm:$0xf]
      %v2242 = vld [vmem:[#allocation2 + $0x14] sm:$0xf]
      %v2243 = vld [vmem:[#allocation2 + $0x18] sm:$0xf]
      %v2244 = vld [vmem:[#allocation2 + $0x1c] sm:$0xf]
      %v2245 = vld [vmem:[#allocation2 + $0x20] sm:$0xf]
      %v2246 = vld [vmem:[#allocation2 + $0x24] sm:$0xf]
      %v2247 = vld [vmem:[#allocation2 + $0x28] sm:$0xf]
      %v2248 = vld [vmem:[#allocation2 + $0x2c] sm:$0xf]
      %v2249 = vld [vmem:[#allocation2 + $0x30] sm:$0xf]
      %v2250 = vld [vmem:[#allocation2 + $0x34] sm:$0xf]
      %v2251 = vld [vmem:[#allocation2 + $0x38] sm:$0xf]
      %v2252 = vld [vmem:[#allocation2 + $0x3c] sm:$0xf]
      %v2253 = vld [vmem:[#allocation2 + $0x40] sm:$0xf]
      %v2254 = vld [vmem:[#allocation2 + $0x44] sm:$0xf]
      %v2255 = vld [vmem:[#allocation2 + $0x48] sm:$0xf]
      %v2256 = vld [vmem:[#allocation2 + $0x4c] sm:$0xf]
      %v2257 = vld [vmem:[#allocation2 + $0x50] sm:$0xf]
      %v2258 = vld [vmem:[#allocation2 + $0x54] sm:$0xf]
      %v2259 = vld [vmem:[#allocation2 + $0x58] sm:$0xf]
      %v2260 = vld [vmem:[#allocation2 + $0x5c] sm:$0xf]
      %v2261 = vld [vmem:[#allocation2 + $0x60] sm:$0xf]
      %v2262 = vld [vmem:[#allocation2 + $0x64] sm:$0xf]
      %v2263 = vld [vmem:[#allocation2 + $0x68] sm:$0xf]
      %v2264 = vld [vmem:[#allocation2 + $0x6c] sm:$0xf]
      %v2265 = vld [vmem:[#allocation2 + $0x70] sm:$0xf]
      %v2266 = vld [vmem:[#allocation2 + $0x74] sm:$0xf]
      %v2267 = vld [vmem:[#allocation2 + $0x78] sm:$0xf]
      %v2268 = vld [vmem:[#allocation2 + $0x7c] sm:$0xf]
      %v2269 = vld [vmem:[%s1] sm:$0xf]
      %v2270 = vld [vmem:[%s1 + $0x4] sm:$0xf]
      %v2271 = vld [vmem:[%s1 + $0x8] sm:$0xf]
      %v2272 = vld [vmem:[%s1 + $0xc] sm:$0xf]
      %v2273 = vld [vmem:[%s1 + $0x10] sm:$0xf]
      %v2274 = vld [vmem:[%s1 + $0x14] sm:$0xf]
      %v2275 = vld [vmem:[%s1 + $0x18] sm:$0xf]
      %v2276 = vld [vmem:[%s1 + $0x1c] sm:$0xf]
      %v2277 = vld [vmem:[%s1 + $0x20] sm:$0xf]
      %v2278 = vld [vmem:[%s2] sm:$0x1]
      %v2280 = vlaneseq
      %v2281 = vshrl.u32 %v2280, 7
      %v2282 = vsub.s32 0, %v2281
      %v2283 = vrot.slane %v2278, %v2282
      %v2317 = vunpack.c.l.b16 %v2237
      %v2318 = vunpack.c.l.b16 %v2238
      %v2319 = vunpack.c.l.b16 %v2239
      %v2320 = vunpack.c.l.b16 %v2240
      %v2321 = vunpack.c.l.b16 %v2241
      %v2322 = vunpack.c.l.b16 %v2242
      %v2323 = vunpack.c.l.b16 %v2243
      %v2324 = vunpack.c.l.b16 %v2244
      %v2325 = vunpack.c.l.b16 %v2245
      %v2326 = vunpack.c.l.b16 %v2246
      %v2327 = vunpack.c.l.b16 %v2247
      %v2328 = vunpack.c.l.b16 %v2248
      %v2329 = vunpack.c.l.b16 %v2249
      %v2330 = vunpack.c.l.b16 %v2250
      %v2331 = vunpack.c.l.b16 %v2251
      %v2332 = vunpack.c.l.b16 %v2252
      %v2333 = vunpack.c.l.b16 %v2253
      %v2334 = vunpack.c.l.b16 %v2254
      %v2335 = vunpack.c.l.b16 %v2255
      %v2336 = vunpack.c.l.b16 %v2256
      %v2337 = vunpack.c.l.b16 %v2257
      %v2338 = vunpack.c.l.b16 %v2258
      %v2339 = vunpack.c.l.b16 %v2259
      %v2340 = vunpack.c.l.b16 %v2260
      %v2341 = vunpack.c.l.b16 %v2261
      %v2342 = vunpack.c.l.b16 %v2262
      %v2343 = vunpack.c.l.b16 %v2263
      %v2344 = vunpack.c.l.b16 %v2264
      %v2345 = vunpack.c.l.b16 %v2265
      %v2346 = vunpack.c.l.b16 %v2266
      %v2347 = vunpack.c.l.b16 %v2267
      %v2348 = vunpack.c.l.b16 %v2268
      %v2349 = vpack.c.b16 %v2318, %v2317
      %v2350 = vpack.c.b16 %v2320, %v2319
      %v2351 = vpack.c.b16 %v2322, %v2321
      %v2352 = vpack.c.b16 %v2324, %v2323
      %v2353 = vpack.c.b16 %v2326, %v2325
      %v2354 = vpack.c.b16 %v2328, %v2327
      %v2355 = vpack.c.b16 %v2330, %v2329
      %v2356 = vpack.c.b16 %v2332, %v2331
      %v2357 = vpack.c.b16 %v2334, %v2333
      %v2358 = vpack.c.b16 %v2336, %v2335
      %v2359 = vpack.c.b16 %v2338, %v2337
      %v2360 = vpack.c.b16 %v2340, %v2339
      %v2361 = vpack.c.b16 %v2342, %v2341
      %v2362 = vpack.c.b16 %v2344, %v2343
      %v2363 = vpack.c.b16 %v2346, %v2345
      %v2364 = vpack.c.b16 %v2348, %v2347
      %v2374 = vunpack.c.l.b16 %v2269
      %v2375 = vunpack.c.l.b16 %v2270
      %v2376 = vunpack.c.l.b16 %v2271
      %v2377 = vunpack.c.l.b16 %v2272
      %v2378 = vunpack.c.l.b16 %v2273
      %v2379 = vunpack.c.l.b16 %v2274
      %v2380 = vunpack.c.l.b16 %v2275
      %v2381 = vunpack.c.l.b16 %v2276
      %v2382 = vunpack.c.l.b16 %v2277
      %v2383 = vpack.c.b16 %v2375, %v2374
      %v2384 = vpack.c.b16 %v2377, %v2376
      %v2385 = vpack.c.b16 %v2379, %v2378
      %v2386 = vpack.c.b16 %v2381, %v2380
      %v2387 = vpack.c.b16 %v2382, %v2382
      %vm2392 = vcmask 588800
      %v2394 = vsel %vm2392, %v2349, 0
      %v2397 = vsel %vm2392, %v2350, 0
      %v2400 = vsel %vm2392, %v2351, 0
      %v2403 = vsel %vm2392, %v2352, 0
      %v2406 = vsel %vm2392, %v2353, 0
      %v2409 = vsel %vm2392, %v2354, 0
      %v2412 = vsel %vm2392, %v2355, 0
      %v2415 = vsel %vm2392, %v2356, 0
      %v2418 = vsel %vm2392, %v2357, 0
      %v2421 = vsel %vm2392, %v2358, 0
      %v2424 = vsel %vm2392, %v2359, 0
      %v2427 = vsel %vm2392, %v2360, 0
      %v2430 = vsel %vm2392, %v2361, 0
      %v2433 = vsel %vm2392, %v2362, 0
      %v2436 = vsel %vm2392, %v2363, 0
      %v2439 = vsel %vm2392, %v2364, 0
      %vm2441 = vcmask 1043456
      %v2443 = vsel %vm2441, %v2387, 0
      %2445 = vmatprep.subr.bf16.mxu0 0
      %2446 = vmatpush1.bf16.msra.mxu0 0
      %2447 = vmatprep.subr.bf16.mxu0 0
      %2448 = vmatpush1.bf16.msra.mxu0 0
      %2449 = vmatprep.subr.bf16.mxu0 0
      %2450 = vmatpush1.bf16.msra.mxu0 0
      %2451 = vmatprep.subr.bf16.mxu0 0
      %2452 = vmatpush1.bf16.msra.mxu0 %v2443
      %2453 = vmatprep.subr.bf16.mxu0 0
      %2454 = vmatpush1.bf16.msra.mxu0 %v2386
      %2455 = vmatprep.subr.bf16.mxu0 0
      %2456 = vmatpush1.bf16.msra.mxu0 %v2385
      %2457 = vmatprep.subr.bf16.mxu0 0
      %2458 = vmatpush1.bf16.msra.mxu0 %v2384
      %2459 = vmatprep.subr.bf16.mxu0 0
      %2460 = vmatpush1.bf16.msra.mxu0 %v2383
      %2461 = vmatprep.subr.bf16.mxu0 0
      %2462 = vmatpush2.bf16.msra.mxu0 0
      %2463 = vmatprep.subr.bf16.mxu0 0
      %2464 = vmatpush2.bf16.msra.mxu0 0
      %2465 = vmatprep.subr.bf16.mxu0 0
      %2466 = vmatpush2.bf16.msra.mxu0 0
      %2467 = vmatprep.subr.bf16.mxu0 0
      %2468 = vmatpush2.bf16.msra.mxu0 0
      %2469 = vmatprep.subr.bf16.mxu0 0
      %2470 = vmatpush2.bf16.msra.mxu0 0
      %2471 = vmatprep.subr.bf16.mxu0 0
      %2472 = vmatpush2.bf16.msra.mxu0 0
      %2473 = vmatprep.subr.bf16.mxu0 0
      %2474 = vmatpush2.bf16.msra.mxu0 0
      %2475 = vmatprep.subr.bf16.mxu0 0
      %2476 = vmatpush2.bf16.msra.mxu0 0
      %2477 = vmatprep.mubr.bf16.mxu0 0
      %2478 = vmatmul.mubr.bf16.gmra.mxu0 %v2394
      %v2479 = vpop.f32.mrf.mxu0
      %v2480 = vadd.f32 %v2283, %v2479
      %v2481 = vpop.f32.mrf.mxu0
      %v2482 = vpop.f32.mrf.mxu0
      %v2483 = vadd.f32 %v2283, %v2482
      %v2484 = vpop.f32.mrf.mxu0
      %2485 = vmatprep.mubr.bf16.mxu0 0
      %2486 = vmatmul.mubr.bf16.gmra.mxu0 %v2397
      %v2487 = vpop.f32.mrf.mxu0
      %v2488 = vadd.f32 %v2283, %v2487
      %v2489 = vpop.f32.mrf.mxu0
      %v2490 = vpop.f32.mrf.mxu0
      %v2491 = vadd.f32 %v2283, %v2490
      %v2492 = vpop.f32.mrf.mxu0
      %2493 = vmatprep.mubr.bf16.mxu0 0
      %2494 = vmatmul.mubr.bf16.gmra.mxu0 %v2400
      %v2495 = vpop.f32.mrf.mxu0
      %v2496 = vadd.f32 %v2283, %v2495
      %v2497 = vpop.f32.mrf.mxu0
      %v2498 = vpop.f32.mrf.mxu0
      %v2499 = vadd.f32 %v2283, %v2498
      %v2500 = vpop.f32.mrf.mxu0
      %2501 = vmatprep.mubr.bf16.mxu0 0
      %2502 = vmatmul.mubr.bf16.gmra.mxu0 %v2403
      %v2503 = vpop.f32.mrf.mxu0
      %v2504 = vadd.f32 %v2283, %v2503
      %v2505 = vpop.f32.mrf.mxu0
      %v2506 = vpop.f32.mrf.mxu0
      %v2507 = vadd.f32 %v2283, %v2506
      %v2508 = vpop.f32.mrf.mxu0
      %2509 = vmatprep.mubr.bf16.mxu0 0
      %2510 = vmatmul.mubr.bf16.gmra.mxu0 %v2406
      %v2511 = vpop.f32.mrf.mxu0
      %v2512 = vadd.f32 %v2283, %v2511
      %v2513 = vpop.f32.mrf.mxu0
      %v2514 = vpop.f32.mrf.mxu0
      %v2515 = vadd.f32 %v2283, %v2514
      %v2516 = vpop.f32.mrf.mxu0
      %2517 = vmatprep.mubr.bf16.mxu0 0
      %2518 = vmatmul.mubr.bf16.gmra.mxu0 %v2409
      %v2519 = vpop.f32.mrf.mxu0
      %v2520 = vadd.f32 %v2283, %v2519
      %v2521 = vpop.f32.mrf.mxu0
      %v2522 = vpop.f32.mrf.mxu0
      %v2523 = vadd.f32 %v2283, %v2522
      %v2524 = vpop.f32.mrf.mxu0
      %2525 = vmatprep.mubr.bf16.mxu0 0
      %2526 = vmatmul.mubr.bf16.gmra.mxu0 %v2412
      %v2527 = vpop.f32.mrf.mxu0
      %v2528 = vadd.f32 %v2283, %v2527
      %v2529 = vpop.f32.mrf.mxu0
      %v2530 = vpop.f32.mrf.mxu0
      %v2531 = vadd.f32 %v2283, %v2530
      %v2532 = vpop.f32.mrf.mxu0
      %2533 = vmatprep.mubr.bf16.mxu0 0
      %2534 = vmatmul.mubr.bf16.gmra.mxu0 %v2415
      %v2535 = vpop.f32.mrf.mxu0
      %v2536 = vadd.f32 %v2283, %v2535
      %v2537 = vpop.f32.mrf.mxu0
      %v2538 = vpop.f32.mrf.mxu0
      %v2539 = vadd.f32 %v2283, %v2538
      %v2540 = vpop.f32.mrf.mxu0
      %2541 = vmatprep.mubr.bf16.mxu0 0
      %2542 = vmatmul.mubr.bf16.gmra.mxu0 %v2418
      %v2543 = vpop.f32.mrf.mxu0
      %v2544 = vadd.f32 %v2283, %v2543
      %v2545 = vpop.f32.mrf.mxu0
      %v2546 = vpop.f32.mrf.mxu0
      %v2547 = vadd.f32 %v2283, %v2546
      %v2548 = vpop.f32.mrf.mxu0
      %2549 = vmatprep.mubr.bf16.mxu0 0
      %2550 = vmatmul.mubr.bf16.gmra.mxu0 %v2421
      %v2551 = vpop.f32.mrf.mxu0
      %v2552 = vadd.f32 %v2283, %v2551
      %v2553 = vpop.f32.mrf.mxu0
      %v2554 = vpop.f32.mrf.mxu0
      %v2555 = vadd.f32 %v2283, %v2554
      %v2556 = vpop.f32.mrf.mxu0
      %2557 = vmatprep.mubr.bf16.mxu0 0
      %2558 = vmatmul.mubr.bf16.gmra.mxu0 %v2424
      %v2559 = vpop.f32.mrf.mxu0
      %v2560 = vadd.f32 %v2283, %v2559
      %v2561 = vpop.f32.mrf.mxu0
      %v2562 = vpop.f32.mrf.mxu0
      %v2563 = vadd.f32 %v2283, %v2562
      %v2564 = vpop.f32.mrf.mxu0
      %2565 = vmatprep.mubr.bf16.mxu0 0
      %2566 = vmatmul.mubr.bf16.gmra.mxu0 %v2427
      %v2567 = vpop.f32.mrf.mxu0
      %v2568 = vadd.f32 %v2283, %v2567
      %v2569 = vpop.f32.mrf.mxu0
      %v2570 = vpop.f32.mrf.mxu0
      %v2571 = vadd.f32 %v2283, %v2570
      %v2572 = vpop.f32.mrf.mxu0
      %2573 = vmatprep.mubr.bf16.mxu0 0
      %2574 = vmatmul.mubr.bf16.gmra.mxu0 %v2430
      %v2575 = vpop.f32.mrf.mxu0
      %v2576 = vadd.f32 %v2283, %v2575
      %v2577 = vpop.f32.mrf.mxu0
      %v2578 = vpop.f32.mrf.mxu0
      %v2579 = vadd.f32 %v2283, %v2578
      %v2580 = vpop.f32.mrf.mxu0
      %2581 = vmatprep.mubr.bf16.mxu0 0
      %2582 = vmatmul.mubr.bf16.gmra.mxu0 %v2433
      %v2583 = vpop.f32.mrf.mxu0
      %v2584 = vadd.f32 %v2283, %v2583
      %v2585 = vpop.f32.mrf.mxu0
      %v2586 = vpop.f32.mrf.mxu0
      %v2587 = vadd.f32 %v2283, %v2586
      %v2588 = vpop.f32.mrf.mxu0
      %2589 = vmatprep.mubr.bf16.mxu0 0
      %2590 = vmatmul.mubr.bf16.gmra.mxu0 %v2436
      %v2591 = vpop.f32.mrf.mxu0
      %v2592 = vadd.f32 %v2283, %v2591
      %v2593 = vpop.f32.mrf.mxu0
      %v2594 = vpop.f32.mrf.mxu0
      %v2595 = vadd.f32 %v2283, %v2594
      %v2596 = vpop.f32.mrf.mxu0
      %2597 = vmatprep.mubr.bf16.mxu0 0
      %2598 = vmatmul.mubr.bf16.gmra.mxu0 %v2439
      %v2599 = vpop.f32.mrf.mxu0
      %v2600 = vadd.f32 %v2283, %v2599
      %v2601 = vpop.f32.mrf.mxu0
      %v2602 = vpop.f32.mrf.mxu0
      %v2603 = vadd.f32 %v2283, %v2602
      %v2604 = vpop.f32.mrf.mxu0
      %2605 = vdwg.mxu0
      %v2606 = vmax.f32 %v2480, 0.0
      %v2607 = vmax.f32 %v2483, 0.0
      %v2608 = vmax.f32 %v2488, 0.0
      %v2609 = vmax.f32 %v2491, 0.0
      %v2610 = vmax.f32 %v2496, 0.0
      %v2611 = vmax.f32 %v2499, 0.0
      %v2612 = vmax.f32 %v2504, 0.0
      %v2613 = vmax.f32 %v2507, 0.0
      %v2614 = vmax.f32 %v2512, 0.0
      %v2615 = vmax.f32 %v2515, 0.0
      %v2616 = vmax.f32 %v2520, 0.0
      %v2617 = vmax.f32 %v2523, 0.0
      %v2618 = vmax.f32 %v2528, 0.0
      %v2619 = vmax.f32 %v2531, 0.0
      %v2620 = vmax.f32 %v2536, 0.0
      %v2621 = vmax.f32 %v2539, 0.0
      %v2622 = vmax.f32 %v2544, 0.0
      %v2623 = vmax.f32 %v2547, 0.0
      %v2624 = vmax.f32 %v2552, 0.0
      %v2625 = vmax.f32 %v2555, 0.0
      %v2626 = vmax.f32 %v2560, 0.0
      %v2627 = vmax.f32 %v2563, 0.0
      %v2628 = vmax.f32 %v2568, 0.0
      %v2629 = vmax.f32 %v2571, 0.0
      %v2630 = vmax.f32 %v2576, 0.0
      %v2631 = vmax.f32 %v2579, 0.0
      %v2632 = vmax.f32 %v2584, 0.0
      %v2633 = vmax.f32 %v2587, 0.0
      %v2634 = vmax.f32 %v2592, 0.0
      %v2635 = vmax.f32 %v2595, 0.0
      %v2636 = vmax.f32 %v2600, 0.0
      %v2637 = vmax.f32 %v2603, 0.0
      %v2638 = vpack.c.bf16 %v2607, %v2606
      %v2639 = vpack.c.bf16 %v2609, %v2608
      %v2640 = vpack.c.bf16 %v2611, %v2610
      %v2641 = vpack.c.bf16 %v2613, %v2612
      %v2642 = vpack.c.bf16 %v2615, %v2614
      %v2643 = vpack.c.bf16 %v2617, %v2616
      %v2644 = vpack.c.bf16 %v2619, %v2618
      %v2645 = vpack.c.bf16 %v2621, %v2620
      %v2646 = vpack.c.bf16 %v2623, %v2622
      %v2647 = vpack.c.bf16 %v2625, %v2624
      %v2648 = vpack.c.bf16 %v2627, %v2626
      %v2649 = vpack.c.bf16 %v2629, %v2628
      %v2650 = vpack.c.bf16 %v2631, %v2630
      %v2651 = vpack.c.bf16 %v2633, %v2632
      %v2652 = vpack.c.bf16 %v2635, %v2634
      %v2653 = vpack.c.bf16 %v2637, %v2636
      %v2654 = vld [vmem:[%s3] sm:$0xf]
      %v2655 = vld [vmem:[%s4] sm:$0x1]
      %v2657 = vlaneseq
      %v2658 = vshrl.u32 %v2657, 7
      %v2659 = vsub.s32 0, %v2658
      %v2660 = vrot.slane %v2655, %v2659
      %vm2662 = vcmask 64512
      %v2664 = vsel %vm2662, %v2638, 0
      %v2667 = vsel %vm2662, %v2639, 0
      %v2670 = vsel %vm2662, %v2640, 0
      %v2673 = vsel %vm2662, %v2641, 0
      %v2676 = vsel %vm2662, %v2642, 0
      %v2679 = vsel %vm2662, %v2643, 0
      %v2682 = vsel %vm2662, %v2644, 0
      %v2685 = vsel %vm2662, %v2645, 0
      %v2688 = vsel %vm2662, %v2646, 0
      %v2691 = vsel %vm2662, %v2647, 0
      %v2694 = vsel %vm2662, %v2648, 0
      %v2697 = vsel %vm2662, %v2649, 0
      %v2700 = vsel %vm2662, %v2650, 0
      %v2703 = vsel %vm2662, %v2651, 0
      %v2706 = vsel %vm2662, %v2652, 0
      %v2709 = vsel %vm2662, %v2653, 0
      %v2712 = vsel %vm2441, %v2654, 0
      %2714 = vmatprep.subr.bf16.mxu0 0
      %2715 = vmatpush1.bf16.msra.mxu0 0
      %2716 = vmatprep.subr.bf16.mxu0 0
      %2717 = vmatpush1.bf16.msra.mxu0 0
      %2718 = vmatprep.subr.bf16.mxu0 0
      %2719 = vmatpush1.bf16.msra.mxu0 0
      %2720 = vmatprep.subr.bf16.mxu0 0
      %2721 = vmatpush1.bf16.msra.mxu0 0
      %2722 = vmatprep.subr.bf16.mxu0 0
      %2723 = vmatpush1.bf16.msra.mxu0 0
      %2724 = vmatprep.subr.bf16.mxu0 0
      %2725 = vmatpush1.bf16.msra.mxu0 0
      %2726 = vmatprep.subr.bf16.mxu0 0
      %2727 = vmatpush1.bf16.msra.mxu0 0
      %2728 = vmatprep.subr.bf16.mxu0 0
      %2729 = vmatpush1.bf16.msra.mxu0 %v2712
      %2730 = vmatprep.subr.bf16.mxu0 0
      %2731 = vmatpush2.bf16.msra.mxu0 0
      %2732 = vmatprep.subr.bf16.mxu0 0
      %2733 = vmatpush2.bf16.msra.mxu0 0
      %2734 = vmatprep.subr.bf16.mxu0 0
      %2735 = vmatpush2.bf16.msra.mxu0 0
      %2736 = vmatprep.subr.bf16.mxu0 0
      %2737 = vmatpush2.bf16.msra.mxu0 0
      %2738 = vmatprep.subr.bf16.mxu0 0
      %2739 = vmatpush2.bf16.msra.mxu0 0
      %2740 = vmatprep.subr.bf16.mxu0 0
      %2741 = vmatpush2.bf16.msra.mxu0 0
      %2742 = vmatprep.subr.bf16.mxu0 0
      %2743 = vmatpush2.bf16.msra.mxu0 0
      %2744 = vmatprep.subr.bf16.mxu0 0
      %2745 = vmatpush2.bf16.msra.mxu0 0
      %2746 = vmatprep.mubr.bf16.mxu0 0
      %2747 = vmatmul.mubr.bf16.gmra.mxu0 %v2664
      %v2748 = vpop.f32.mrf.mxu0
      %v2749 = vadd.f32 %v2660, %v2748
      %v2750 = vpop.f32.mrf.mxu0
      %v2751 = vpop.f32.mrf.mxu0
      %v2752 = vadd.f32 %v2660, %v2751
      %v2753 = vpop.f32.mrf.mxu0
      %2754 = vmatprep.mubr.bf16.mxu0 0
      %2755 = vmatmul.mubr.bf16.gmra.mxu0 %v2667
      %v2756 = vpop.f32.mrf.mxu0
      %v2757 = vadd.f32 %v2660, %v2756
      %v2758 = vpop.f32.mrf.mxu0
      %v2759 = vpop.f32.mrf.mxu0
      %v2760 = vadd.f32 %v2660, %v2759
      %v2761 = vpop.f32.mrf.mxu0
      %2762 = vmatprep.mubr.bf16.mxu0 0
      %2763 = vmatmul.mubr.bf16.gmra.mxu0 %v2670
      %v2764 = vpop.f32.mrf.mxu0
      %v2765 = vadd.f32 %v2660, %v2764
      %v2766 = vpop.f32.mrf.mxu0
      %v2767 = vpop.f32.mrf.mxu0
      %v2768 = vadd.f32 %v2660, %v2767
      %v2769 = vpop.f32.mrf.mxu0
      %2770 = vmatprep.mubr.bf16.mxu0 0
      %2771 = vmatmul.mubr.bf16.gmra.mxu0 %v2673
      %v2772 = vpop.f32.mrf.mxu0
      %v2773 = vadd.f32 %v2660, %v2772
      %v2774 = vpop.f32.mrf.mxu0
      %v2775 = vpop.f32.mrf.mxu0
      %v2776 = vadd.f32 %v2660, %v2775
      %v2777 = vpop.f32.mrf.mxu0
      %2778 = vmatprep.mubr.bf16.mxu0 0
      %2779 = vmatmul.mubr.bf16.gmra.mxu0 %v2676
      %v2780 = vpop.f32.mrf.mxu0
      %v2781 = vadd.f32 %v2660, %v2780
      %v2782 = vpop.f32.mrf.mxu0
      %v2783 = vpop.f32.mrf.mxu0
      %v2784 = vadd.f32 %v2660, %v2783
      %v2785 = vpop.f32.mrf.mxu0
      %2786 = vmatprep.mubr.bf16.mxu0 0
      %2787 = vmatmul.mubr.bf16.gmra.mxu0 %v2679
      %v2788 = vpop.f32.mrf.mxu0
      %v2789 = vadd.f32 %v2660, %v2788
      %v2790 = vpop.f32.mrf.mxu0
      %v2791 = vpop.f32.mrf.mxu0
      %v2792 = vadd.f32 %v2660, %v2791
      %v2793 = vpop.f32.mrf.mxu0
      %2794 = vmatprep.mubr.bf16.mxu0 0
      %2795 = vmatmul.mubr.bf16.gmra.mxu0 %v2682
      %v2796 = vpop.f32.mrf.mxu0
      %v2797 = vadd.f32 %v2660, %v2796
      %v2798 = vpop.f32.mrf.mxu0
      %v2799 = vpop.f32.mrf.mxu0
      %v2800 = vadd.f32 %v2660, %v2799
      %v2801 = vpop.f32.mrf.mxu0
      %2802 = vmatprep.mubr.bf16.mxu0 0
      %2803 = vmatmul.mubr.bf16.gmra.mxu0 %v2685
      %v2804 = vpop.f32.mrf.mxu0
      %v2805 = vadd.f32 %v2660, %v2804
      %v2806 = vpop.f32.mrf.mxu0
      %v2807 = vpop.f32.mrf.mxu0
      %v2808 = vadd.f32 %v2660, %v2807
      %v2809 = vpop.f32.mrf.mxu0
      %2810 = vmatprep.mubr.bf16.mxu0 0
      %2811 = vmatmul.mubr.bf16.gmra.mxu0 %v2688
      %v2812 = vpop.f32.mrf.mxu0
      %v2813 = vadd.f32 %v2660, %v2812
      %v2814 = vpop.f32.mrf.mxu0
      %v2815 = vpop.f32.mrf.mxu0
      %v2816 = vadd.f32 %v2660, %v2815
      %v2817 = vpop.f32.mrf.mxu0
      %2818 = vmatprep.mubr.bf16.mxu0 0
      %2819 = vmatmul.mubr.bf16.gmra.mxu0 %v2691
      %v2820 = vpop.f32.mrf.mxu0
      %v2821 = vadd.f32 %v2660, %v2820
      %v2822 = vpop.f32.mrf.mxu0
      %v2823 = vpop.f32.mrf.mxu0
      %v2824 = vadd.f32 %v2660, %v2823
      %v2825 = vpop.f32.mrf.mxu0
      %2826 = vmatprep.mubr.bf16.mxu0 0
      %2827 = vmatmul.mubr.bf16.gmra.mxu0 %v2694
      %v2828 = vpop.f32.mrf.mxu0
      %v2829 = vadd.f32 %v2660, %v2828
      %v2830 = vpop.f32.mrf.mxu0
      %v2831 = vpop.f32.mrf.mxu0
      %v2832 = vadd.f32 %v2660, %v2831
      %v2833 = vpop.f32.mrf.mxu0
      %2834 = vmatprep.mubr.bf16.mxu0 0
      %2835 = vmatmul.mubr.bf16.gmra.mxu0 %v2697
      %v2836 = vpop.f32.mrf.mxu0
      %v2837 = vadd.f32 %v2660, %v2836
      %v2838 = vpop.f32.mrf.mxu0
      %v2839 = vpop.f32.mrf.mxu0
      %v2840 = vadd.f32 %v2660, %v2839
      %v2841 = vpop.f32.mrf.mxu0
      %2842 = vmatprep.mubr.bf16.mxu0 0
      %2843 = vmatmul.mubr.bf16.gmra.mxu0 %v2700
      %v2844 = vpop.f32.mrf.mxu0
      %v2845 = vadd.f32 %v2660, %v2844
      %v2846 = vpop.f32.mrf.mxu0
      %v2847 = vpop.f32.mrf.mxu0
      %v2848 = vadd.f32 %v2660, %v2847
      %v2849 = vpop.f32.mrf.mxu0
      %2850 = vmatprep.mubr.bf16.mxu0 0
      %2851 = vmatmul.mubr.bf16.gmra.mxu0 %v2703
      %v2852 = vpop.f32.mrf.mxu0
      %v2853 = vadd.f32 %v2660, %v2852
      %v2854 = vpop.f32.mrf.mxu0
      %v2855 = vpop.f32.mrf.mxu0
      %v2856 = vadd.f32 %v2660, %v2855
      %v2857 = vpop.f32.mrf.mxu0
      %2858 = vmatprep.mubr.bf16.mxu0 0
      %2859 = vmatmul.mubr.bf16.gmra.mxu0 %v2706
      %v2860 = vpop.f32.mrf.mxu0
      %v2861 = vadd.f32 %v2660, %v2860
      %v2862 = vpop.f32.mrf.mxu0
      %v2863 = vpop.f32.mrf.mxu0
      %v2864 = vadd.f32 %v2660, %v2863
      %v2865 = vpop.f32.mrf.mxu0
      %2866 = vmatprep.mubr.bf16.mxu0 0
      %2867 = vmatmul.mubr.bf16.gmra.mxu0 %v2709
      %v2868 = vpop.f32.mrf.mxu0
      %v2869 = vadd.f32 %v2660, %v2868
      %v2870 = vpop.f32.mrf.mxu0
      %v2871 = vpop.f32.mrf.mxu0
      %v2872 = vadd.f32 %v2660, %v2871
      %v2873 = vpop.f32.mrf.mxu0
      %2874 = vdwg.mxu0
      %v2875 = vld [vmem:[%s276] sm:$0xf]
      %v2876 = vld [vmem:[%s276 + $0x4] sm:$0xf]
      %v2877 = vld [vmem:[%s276 + $0x8] sm:$0xf]
      %v2878 = vld [vmem:[%s276 + $0xc] sm:$0xf]
      %v2879 = vld [vmem:[%s276 + $0x10] sm:$0xf]
      %v2880 = vld [vmem:[%s276 + $0x14] sm:$0xf]
      %v2881 = vld [vmem:[%s276 + $0x18] sm:$0xf]
      %v2882 = vld [vmem:[%s276 + $0x1c] sm:$0xf]
      %v2883 = vld [vmem:[%s276 + $0x20] sm:$0xf]
      %v2884 = vld [vmem:[%s276 + $0x24] sm:$0xf]
      %v2885 = vld [vmem:[%s276 + $0x28] sm:$0xf]
      %v2886 = vld [vmem:[%s276 + $0x2c] sm:$0xf]
      %v2887 = vld [vmem:[%s276 + $0x30] sm:$0xf]
      %v2888 = vld [vmem:[%s276 + $0x34] sm:$0xf]
      %v2889 = vld [vmem:[%s276 + $0x38] sm:$0xf]
      %v2890 = vld [vmem:[%s276 + $0x3c] sm:$0xf]
      %v2891 = vld [vmem:[%s276 + $0x40] sm:$0xf]
      %v2892 = vld [vmem:[%s276 + $0x44] sm:$0xf]
      %v2893 = vld [vmem:[%s276 + $0x48] sm:$0xf]
      %v2894 = vld [vmem:[%s276 + $0x4c] sm:$0xf]
      %v2895 = vld [vmem:[%s276 + $0x50] sm:$0xf]
      %v2896 = vld [vmem:[%s276 + $0x54] sm:$0xf]
      %v2897 = vld [vmem:[%s276 + $0x58] sm:$0xf]
      %v2898 = vld [vmem:[%s276 + $0x5c] sm:$0xf]
      %v2899 = vld [vmem:[%s276 + $0x60] sm:$0xf]
      %v2900 = vld [vmem:[%s276 + $0x64] sm:$0xf]
      %v2901 = vld [vmem:[%s276 + $0x68] sm:$0xf]
      %v2902 = vld [vmem:[%s276 + $0x6c] sm:$0xf]
      %v2903 = vld [vmem:[%s276 + $0x70] sm:$0xf]
      %v2904 = vld [vmem:[%s276 + $0x74] sm:$0xf]
      %v2905 = vld [vmem:[%s276 + $0x78] sm:$0xf]
      %v2906 = vld [vmem:[%s276 + $0x7c] sm:$0xf]
      %v2907 = vunpack.c.l.bf16 %v2875
      %v2908 = vunpack.c.l.bf16 %v2876
      %v2909 = vunpack.c.l.bf16 %v2877
      %v2910 = vunpack.c.l.bf16 %v2878
      %v2911 = vunpack.c.l.bf16 %v2879
      %v2912 = vunpack.c.l.bf16 %v2880
      %v2913 = vunpack.c.l.bf16 %v2881
      %v2914 = vunpack.c.l.bf16 %v2882
      %v2915 = vunpack.c.l.bf16 %v2883
      %v2916 = vunpack.c.l.bf16 %v2884
      %v2917 = vunpack.c.l.bf16 %v2885
      %v2918 = vunpack.c.l.bf16 %v2886
      %v2919 = vunpack.c.l.bf16 %v2887
      %v2920 = vunpack.c.l.bf16 %v2888
      %v2921 = vunpack.c.l.bf16 %v2889
      %v2922 = vunpack.c.l.bf16 %v2890
      %v2923 = vunpack.c.l.bf16 %v2891
      %v2924 = vunpack.c.l.bf16 %v2892
      %v2925 = vunpack.c.l.bf16 %v2893
      %v2926 = vunpack.c.l.bf16 %v2894
      %v2927 = vunpack.c.l.bf16 %v2895
      %v2928 = vunpack.c.l.bf16 %v2896
      %v2929 = vunpack.c.l.bf16 %v2897
      %v2930 = vunpack.c.l.bf16 %v2898
      %v2931 = vunpack.c.l.bf16 %v2899
      %v2932 = vunpack.c.l.bf16 %v2900
      %v2933 = vunpack.c.l.bf16 %v2901
      %v2934 = vunpack.c.l.bf16 %v2902
      %v2935 = vunpack.c.l.bf16 %v2903
      %v2936 = vunpack.c.l.bf16 %v2904
      %v2937 = vunpack.c.l.bf16 %v2905
      %v2938 = vunpack.c.l.bf16 %v2906
      %v2939 = vadd.f32 %v2749, %v2907
      %v2940 = vadd.f32 %v2752, %v2908
      %v2941 = vadd.f32 %v2757, %v2909
      %v2942 = vadd.f32 %v2760, %v2910
      %v2943 = vadd.f32 %v2765, %v2911
      %v2944 = vadd.f32 %v2768, %v2912
      %v2945 = vadd.f32 %v2773, %v2913
      %v2946 = vadd.f32 %v2776, %v2914
      %v2947 = vadd.f32 %v2781, %v2915
      %v2948 = vadd.f32 %v2784, %v2916
      %v2949 = vadd.f32 %v2789, %v2917
      %v2950 = vadd.f32 %v2792, %v2918
      %v2951 = vadd.f32 %v2797, %v2919
      %v2952 = vadd.f32 %v2800, %v2920
      %v2953 = vadd.f32 %v2805, %v2921
      %v2954 = vadd.f32 %v2808, %v2922
      %v2955 = vadd.f32 %v2813, %v2923
      %v2956 = vadd.f32 %v2816, %v2924
      %v2957 = vadd.f32 %v2821, %v2925
      %v2958 = vadd.f32 %v2824, %v2926
      %v2959 = vadd.f32 %v2829, %v2927
      %v2960 = vadd.f32 %v2832, %v2928
      %v2961 = vadd.f32 %v2837, %v2929
      %v2962 = vadd.f32 %v2840, %v2930
      %v2963 = vadd.f32 %v2845, %v2931
      %v2964 = vadd.f32 %v2848, %v2932
      %v2965 = vadd.f32 %v2853, %v2933
      %v2966 = vadd.f32 %v2856, %v2934
      %v2967 = vadd.f32 %v2861, %v2935
      %v2968 = vadd.f32 %v2864, %v2936
      %v2969 = vadd.f32 %v2869, %v2937
      %v2970 = vadd.f32 %v2872, %v2938
      %v2971 = vmax.f32 %v2939, 0.0
      %v2972 = vmax.f32 %v2940, 0.0
      %v2973 = vmax.f32 %v2941, 0.0
      %v2974 = vmax.f32 %v2942, 0.0
      %v2975 = vmax.f32 %v2943, 0.0
      %v2976 = vmax.f32 %v2944, 0.0
      %v2977 = vmax.f32 %v2945, 0.0
      %v2978 = vmax.f32 %v2946, 0.0
      %v2979 = vmax.f32 %v2947, 0.0
      %v2980 = vmax.f32 %v2948, 0.0
      %v2981 = vmax.f32 %v2949, 0.0
      %v2982 = vmax.f32 %v2950, 0.0
      %v2983 = vmax.f32 %v2951, 0.0
      %v2984 = vmax.f32 %v2952, 0.0
      %v2985 = vmax.f32 %v2953, 0.0
      %v2986 = vmax.f32 %v2954, 0.0
      %v2987 = vmax.f32 %v2955, 0.0
      %v2988 = vmax.f32 %v2956, 0.0
      %v2989 = vmax.f32 %v2957, 0.0
      %v2990 = vmax.f32 %v2958, 0.0
      %v2991 = vmax.f32 %v2959, 0.0
      %v2992 = vmax.f32 %v2960, 0.0
      %v2993 = vmax.f32 %v2961, 0.0
      %v2994 = vmax.f32 %v2962, 0.0
      %v2995 = vmax.f32 %v2963, 0.0
      %v2996 = vmax.f32 %v2964, 0.0
      %v2997 = vmax.f32 %v2965, 0.0
      %v2998 = vmax.f32 %v2966, 0.0
      %v2999 = vmax.f32 %v2967, 0.0
      %v3000 = vmax.f32 %v2968, 0.0
      %v3001 = vmax.f32 %v2969, 0.0
      %v3002 = vmax.f32 %v2970, 0.0
      %v3003 = vpack.c.bf16 %v2972, %v2971
      %v3004 = vpack.c.bf16 %v2974, %v2973
      %v3005 = vpack.c.bf16 %v2976, %v2975
      %v3006 = vpack.c.bf16 %v2978, %v2977
      %v3007 = vpack.c.bf16 %v2980, %v2979
      %v3008 = vpack.c.bf16 %v2982, %v2981
      %v3009 = vpack.c.bf16 %v2984, %v2983
      %v3010 = vpack.c.bf16 %v2986, %v2985
      %v3011 = vpack.c.bf16 %v2988, %v2987
      %v3012 = vpack.c.bf16 %v2990, %v2989
      %v3013 = vpack.c.bf16 %v2992, %v2991
      %v3014 = vpack.c.bf16 %v2994, %v2993
      %v3015 = vpack.c.bf16 %v2996, %v2995
      %v3016 = vpack.c.bf16 %v2998, %v2997
      %v3017 = vpack.c.bf16 %v3000, %v2999
      %v3018 = vpack.c.bf16 %v3002, %v3001
      %v3035 = vunpack.c.l.b16 %v3003
      %v3036 = vunpack.c.h.b16 %v3003
      %v3037 = vunpack.c.l.b16 %v3004
      %v3038 = vunpack.c.h.b16 %v3004
      %v3039 = vunpack.c.l.b16 %v3005
      %v3040 = vunpack.c.h.b16 %v3005
      %v3041 = vunpack.c.l.b16 %v3006
      %v3042 = vunpack.c.h.b16 %v3006
      %v3043 = vunpack.c.l.b16 %v3007
      %v3044 = vunpack.c.h.b16 %v3007
      %v3045 = vunpack.c.l.b16 %v3008
      %v3046 = vunpack.c.h.b16 %v3008
      %v3047 = vunpack.c.l.b16 %v3009
      %v3048 = vunpack.c.h.b16 %v3009
      %v3049 = vunpack.c.l.b16 %v3010
      %v3050 = vunpack.c.h.b16 %v3010
      %v3051 = vunpack.c.l.b16 %v3011
      %v3052 = vunpack.c.h.b16 %v3011
      %v3053 = vunpack.c.l.b16 %v3012
      %v3054 = vunpack.c.h.b16 %v3012
      %v3055 = vunpack.c.l.b16 %v3013
      %v3056 = vunpack.c.h.b16 %v3013
      %v3057 = vunpack.c.l.b16 %v3014
      %v3058 = vunpack.c.h.b16 %v3014
      %v3059 = vunpack.c.l.b16 %v3015
      %v3060 = vunpack.c.h.b16 %v3015
      %v3061 = vunpack.c.l.b16 %v3016
      %v3062 = vunpack.c.h.b16 %v3016
      %v3063 = vunpack.c.l.b16 %v3017
      %v3064 = vunpack.c.h.b16 %v3017
      %v3065 = vunpack.c.l.b16 %v3018
      %v3066 = vunpack.c.h.b16 %v3018
      %v3067 = vpack.c.b16 %v3035, %v3035
      %v3068 = vpack.c.b16 %v3036, %v3036
      %v3069 = vpack.c.b16 %v3037, %v3037
      %v3070 = vpack.c.b16 %v3038, %v3038
      %v3071 = vpack.c.b16 %v3039, %v3039
      %v3072 = vpack.c.b16 %v3040, %v3040
      %v3073 = vpack.c.b16 %v3041, %v3041
      %v3074 = vpack.c.b16 %v3042, %v3042
      %v3075 = vpack.c.b16 %v3043, %v3043
      %v3076 = vpack.c.b16 %v3044, %v3044
      %v3077 = vpack.c.b16 %v3045, %v3045
      %v3078 = vpack.c.b16 %v3046, %v3046
      %v3079 = vpack.c.b16 %v3047, %v3047
      %v3080 = vpack.c.b16 %v3048, %v3048
      %v3081 = vpack.c.b16 %v3049, %v3049
      %v3082 = vpack.c.b16 %v3050, %v3050
      %v3083 = vpack.c.b16 %v3051, %v3051
      %v3084 = vpack.c.b16 %v3052, %v3052
      %v3085 = vpack.c.b16 %v3053, %v3053
      %v3086 = vpack.c.b16 %v3054, %v3054
      %v3087 = vpack.c.b16 %v3055, %v3055
      %v3088 = vpack.c.b16 %v3056, %v3056
      %v3089 = vpack.c.b16 %v3057, %v3057
      %v3090 = vpack.c.b16 %v3058, %v3058
      %v3091 = vpack.c.b16 %v3059, %v3059
      %v3092 = vpack.c.b16 %v3060, %v3060
      %v3093 = vpack.c.b16 %v3061, %v3061
      %v3094 = vpack.c.b16 %v3062, %v3062
      %v3095 = vpack.c.b16 %v3063, %v3063
      %v3096 = vpack.c.b16 %v3064, %v3064
      %v3097 = vpack.c.b16 %v3065, %v3065
      %v3098 = vpack.c.b16 %v3066, %v3066
      %vm3131 = vcmask 257024
      %3132 = vst.msk [vmem:[%s283] sm:$0xf] %vm3131, %v3067
      %3133 = vst.msk [vmem:[%s283 + $0x4] sm:$0xf] %vm3131, %v3068
      %3134 = vst.msk [vmem:[%s283 + $0x8] sm:$0xf] %vm3131, %v3069
      %3135 = vst.msk [vmem:[%s283 + $0xc] sm:$0xf] %vm3131, %v3070
      %3136 = vst.msk [vmem:[%s283 + $0x10] sm:$0xf] %vm3131, %v3071
      %3137 = vst.msk [vmem:[%s283 + $0x14] sm:$0xf] %vm3131, %v3072
      %3138 = vst.msk [vmem:[%s283 + $0x18] sm:$0xf] %vm3131, %v3073
      %3139 = vst.msk [vmem:[%s283 + $0x1c] sm:$0xf] %vm3131, %v3074
      %3140 = vst.msk [vmem:[%s283 + $0x20] sm:$0xf] %vm3131, %v3075
      %3141 = vst.msk [vmem:[%s283 + $0x24] sm:$0xf] %vm3131, %v3076
      %3142 = vst.msk [vmem:[%s283 + $0x28] sm:$0xf] %vm3131, %v3077
      %3143 = vst.msk [vmem:[%s283 + $0x2c] sm:$0xf] %vm3131, %v3078
      %3144 = vst.msk [vmem:[%s283 + $0x30] sm:$0xf] %vm3131, %v3079
      %3145 = vst.msk [vmem:[%s283 + $0x34] sm:$0xf] %vm3131, %v3080
      %3146 = vst.msk [vmem:[%s283 + $0x38] sm:$0xf] %vm3131, %v3081
      %3147 = vst.msk [vmem:[%s283 + $0x3c] sm:$0xf] %vm3131, %v3082
      %3148 = vst.msk [vmem:[%s283 + $0x40] sm:$0xf] %vm3131, %v3083
      %3149 = vst.msk [vmem:[%s283 + $0x44] sm:$0xf] %vm3131, %v3084
      %3150 = vst.msk [vmem:[%s283 + $0x48] sm:$0xf] %vm3131, %v3085
      %3151 = vst.msk [vmem:[%s283 + $0x4c] sm:$0xf] %vm3131, %v3086
      %3152 = vst.msk [vmem:[%s283 + $0x50] sm:$0xf] %vm3131, %v3087
      %3153 = vst.msk [vmem:[%s283 + $0x54] sm:$0xf] %vm3131, %v3088
      %3154 = vst.msk [vmem:[%s283 + $0x58] sm:$0xf] %vm3131, %v3089
      %3155 = vst.msk [vmem:[%s283 + $0x5c] sm:$0xf] %vm3131, %v3090
      %3156 = vst.msk [vmem:[%s283 + $0x60] sm:$0xf] %vm3131, %v3091
      %3157 = vst.msk [vmem:[%s283 + $0x64] sm:$0xf] %vm3131, %v3092
      %3158 = vst.msk [vmem:[%s283 + $0x68] sm:$0xf] %vm3131, %v3093
      %3159 = vst.msk [vmem:[%s283 + $0x6c] sm:$0xf] %vm3131, %v3094
      %3160 = vst.msk [vmem:[%s283 + $0x70] sm:$0xf] %vm3131, %v3095
      %3161 = vst.msk [vmem:[%s283 + $0x74] sm:$0xf] %vm3131, %v3096
      %3162 = vst.msk [vmem:[%s283 + $0x78] sm:$0xf] %vm3131, %v3097
      %3163 = vst.msk [vmem:[%s283 + $0x7c] sm:$0xf] %vm3131, %v3098
      %s3164 = smul.u32 4, %s17
      %p3165 = scmp.lt.s32.totalorder %s3164, 7
      %s3166 = scalar_select %p3165, %s3164, 7
      %s3167 = smul.addr %s3166, 8
      %s3168 = smul.addr %s3167, 4
      %s3169 = scalar_lea.vmem %s6, %s3168
      // Predicated region
      $region45: #{_lambda_.3} parent=43 // pred_check
        %p3170 = pneg %p171
      $region46: #{_lambda_.3} parent=43 // pred_check_branch
        %3172 = sbr.rel (%p3170) target = $region48
      $region47: #{_lambda_.3} parent=43 // pred_region
        %s3173 = smul.u32 4, %s17
      $region48: #{_lambda_.3} parent=43 // pred_fallthru
        _
    $region44: #{_lambda_.3} parent=5 // pred_fallthru
      _
    %p3174 = scmp.le.s32.totalorder 2, %s12
    // Predicated region
    $region49: #{_lambda_.3} parent=5 // pred_check
      %p3175 = pneg %p3174
    $region50: #{_lambda_.3} parent=5 // pred_check_branch
      %3177 = sbr.rel (%p3175) target = $region52
    $region51: #{_lambda_.3} parent=5 // pred_region
      %s3178 = ssub.s32 %s12, 2
      // Predicated region
      $region53: #{_lambda_.3} parent=51 // pred_check
        %p3179 = pneg %p177
      $region54: #{_lambda_.3} parent=51 // pred_check_branch
        %3181 = sbr.rel (%p3179) target = $region56
      $region55: #{_lambda_.3} parent=51 // pred_region
        %s3182 = smul.u32 4, %s18
        %p3183 = scmp.lt.s32.totalorder %s3182, 7
        %s3184 = scalar_select %p3183, %s3182, 7
        %s3185 = smul.addr %s3184, 8
        %s3186 = smul.addr %s3185, 4
        %s3187 = scalar_lea.vmem %s6, %s3186
      $region56: #{_lambda_.3} parent=51 // pred_fallthru
        _
    $region52: #{_lambda_.3} parent=5 // pred_fallthru
      _
  $region6: #{_lambda_.3} parent=0 // loop_footer
    %s16 = sadd.s32 1, %s12
  $region7: #{_lambda_.3} parent=0 // loop_footer_branch
    %11 = sbr.rel target = $region3
  $region8: #{_lambda_.3} parent=0 // loop_exit
    _

</llo_original>
